<compile_context>
chip_gen: v5e
topology: v5e:2x2
jax: 0.10.0
libtpu: 0.0.40
codegen_flags: <defaults>
</compile_context>

<pallas_src>
import numpy as np
import jax
import jax.numpy as jnp
from jax.experimental import pallas as pl
from jax.experimental.pallas import tpu as pltpu

NUM_ELEMENTS = 4          # ['H', 'C', 'N', 'O']
CELU_ALPHA = 0.1


# --------------------------------------------------------------------------------------
# AEV computation (plain-JAX feature construction, dense all-pairs / all-triples)
# --------------------------------------------------------------------------------------
def _cutoff_cosine(d, rc):
    return 0.5 * jnp.cos(jnp.pi * d / rc) + 0.5


def _pair_index_table(num_species):
    # matches torchani triu_index ordering: (0,0),(0,1),...,(0,S-1),(1,1),...
    tbl = np.zeros((num_species, num_species), dtype=np.int32)
    k = 0
    for s1 in range(num_species):
        for s2 in range(s1, num_species):
            tbl[s1, s2] = k
            tbl[s2, s1] = k
            k += 1
    return tbl


def make_aev_consts():
    Rcr, Rca = 5.2, 3.5
    ShfR_n, ShfA_n, ShfZ_n = 16, 4, 8
    return dict(
        Rcr=Rcr,
        Rca=Rca,
        EtaR=jnp.float32(16.0),
        ShfR=jnp.linspace(0.9, Rcr - (Rcr - 0.9) / ShfR_n, ShfR_n, dtype=jnp.float32),
        EtaA=jnp.float32(8.0),
        ShfA=jnp.linspace(0.9, Rca - (Rca - 0.9) / ShfA_n, ShfA_n, dtype=jnp.float32),
        Zeta=jnp.float32(32.0),
        ShfZ=jnp.linspace(np.pi / ShfZ_n / 2, np.pi - np.pi / ShfZ_n / 2, ShfZ_n,
                          dtype=jnp.float32),
    )


def compute_aev(species, coords, num_species, c):
    """species: (N, A) int32, coords: (N, A, 3) f32 -> aev (N, A, D) f32."""
    N, A = species.shape
    ShfR, ShfA, ShfZ = c["ShfR"], c["ShfA"], c["ShfZ"]
    n_shfr, n_shfa, n_shfz = ShfR.shape[0], ShfA.shape[0], ShfZ.shape[0]

    eye = jnp.eye(A, dtype=bool)[None]
    diff = coords[:, None, :, :] - coords[:, :, None, :]           # (N, Ai, Aj, 3) = r_j - r_i
    dist = jnp.sqrt(jnp.sum(diff * diff, axis=-1) + 1e-12)         # (N, Ai, Aj)
    valid = ~eye

    # ---- radial sub-AEV: 0.25 * exp(-EtaR*(d - ShfR)^2) * fc(d, Rcr), scattered by species_j
    in_r = valid & (dist <= c["Rcr"])
    fc_r = _cutoff_cosine(dist, c["Rcr"])
    rad = 0.25 * jnp.exp(-c["EtaR"] * (dist[..., None] - ShfR) ** 2) * fc_r[..., None]
    rad = jnp.where(in_r[..., None], rad, 0.0)                     # (N, Ai, Aj, n_shfr)
    oh_j = jax.nn.one_hot(species, num_species, dtype=coords.dtype)
    radial_aev = jnp.einsum("nijr,njs->nisr", rad, oh_j).reshape(
        N, A, num_species * n_shfr)

    # ---- angular sub-AEV over unordered neighbor pairs (j < k)
    in_a = valid & (dist <= c["Rca"])
    dot_jk = jnp.einsum("nijx,nikx->nijk", diff, diff)             # (N, Ai, Aj, Ak)
    d_j = dist[:, :, :, None]
    d_k = dist[:, :, None, :]
    # clip keeps arccos well-defined (and NaN-free under autodiff) for degenerate geometries
    cos_ang = jnp.clip(0.95 * dot_jk / (d_j * d_k), -0.95, 0.95)
    ang = jnp.arccos(cos_ang)                                      # (N, Ai, Aj, Ak)
    fc_a = _cutoff_cosine(dist, c["Rca"])
    fc_prod = fc_a[:, :, :, None] * fc_a[:, :, None, :]
    jk_lt = jnp.arange(A)[:, None] < jnp.arange(A)[None, :]
    valid_t = in_a[:, :, :, None] & in_a[:, :, None, :] & jk_lt[None, None]
    fc_masked = jnp.where(valid_t, fc_prod, 0.0)                   # (N, Ai, Aj, Ak)
    factor1 = ((1.0 + jnp.cos(ang[..., None] - ShfZ)) / 2.0) ** c["Zeta"]   # (..., n_shfz)
    davg = (d_j + d_k) / 2.0                                       # (N, Ai, Aj, Ak)

    tbl = jnp.asarray(_pair_index_table(num_species))
    num_pairs = num_species * (num_species + 1) // 2
    pair_idx = tbl[species[:, :, None], species[:, None, :]]       # (N, Aj, Ak)
    pair_oh = jax.nn.one_hot(pair_idx, num_pairs, dtype=coords.dtype)

    # Loop over the (small) ShfA axis so the largest dense intermediate is O(A^3 * n_shfz)
    # instead of O(A^3 * n_shfa * n_shfz).
    # TODO(synk): still O(A^3) dense; a Pallas kernel tiled over atom i is needed for large A.
    ang_slices = []
    for ia in range(n_shfa):
        w = jnp.exp(-c["EtaA"] * (davg - ShfA[ia]) ** 2) * fc_masked        # (N, Ai, Aj, Ak)
        ang_slices.append(jnp.einsum("nijkz,nijk,njkp->nipz", factor1, w, pair_oh))
    angular = 2.0 * jnp.stack(ang_slices, axis=3)                  # (N, A, P, n_shfa, n_shfz)
    angular_aev = angular.reshape(N, A, num_pairs * n_shfa * n_shfz)

    return jnp.concatenate([radial_aev, angular_aev], axis=-1)


# --------------------------------------------------------------------------------------
# Pallas kernel: fused (monomer + interaction) per-atom MLP + per-molecule atom sum
# --------------------------------------------------------------------------------------
def _celu(x):
    # forward-identical to torch.nn.CELU(alpha=0.1); exp argument clamped (NaN-safe gradients)
    return jnp.where(x > 0, x,
                     CELU_ALPHA * (jnp.exp(jnp.minimum(x, 0.0) / CELU_ALPHA) - 1.0))


def _fused_mlp_sum_kernel(*refs):
    """refs = (aev1, aev2, [mono w, b] * L, [inter w, b] * L, out).

    aev1: (Bm, A1, D1) bf16, aev2: (Bm, A2, D2) bf16, out: (Bm, C) f32.
    """
    aev1_ref, aev2_ref = refs[0], refs[1]
    out_ref = refs[-1]
    n_layers = (len(refs) - 3) // 4
    mono_wb = [(refs[2 + 2 * l], refs[3 + 2 * l]) for l in range(n_layers)]
    off = 2 + 2 * n_layers
    inter_wb = [(refs[off + 2 * l], refs[off + 1 + 2 * l]) for l in range(n_layers)]

    def mlp(x, wb):
        h = x                                                     # (Bm, D) bf16
        for li, (w_ref, b_ref) in enumerate(wb):
            z = jnp.dot(h, w_ref[...], preferred_element_type=jnp.float32) + b_ref[...]
            h = _celu(z).astype(jnp.bfloat16) if li < len(wb) - 1 else z
        return h                                                  # (Bm, C) f32

    acc = jnp.zeros(out_ref.shape, jnp.float32)                   # (Bm, C)
    for a in range(aev1_ref.shape[1]):                            # monomer atoms (static unroll)
        acc = acc + mlp(aev1_ref[:, a, :], mono_wb)
    for a in range(aev2_ref.shape[1]):                            # dimer atoms (static unroll)
        acc = acc + mlp(aev2_ref[:, a, :], inter_wb)
    out_ref[...] = acc


def fused_element_network_sum(aev1, aev2, mono_params, inter_params, block_mols=256):
    """aev1: (N, A1, D1) f32, aev2: (N, A2, D2) f32 (D1, D2 multiples of 128).

    Returns (N, C) f32 = sum_atoms MLP_mono(aev1) + sum_atoms MLP_inter(aev2).
    """
    N, A1, D1 = aev1.shape
    _, A2, D2 = aev2.shape

    Bm = max(1, min(block_mols, N))
    G = (N + Bm - 1) // Bm
    Npad = G * Bm
    if Npad != N:
        aev1 = jnp.pad(aev1, ((0, Npad - N), (0, 0), (0, 0)))
        aev2 = jnp.pad(aev2, ((0, Npad - N), (0, 0), (0, 0)))

    def prep(layer_params, d_in):
        ws, bs = [], []
        for li, (w, b) in enumerate(layer_params):
            if li == 0 and w.shape[0] != d_in:        # zero rows to match the lane padding
                w = jnp.pad(w, ((0, d_in - w.shape[0]), (0, 0)))
            ws.append(w.astype(jnp.bfloat16))
            bs.append(b.reshape(1, -1).astype(jnp.float32))
        return ws, bs

    mw, mb = prep(mono_params, D1)
    iw, ib = prep(inter_params, D2)
    C = mw[-1].shape[1]
    assert iw[-1].shape[1] == C

    operands = [aev1.astype(jnp.bfloat16), aev2.astype(jnp.bfloat16)]
    in_specs = [pl.BlockSpec((Bm, A1, D1), lambda g: (g, 0, 0)),
                pl.BlockSpec((Bm, A2, D2), lambda g: (g, 0, 0))]
    for w, b in list(zip(mw, mb)) + list(zip(iw, ib)):
        operands += [w, b]
        in_specs += [pl.BlockSpec(w.shape, lambda g: (0, 0)),     # constant -> DMAed once
                     pl.BlockSpec(b.shape, lambda g: (0, 0))]

    out = pl.pallas_call(
        _fused_mlp_sum_kernel,
        grid=(G,),
        in_specs=in_specs,
        out_specs=pl.BlockSpec((Bm, C), lambda g: (g, 0)),
        out_shape=jax.ShapeDtypeStruct((Npad, C), jnp.float32),
        compiler_params=pltpu.CompilerParams(
            dimension_semantics=("parallel",),                    # molecule blocks independent
            vmem_limit_bytes=48 * 1024 * 1024),
    )(*operands)
    return out[:N]


# --------------------------------------------------------------------------------------
# Parameter init (deterministic, xavier-normal weights / zero biases like init_params)
# --------------------------------------------------------------------------------------
def _xavier_normal(key, fan_in, fan_out):
    std = float(np.sqrt(2.0 / (fan_in + fan_out)))
    return std * jax.random.normal(key, (fan_in, fan_out), dtype=jnp.float32)


def init_element_network(key, in_dim, hidden, out_dim):
    dims = [in_dim] + list(hidden) + [out_dim]
    keys = jax.random.split(key, len(dims) - 1)
    return [(_xavier_normal(k, di, do), jnp.zeros((do,), jnp.float32))
            for k, di, do in zip(keys, dims[:-1], dims[1:])]


# --------------------------------------------------------------------------------------
# LocalExcitedStateNNP forward (output_1e1g = False)
# --------------------------------------------------------------------------------------
def local_excited_state_nnp_forward(params, species, coordinates, belongings,
                                    approx=None, block_mols=256):
    consts = params["aev_consts"]
    N, A = species.shape

    # --- monomer branch: extract molecule-1 atoms (static per-row count, like masked_select+view)
    mask1 = np.asarray(belongings) == 1
    natom1 = int(mask1[0].sum())
    idx1 = jnp.asarray(
        np.stack([np.nonzero(mask1[n])[0] for n in range(N)]).astype(np.int32))   # (N, natom1)
    rows = jnp.arange(N)[:, None]
    species1 = species[rows, idx1]                                  # (N, natom1)
    coord1 = coordinates[rows, idx1]                                # (N, natom1, 3)

    aev1 = compute_aev(species1, coord1, NUM_ELEMENTS, consts)      # (N, natom1, 384)
    pad1 = (-aev1.shape[-1]) % 128
    if pad1:
        aev1 = jnp.concatenate(
            [aev1, jnp.zeros((N, natom1, pad1), aev1.dtype)], axis=-1)

    # --- interaction branch: dimer AEV (species shifted by belonging -> 8 species) + approx ch.
    species_wb = species + (belongings - 1) * NUM_ELEMENTS
    aev2 = compute_aev(species_wb, coordinates, 2 * NUM_ELEMENTS, consts)   # (N, A, 1280)
    if approx is None:
        approx_feat = jnp.zeros((N, A, 1), dtype=aev2.dtype)
    else:
        approx_feat = (approx[..., None] if approx.ndim == 2 else approx).astype(aev2.dtype)
    pad2 = (-(aev2.shape[-1] + approx_feat.shape[-1])) % 128
    parts = [aev2, approx_feat]
    if pad2:
        # fold lane padding into the existing concat (no separate HBM pad pass of the full AEV)
        parts.append(jnp.zeros((N, A, pad2), aev2.dtype))
    aev2 = jnp.concatenate(parts, axis=-1)                          # (N, A, 1408)

    # fused monomer + interaction MLP + per-molecule atom-sum -> ele1g + einta
    return fused_element_network_sum(aev1, aev2, params["monomer"], params["interaction"],
                                     block_mols=block_mols)          # (N, 1)


# --------------------------------------------------------------------------------------
if __name__ == "__main__":
    key = jax.random.PRNGKey(0)
    k_coord, k_spec, k_mono, k_inter = jax.random.split(key, 4)

    N, A, natom1 = 2, 8, 4
    coordinates = jax.random.uniform(k_coord, (N, A, 3), dtype=jnp.float32) * 3.0
    species = jax.random.randint(k_spec, (N, A), 0, NUM_ELEMENTS, dtype=jnp.int32)
    belongings = jnp.concatenate(
        [jnp.ones((N, natom1), jnp.int32), 2 * jnp.ones((N, A - natom1), jnp.int32)], axis=1)

    consts = make_aev_consts()
    mono_in = NUM_ELEMENTS * 16 + (NUM_ELEMENTS * (NUM_ELEMENTS + 1) // 2) * 4 * 8        # 384
    S2 = 2 * NUM_ELEMENTS
    inter_in = S2 * 16 + (S2 * (S2 + 1) // 2) * 4 * 8 + 1                                 # 1281
    params = dict(
        aev_consts=consts,
        monomer=init_element_network(k_mono, mono_in, [64, 32, 16], 1),
        interaction=init_element_network(k_inter, inter_in, [64, 32, 16], 1),
    )

    out = local_excited_state_nnp_forward(params, species, coordinates, belongings)
    out = jax.block_until_ready(out)
    assert out.shape == (N, 1), out.shape
    assert bool(jnp.all(jnp.isfinite(out)))
    print("KERNEL_OK")
</pallas_src>

<mosaic_0001>
module attributes {stable_mosaic.version = 11 : i64} {
  func.func @_fused_mlp_sum_kernel(%arg0: i32, %arg1: memref<2x4x384xbf16, #tpu.memory_space<vmem>>, %arg2: memref<2x8x1408xbf16, #tpu.memory_space<vmem>>, %arg3: memref<384x64xbf16, #tpu.memory_space<vmem>>, %arg4: memref<1x64xf32, #tpu.memory_space<vmem>>, %arg5: memref<64x32xbf16, #tpu.memory_space<vmem>>, %arg6: memref<1x32xf32, #tpu.memory_space<vmem>>, %arg7: memref<32x16xbf16, #tpu.memory_space<vmem>>, %arg8: memref<1x16xf32, #tpu.memory_space<vmem>>, %arg9: memref<16x1xbf16, #tpu.memory_space<vmem>>, %arg10: memref<1x1xf32, #tpu.memory_space<vmem>>, %arg11: memref<1408x64xbf16, #tpu.memory_space<vmem>>, %arg12: memref<1x64xf32, #tpu.memory_space<vmem>>, %arg13: memref<64x32xbf16, #tpu.memory_space<vmem>>, %arg14: memref<1x32xf32, #tpu.memory_space<vmem>>, %arg15: memref<32x16xbf16, #tpu.memory_space<vmem>>, %arg16: memref<1x16xf32, #tpu.memory_space<vmem>>, %arg17: memref<16x1xbf16, #tpu.memory_space<vmem>>, %arg18: memref<1x1xf32, #tpu.memory_space<vmem>>, %arg19: memref<2x1xf32, #tpu.memory_space<vmem>>) attributes {dimension_semantics = [#tpu.dimension_semantics<parallel>], iteration_bounds = array<i64: 1>, scalar_prefetch = 0 : i64, scratch_operands = 0 : i64, tpu.core_type = #tpu.core_type<tc>, window_params = [{transform_indices = @transform_0, window_bounds = array<i64: 2, 4, 384>}, {transform_indices = @transform_1, window_bounds = array<i64: 2, 8, 1408>}, {pipeline_mode = #tpu.pipeline_mode<synchronous>, transform_indices = @transform_2, window_bounds = array<i64: 384, 64>}, {pipeline_mode = #tpu.pipeline_mode<synchronous>, transform_indices = @transform_3, window_bounds = array<i64: 1, 64>}, {pipeline_mode = #tpu.pipeline_mode<synchronous>, transform_indices = @transform_4, window_bounds = array<i64: 64, 32>}, {pipeline_mode = #tpu.pipeline_mode<synchronous>, transform_indices = @transform_5, window_bounds = array<i64: 1, 32>}, {pipeline_mode = #tpu.pipeline_mode<synchronous>, transform_indices = @transform_6, window_bounds = array<i64: 32, 16>}, {pipeline_mode = #tpu.pipeline_mode<synchronous>, transform_indices = @transform_7, window_bounds = array<i64: 1, 16>}, {pipeline_mode = #tpu.pipeline_mode<synchronous>, transform_indices = @transform_8, window_bounds = array<i64: 16, 1>}, {pipeline_mode = #tpu.pipeline_mode<synchronous>, transform_indices = @transform_9, window_bounds = array<i64: 1, 1>}, {pipeline_mode = #tpu.pipeline_mode<synchronous>, transform_indices = @transform_10, window_bounds = array<i64: 1408, 64>}, {pipeline_mode = #tpu.pipeline_mode<synchronous>, transform_indices = @transform_11, window_bounds = array<i64: 1, 64>}, {pipeline_mode = #tpu.pipeline_mode<synchronous>, transform_indices = @transform_12, window_bounds = array<i64: 64, 32>}, {pipeline_mode = #tpu.pipeline_mode<synchronous>, transform_indices = @transform_13, window_bounds = array<i64: 1, 32>}, {pipeline_mode = #tpu.pipeline_mode<synchronous>, transform_indices = @transform_14, window_bounds = array<i64: 32, 16>}, {pipeline_mode = #tpu.pipeline_mode<synchronous>, transform_indices = @transform_15, window_bounds = array<i64: 1, 16>}, {pipeline_mode = #tpu.pipeline_mode<synchronous>, transform_indices = @transform_16, window_bounds = array<i64: 16, 1>}, {pipeline_mode = #tpu.pipeline_mode<synchronous>, transform_indices = @transform_17, window_bounds = array<i64: 1, 1>}, {transform_indices = @transform_18, window_bounds = array<i64: 2, 1>}]} {
    %cst = arith.constant 0.000000e+00 : f32
    %0 = vector.broadcast %cst : f32 to vector<2x1xf32>
    %c0 = arith.constant 0 : index
    %c0_0 = arith.constant 0 : index
    %c0_1 = arith.constant 0 : index
    %1 = vector.load %arg1[%c0, %c0_0, %c0_1] : memref<2x4x384xbf16, #tpu.memory_space<vmem>>, vector<2x1x384xbf16>
    %2 = vector.shape_cast %1 : vector<2x1x384xbf16> to vector<2x384xbf16>
    %c0_2 = arith.constant 0 : index
    %c0_3 = arith.constant 0 : index
    %3 = vector.load %arg3[%c0_2, %c0_3] : memref<384x64xbf16, #tpu.memory_space<vmem>>, vector<384x64xbf16>
    %cst_4 = arith.constant dense<0.000000e+00> : vector<2x64xf32>
    %4 = tpu.matmul %2, %3, %cst_4 {dimension_numbers = #tpu.dot_dimension_numbers<[1], [0], [0], [1], [0, 0, 1, 1], [], []>} : vector<2x384xbf16>, vector<384x64xbf16>, vector<2x64xf32> -> vector<2x64xf32>
    %c0_5 = arith.constant 0 : index
    %c0_6 = arith.constant 0 : index
    %5 = vector.load %arg4[%c0_5, %c0_6] : memref<1x64xf32, #tpu.memory_space<vmem>>, vector<1x64xf32>
    %6 = vector.broadcast %5 : vector<1x64xf32> to vector<2x64xf32>
    %7 = arith.addf %4, %6 : vector<2x64xf32>
    %cst_7 = arith.constant 0.000000e+00 : f32
    %8 = vector.broadcast %cst_7 : f32 to vector<2x64xf32>
    %9 = arith.cmpf ogt, %7, %8 : vector<2x64xf32>
    %cst_8 = arith.constant 0.000000e+00 : f32
    %10 = vector.broadcast %cst_8 : f32 to vector<2x64xf32>
    %11 = arith.minimumf %7, %10 : vector<2x64xf32>
    %cst_9 = arith.constant 1.000000e-01 : f32
    %12 = vector.broadcast %cst_9 : f32 to vector<2x64xf32>
    %13 = arith.divf %11, %12 : vector<2x64xf32>
    %14 = math.exp %13 : vector<2x64xf32>
    %cst_10 = arith.constant 1.000000e+00 : f32
    %15 = vector.broadcast %cst_10 : f32 to vector<2x64xf32>
    %16 = arith.subf %14, %15 : vector<2x64xf32>
    %cst_11 = arith.constant 1.000000e-01 : f32
    %17 = vector.broadcast %cst_11 : f32 to vector<2x64xf32>
    %18 = arith.mulf %17, %16 : vector<2x64xf32>
    %19 = arith.select %9, %7, %18 : vector<2x64xi1>, vector<2x64xf32>
    %20 = arith.truncf %19 : vector<2x64xf32> to vector<2x64xbf16>
    %c0_12 = arith.constant 0 : index
    %c0_13 = arith.constant 0 : index
    %21 = vector.load %arg5[%c0_12, %c0_13] : memref<64x32xbf16, #tpu.memory_space<vmem>>, vector<64x32xbf16>
    %cst_14 = arith.constant dense<0.000000e+00> : vector<2x32xf32>
    %22 = tpu.matmul %20, %21, %cst_14 {dimension_numbers = #tpu.dot_dimension_numbers<[1], [0], [0], [1], [0, 0, 1, 1], [], []>} : vector<2x64xbf16>, vector<64x32xbf16>, vector<2x32xf32> -> vector<2x32xf32>
    %c0_15 = arith.constant 0 : index
    %c0_16 = arith.constant 0 : index
    %23 = vector.load %arg6[%c0_15, %c0_16] : memref<1x32xf32, #tpu.memory_space<vmem>>, vector<1x32xf32>
    %24 = vector.broadcast %23 : vector<1x32xf32> to vector<2x32xf32>
    %25 = arith.addf %22, %24 : vector<2x32xf32>
    %cst_17 = arith.constant 0.000000e+00 : f32
    %26 = vector.broadcast %cst_17 : f32 to vector<2x32xf32>
    %27 = arith.cmpf ogt, %25, %26 : vector<2x32xf32>
    %cst_18 = arith.constant 0.000000e+00 : f32
    %28 = vector.broadcast %cst_18 : f32 to vector<2x32xf32>
    %29 = arith.minimumf %25, %28 : vector<2x32xf32>
    %cst_19 = arith.constant 1.000000e-01 : f32
    %30 = vector.broadcast %cst_19 : f32 to vector<2x32xf32>
    %31 = arith.divf %29, %30 : vector<2x32xf32>
    %32 = math.exp %31 : vector<2x32xf32>
    %cst_20 = arith.constant 1.000000e+00 : f32
    %33 = vector.broadcast %cst_20 : f32 to vector<2x32xf32>
    %34 = arith.subf %32, %33 : vector<2x32xf32>
    %cst_21 = arith.constant 1.000000e-01 : f32
    %35 = vector.broadcast %cst_21 : f32 to vector<2x32xf32>
    %36 = arith.mulf %35, %34 : vector<2x32xf32>
    %37 = arith.select %27, %25, %36 : vector<2x32xi1>, vector<2x32xf32>
    %38 = arith.truncf %37 : vector<2x32xf32> to vector<2x32xbf16>
    %c0_22 = arith.constant 0 : index
    %c0_23 = arith.constant 0 : index
    %39 = vector.load %arg7[%c0_22, %c0_23] : memref<32x16xbf16, #tpu.memory_space<vmem>>, vector<32x16xbf16>
    %cst_24 = arith.constant dense<0.000000e+00> : vector<2x16xf32>
    %40 = tpu.matmul %38, %39, %cst_24 {dimension_numbers = #tpu.dot_dimension_numbers<[1], [0], [0], [1], [0, 0, 1, 1], [], []>} : vector<2x32xbf16>, vector<32x16xbf16>, vector<2x16xf32> -> vector<2x16xf32>
    %c0_25 = arith.constant 0 : index
    %c0_26 = arith.constant 0 : index
    %41 = vector.load %arg8[%c0_25, %c0_26] : memref<1x16xf32, #tpu.memory_space<vmem>>, vector<1x16xf32>
    %42 = vector.broadcast %41 : vector<1x16xf32> to vector<2x16xf32>
    %43 = arith.addf %40, %42 : vector<2x16xf32>
    %cst_27 = arith.constant 0.000000e+00 : f32
    %44 = vector.broadcast %cst_27 : f32 to vector<2x16xf32>
    %45 = arith.cmpf ogt, %43, %44 : vector<2x16xf32>
    %cst_28 = arith.constant 0.000000e+00 : f32
    %46 = vector.broadcast %cst_28 : f32 to vector<2x16xf32>
    %47 = arith.minimumf %43, %46 : vector<2x16xf32>
    %cst_29 = arith.constant 1.000000e-01 : f32
    %48 = vector.broadcast %cst_29 : f32 to vector<2x16xf32>
    %49 = arith.divf %47, %48 : vector<2x16xf32>
    %50 = math.exp %49 : vector<2x16xf32>
    %cst_30 = arith.constant 1.000000e+00 : f32
    %51 = vector.broadcast %cst_30 : f32 to vector<2x16xf32>
    %52 = arith.subf %50, %51 : vector<2x16xf32>
    %cst_31 = arith.constant 1.000000e-01 : f32
    %53 = vector.broadcast %cst_31 : f32 to vector<2x16xf32>
    %54 = arith.mulf %53, %52 : vector<2x16xf32>
    %55 = arith.select %45, %43, %54 : vector<2x16xi1>, vector<2x16xf32>
    %56 = arith.truncf %55 : vector<2x16xf32> to vector<2x16xbf16>
    %c0_32 = arith.constant 0 : index
    %c0_33 = arith.constant 0 : index
    %57 = vector.load %arg9[%c0_32, %c0_33] : memref<16x1xbf16, #tpu.memory_space<vmem>>, vector<16x1xbf16>
    %cst_34 = arith.constant dense<0.000000e+00> : vector<2x1xf32>
    %58 = tpu.matmul %56, %57, %cst_34 {dimension_numbers = #tpu.dot_dimension_numbers<[1], [0], [0], [1], [0, 0, 1, 1], [], []>} : vector<2x16xbf16>, vector<16x1xbf16>, vector<2x1xf32> -> vector<2x1xf32>
    %c0_35 = arith.constant 0 : index
    %c0_36 = arith.constant 0 : index
    %59 = vector.load %arg10[%c0_35, %c0_36] : memref<1x1xf32, #tpu.memory_space<vmem>>, vector<1x1xf32>
    %60 = vector.broadcast %59 : vector<1x1xf32> to vector<2x1xf32>
    %61 = arith.addf %58, %60 : vector<2x1xf32>
    %62 = arith.addf %0, %61 : vector<2x1xf32>
    %c0_37 = arith.constant 0 : index
    %c1 = arith.constant 1 : index
    %c0_38 = arith.constant 0 : index
    %63 = vector.load %arg1[%c0_37, %c1, %c0_38] : memref<2x4x384xbf16, #tpu.memory_space<vmem>>, vector<2x1x384xbf16>
    %64 = vector.shape_cast %63 : vector<2x1x384xbf16> to vector<2x384xbf16>
    %c0_39 = arith.constant 0 : index
    %c0_40 = arith.constant 0 : index
    %65 = vector.load %arg3[%c0_39, %c0_40] : memref<384x64xbf16, #tpu.memory_space<vmem>>, vector<384x64xbf16>
    %cst_41 = arith.constant dense<0.000000e+00> : vector<2x64xf32>
    %66 = tpu.matmul %64, %65, %cst_41 {dimension_numbers = #tpu.dot_dimension_numbers<[1], [0], [0], [1], [0, 0, 1, 1], [], []>} : vector<2x384xbf16>, vector<384x64xbf16>, vector<2x64xf32> -> vector<2x64xf32>
    %c0_42 = arith.constant 0 : index
    %c0_43 = arith.constant 0 : index
    %67 = vector.load %arg4[%c0_42, %c0_43] : memref<1x64xf32, #tpu.memory_space<vmem>>, vector<1x64xf32>
    %68 = vector.broadcast %67 : vector<1x64xf32> to vector<2x64xf32>
    %69 = arith.addf %66, %68 : vector<2x64xf32>
    %cst_44 = arith.constant 0.000000e+00 : f32
    %70 = vector.broadcast %cst_44 : f32 to vector<2x64xf32>
    %71 = arith.cmpf ogt, %69, %70 : vector<2x64xf32>
    %cst_45 = arith.constant 0.000000e+00 : f32
    %72 = vector.broadcast %cst_45 : f32 to vector<2x64xf32>
    %73 = arith.minimumf %69, %72 : vector<2x64xf32>
    %cst_46 = arith.constant 1.000000e-01 : f32
    %74 = vector.broadcast %cst_46 : f32 to vector<2x64xf32>
    %75 = arith.divf %73, %74 : vector<2x64xf32>
    %76 = math.exp %75 : vector<2x64xf32>
    %cst_47 = arith.constant 1.000000e+00 : f32
    %77 = vector.broadcast %cst_47 : f32 to vector<2x64xf32>
    %78 = arith.subf %76, %77 : vector<2x64xf32>
    %cst_48 = arith.constant 1.000000e-01 : f32
    %79 = vector.broadcast %cst_48 : f32 to vector<2x64xf32>
    %80 = arith.mulf %79, %78 : vector<2x64xf32>
    %81 = arith.select %71, %69, %80 : vector<2x64xi1>, vector<2x64xf32>
    %82 = arith.truncf %81 : vector<2x64xf32> to vector<2x64xbf16>
    %c0_49 = arith.constant 0 : index
    %c0_50 = arith.constant 0 : index
    %83 = vector.load %arg5[%c0_49, %c0_50] : memref<64x32xbf16, #tpu.memory_space<vmem>>, vector<64x32xbf16>
    %cst_51 = arith.constant dense<0.000000e+00> : vector<2x32xf32>
    %84 = tpu.matmul %82, %83, %cst_51 {dimension_numbers = #tpu.dot_dimension_numbers<[1], [0], [0], [1], [0, 0, 1, 1], [], []>} : vector<2x64xbf16>, vector<64x32xbf16>, vector<2x32xf32> -> vector<2x32xf32>
    %c0_52 = arith.constant 0 : index
    %c0_53 = arith.constant 0 : index
    %85 = vector.load %arg6[%c0_52, %c0_53] : memref<1x32xf32, #tpu.memory_space<vmem>>, vector<1x32xf32>
    %86 = vector.broadcast %85 : vector<1x32xf32> to vector<2x32xf32>
    %87 = arith.addf %84, %86 : vector<2x32xf32>
    %cst_54 = arith.constant 0.000000e+00 : f32
    %88 = vector.broadcast %cst_54 : f32 to vector<2x32xf32>
    %89 = arith.cmpf ogt, %87, %88 : vector<2x32xf32>
    %cst_55 = arith.constant 0.000000e+00 : f32
    %90 = vector.broadcast %cst_55 : f32 to vector<2x32xf32>
    %91 = arith.minimumf %87, %90 : vector<2x32xf32>
    %cst_56 = arith.constant 1.000000e-01 : f32
    %92 = vector.broadcast %cst_56 : f32 to vector<2x32xf32>
    %93 = arith.divf %91, %92 : vector<2x32xf32>
    %94 = math.exp %93 : vector<2x32xf32>
    %cst_57 = arith.constant 1.000000e+00 : f32
    %95 = vector.broadcast %cst_57 : f32 to vector<2x32xf32>
    %96 = arith.subf %94, %95 : vector<2x32xf32>
    %cst_58 = arith.constant 1.000000e-01 : f32
    %97 = vector.broadcast %cst_58 : f32 to vector<2x32xf32>
    %98 = arith.mulf %97, %96 : vector<2x32xf32>
    %99 = arith.select %89, %87, %98 : vector<2x32xi1>, vector<2x32xf32>
    %100 = arith.truncf %99 : vector<2x32xf32> to vector<2x32xbf16>
    %c0_59 = arith.constant 0 : index
    %c0_60 = arith.constant 0 : index
    %101 = vector.load %arg7[%c0_59, %c0_60] : memref<32x16xbf16, #tpu.memory_space<vmem>>, vector<32x16xbf16>
    %cst_61 = arith.constant dense<0.000000e+00> : vector<2x16xf32>
    %102 = tpu.matmul %100, %101, %cst_61 {dimension_numbers = #tpu.dot_dimension_numbers<[1], [0], [0], [1], [0, 0, 1, 1], [], []>} : vector<2x32xbf16>, vector<32x16xbf16>, vector<2x16xf32> -> vector<2x16xf32>
    %c0_62 = arith.constant 0 : index
    %c0_63 = arith.constant 0 : index
    %103 = vector.load %arg8[%c0_62, %c0_63] : memref<1x16xf32, #tpu.memory_space<vmem>>, vector<1x16xf32>
    %104 = vector.broadcast %103 : vector<1x16xf32> to vector<2x16xf32>
    %105 = arith.addf %102, %104 : vector<2x16xf32>
    %cst_64 = arith.constant 0.000000e+00 : f32
    %106 = vector.broadcast %cst_64 : f32 to vector<2x16xf32>
    %107 = arith.cmpf ogt, %105, %106 : vector<2x16xf32>
    %cst_65 = arith.constant 0.000000e+00 : f32
    %108 = vector.broadcast %cst_65 : f32 to vector<2x16xf32>
    %109 = arith.minimumf %105, %108 : vector<2x16xf32>
    %cst_66 = arith.constant 1.000000e-01 : f32
    %110 = vector.broadcast %cst_66 : f32 to vector<2x16xf32>
    %111 = arith.divf %109, %110 : vector<2x16xf32>
    %112 = math.exp %111 : vector<2x16xf32>
    %cst_67 = arith.constant 1.000000e+00 : f32
    %113 = vector.broadcast %cst_67 : f32 to vector<2x16xf32>
    %114 = arith.subf %112, %113 : vector<2x16xf32>
    %cst_68 = arith.constant 1.000000e-01 : f32
    %115 = vector.broadcast %cst_68 : f32 to vector<2x16xf32>
    %116 = arith.mulf %115, %114 : vector<2x16xf32>
    %117 = arith.select %107, %105, %116 : vector<2x16xi1>, vector<2x16xf32>
    %118 = arith.truncf %117 : vector<2x16xf32> to vector<2x16xbf16>
    %c0_69 = arith.constant 0 : index
    %c0_70 = arith.constant 0 : index
    %119 = vector.load %arg9[%c0_69, %c0_70] : memref<16x1xbf16, #tpu.memory_space<vmem>>, vector<16x1xbf16>
    %cst_71 = arith.constant dense<0.000000e+00> : vector<2x1xf32>
    %120 = tpu.matmul %118, %119, %cst_71 {dimension_numbers = #tpu.dot_dimension_numbers<[1], [0], [0], [1], [0, 0, 1, 1], [], []>} : vector<2x16xbf16>, vector<16x1xbf16>, vector<2x1xf32> -> vector<2x1xf32>
    %c0_72 = arith.constant 0 : index
    %c0_73 = arith.constant 0 : index
    %121 = vector.load %arg10[%c0_72, %c0_73] : memref<1x1xf32, #tpu.memory_space<vmem>>, vector<1x1xf32>
    %122 = vector.broadcast %121 : vector<1x1xf32> to vector<2x1xf32>
    %123 = arith.addf %120, %122 : vector<2x1xf32>
    %124 = arith.addf %62, %123 : vector<2x1xf32>
    %c0_74 = arith.constant 0 : index
    %c2 = arith.constant 2 : index
    %c0_75 = arith.constant 0 : index
    %125 = vector.load %arg1[%c0_74, %c2, %c0_75] : memref<2x4x384xbf16, #tpu.memory_space<vmem>>, vector<2x1x384xbf16>
    %126 = vector.shape_cast %125 : vector<2x1x384xbf16> to vector<2x384xbf16>
    %c0_76 = arith.constant 0 : index
    %c0_77 = arith.constant 0 : index
    %127 = vector.load %arg3[%c0_76, %c0_77] : memref<384x64xbf16, #tpu.memory_space<vmem>>, vector<384x64xbf16>
    %cst_78 = arith.constant dense<0.000000e+00> : vector<2x64xf32>
    %128 = tpu.matmul %126, %127, %cst_78 {dimension_numbers = #tpu.dot_dimension_numbers<[1], [0], [0], [1], [0, 0, 1, 1], [], []>} : vector<2x384xbf16>, vector<384x64xbf16>, vector<2x64xf32> -> vector<2x64xf32>
    %c0_79 = arith.constant 0 : index
    %c0_80 = arith.constant 0 : index
    %129 = vector.load %arg4[%c0_79, %c0_80] : memref<1x64xf32, #tpu.memory_space<vmem>>, vector<1x64xf32>
    %130 = vector.broadcast %129 : vector<1x64xf32> to vector<2x64xf32>
    %131 = arith.addf %128, %130 : vector<2x64xf32>
    %cst_81 = arith.constant 0.000000e+00 : f32
    %132 = vector.broadcast %cst_81 : f32 to vector<2x64xf32>
    %133 = arith.cmpf ogt, %131, %132 : vector<2x64xf32>
    %cst_82 = arith.constant 0.000000e+00 : f32
    %134 = vector.broadcast %cst_82 : f32 to vector<2x64xf32>
    %135 = arith.minimumf %131, %134 : vector<2x64xf32>
    %cst_83 = arith.constant 1.000000e-01 : f32
    %136 = vector.broadcast %cst_83 : f32 to vector<2x64xf32>
    %137 = arith.divf %135, %136 : vector<2x64xf32>
    %138 = math.exp %137 : vector<2x64xf32>
    %cst_84 = arith.constant 1.000000e+00 : f32
    %139 = vector.broadcast %cst_84 : f32 to vector<2x64xf32>
    %140 = arith.subf %138, %139 : vector<2x64xf32>
    %cst_85 = arith.constant 1.000000e-01 : f32
    %141 = vector.broadcast %cst_85 : f32 to vector<2x64xf32>
    %142 = arith.mulf %141, %140 : vector<2x64xf32>
    %143 = arith.select %133, %131, %142 : vector<2x64xi1>, vector<2x64xf32>
    %144 = arith.truncf %143 : vector<2x64xf32> to vector<2x64xbf16>
    %c0_86 = arith.constant 0 : index
    %c0_87 = arith.constant 0 : index
    %145 = vector.load %arg5[%c0_86, %c0_87] : memref<64x32xbf16, #tpu.memory_space<vmem>>, vector<64x32xbf16>
    %cst_88 = arith.constant dense<0.000000e+00> : vector<2x32xf32>
    %146 = tpu.matmul %144, %145, %cst_88 {dimension_numbers = #tpu.dot_dimension_numbers<[1], [0], [0], [1], [0, 0, 1, 1], [], []>} : vector<2x64xbf16>, vector<64x32xbf16>, vector<2x32xf32> -> vector<2x32xf32>
    %c0_89 = arith.constant 0 : index
    %c0_90 = arith.constant 0 : index
    %147 = vector.load %arg6[%c0_89, %c0_90] : memref<1x32xf32, #tpu.memory_space<vmem>>, vector<1x32xf32>
    %148 = vector.broadcast %147 : vector<1x32xf32> to vector<2x32xf32>
    %149 = arith.addf %146, %148 : vector<2x32xf32>
    %cst_91 = arith.constant 0.000000e+00 : f32
    %150 = vector.broadcast %cst_91 : f32 to vector<2x32xf32>
    %151 = arith.cmpf ogt, %149, %150 : vector<2x32xf32>
    %cst_92 = arith.constant 0.000000e+00 : f32
    %152 = vector.broadcast %cst_92 : f32 to vector<2x32xf32>
    %153 = arith.minimumf %149, %152 : vector<2x32xf32>
    %cst_93 = arith.constant 1.000000e-01 : f32
    %154 = vector.broadcast %cst_93 : f32 to vector<2x32xf32>
    %155 = arith.divf %153, %154 : vector<2x32xf32>
    %156 = math.exp %155 : vector<2x32xf32>
    %cst_94 = arith.constant 1.000000e+00 : f32
    %157 = vector.broadcast %cst_94 : f32 to vector<2x32xf32>
    %158 = arith.subf %156, %157 : vector<2x32xf32>
    %cst_95 = arith.constant 1.000000e-01 : f32
    %159 = vector.broadcast %cst_95 : f32 to vector<2x32xf32>
    %160 = arith.mulf %159, %158 : vector<2x32xf32>
    %161 = arith.select %151, %149, %160 : vector<2x32xi1>, vector<2x32xf32>
    %162 = arith.truncf %161 : vector<2x32xf32> to vector<2x32xbf16>
    %c0_96 = arith.constant 0 : index
    %c0_97 = arith.constant 0 : index
    %163 = vector.load %arg7[%c0_96, %c0_97] : memref<32x16xbf16, #tpu.memory_space<vmem>>, vector<32x16xbf16>
    %cst_98 = arith.constant dense<0.000000e+00> : vector<2x16xf32>
    %164 = tpu.matmul %162, %163, %cst_98 {dimension_numbers = #tpu.dot_dimension_numbers<[1], [0], [0], [1], [0, 0, 1, 1], [], []>} : vector<2x32xbf16>, vector<32x16xbf16>, vector<2x16xf32> -> vector<2x16xf32>
    %c0_99 = arith.constant 0 : index
    %c0_100 = arith.constant 0 : index
    %165 = vector.load %arg8[%c0_99, %c0_100] : memref<1x16xf32, #tpu.memory_space<vmem>>, vector<1x16xf32>
    %166 = vector.broadcast %165 : vector<1x16xf32> to vector<2x16xf32>
    %167 = arith.addf %164, %166 : vector<2x16xf32>
    %cst_101 = arith.constant 0.000000e+00 : f32
    %168 = vector.broadcast %cst_101 : f32 to vector<2x16xf32>
    %169 = arith.cmpf ogt, %167, %168 : vector<2x16xf32>
    %cst_102 = arith.constant 0.000000e+00 : f32
    %170 = vector.broadcast %cst_102 : f32 to vector<2x16xf32>
    %171 = arith.minimumf %167, %170 : vector<2x16xf32>
    %cst_103 = arith.constant 1.000000e-01 : f32
    %172 = vector.broadcast %cst_103 : f32 to vector<2x16xf32>
    %173 = arith.divf %171, %172 : vector<2x16xf32>
    %174 = math.exp %173 : vector<2x16xf32>
    %cst_104 = arith.constant 1.000000e+00 : f32
    %175 = vector.broadcast %cst_104 : f32 to vector<2x16xf32>
    %176 = arith.subf %174, %175 : vector<2x16xf32>
    %cst_105 = arith.constant 1.000000e-01 : f32
    %177 = vector.broadcast %cst_105 : f32 to vector<2x16xf32>
    %178 = arith.mulf %177, %176 : vector<2x16xf32>
    %179 = arith.select %169, %167, %178 : vector<2x16xi1>, vector<2x16xf32>
    %180 = arith.truncf %179 : vector<2x16xf32> to vector<2x16xbf16>
    %c0_106 = arith.constant 0 : index
    %c0_107 = arith.constant 0 : index
    %181 = vector.load %arg9[%c0_106, %c0_107] : memref<16x1xbf16, #tpu.memory_space<vmem>>, vector<16x1xbf16>
    %cst_108 = arith.constant dense<0.000000e+00> : vector<2x1xf32>
    %182 = tpu.matmul %180, %181, %cst_108 {dimension_numbers = #tpu.dot_dimension_numbers<[1], [0], [0], [1], [0, 0, 1, 1], [], []>} : vector<2x16xbf16>, vector<16x1xbf16>, vector<2x1xf32> -> vector<2x1xf32>
    %c0_109 = arith.constant 0 : index
    %c0_110 = arith.constant 0 : index
    %183 = vector.load %arg10[%c0_109, %c0_110] : memref<1x1xf32, #tpu.memory_space<vmem>>, vector<1x1xf32>
    %184 = vector.broadcast %183 : vector<1x1xf32> to vector<2x1xf32>
    %185 = arith.addf %182, %184 : vector<2x1xf32>
    %186 = arith.addf %124, %185 : vector<2x1xf32>
    %c0_111 = arith.constant 0 : index
    %c3 = arith.constant 3 : index
    %c0_112 = arith.constant 0 : index
    %187 = vector.load %arg1[%c0_111, %c3, %c0_112] : memref<2x4x384xbf16, #tpu.memory_space<vmem>>, vector<2x1x384xbf16>
    %188 = vector.shape_cast %187 : vector<2x1x384xbf16> to vector<2x384xbf16>
    %c0_113 = arith.constant 0 : index
    %c0_114 = arith.constant 0 : index
    %189 = vector.load %arg3[%c0_113, %c0_114] : memref<384x64xbf16, #tpu.memory_space<vmem>>, vector<384x64xbf16>
    %cst_115 = arith.constant dense<0.000000e+00> : vector<2x64xf32>
    %190 = tpu.matmul %188, %189, %cst_115 {dimension_numbers = #tpu.dot_dimension_numbers<[1], [0], [0], [1], [0, 0, 1, 1], [], []>} : vector<2x384xbf16>, vector<384x64xbf16>, vector<2x64xf32> -> vector<2x64xf32>
    %c0_116 = arith.constant 0 : index
    %c0_117 = arith.constant 0 : index
    %191 = vector.load %arg4[%c0_116, %c0_117] : memref<1x64xf32, #tpu.memory_space<vmem>>, vector<1x64xf32>
    %192 = vector.broadcast %191 : vector<1x64xf32> to vector<2x64xf32>
    %193 = arith.addf %190, %192 : vector<2x64xf32>
    %cst_118 = arith.constant 0.000000e+00 : f32
    %194 = vector.broadcast %cst_118 : f32 to vector<2x64xf32>
    %195 = arith.cmpf ogt, %193, %194 : vector<2x64xf32>
    %cst_119 = arith.constant 0.000000e+00 : f32
    %196 = vector.broadcast %cst_119 : f32 to vector<2x64xf32>
    %197 = arith.minimumf %193, %196 : vector<2x64xf32>
    %cst_120 = arith.constant 1.000000e-01 : f32
    %198 = vector.broadcast %cst_120 : f32 to vector<2x64xf32>
    %199 = arith.divf %197, %198 : vector<2x64xf32>
    %200 = math.exp %199 : vector<2x64xf32>
    %cst_121 = arith.constant 1.000000e+00 : f32
    %201 = vector.broadcast %cst_121 : f32 to vector<2x64xf32>
    %202 = arith.subf %200, %201 : vector<2x64xf32>
    %cst_122 = arith.constant 1.000000e-01 : f32
    %203 = vector.broadcast %cst_122 : f32 to vector<2x64xf32>
    %204 = arith.mulf %203, %202 : vector<2x64xf32>
    %205 = arith.select %195, %193, %204 : vector<2x64xi1>, vector<2x64xf32>
    %206 = arith.truncf %205 : vector<2x64xf32> to vector<2x64xbf16>
    %c0_123 = arith.constant 0 : index
    %c0_124 = arith.constant 0 : index
    %207 = vector.load %arg5[%c0_123, %c0_124] : memref<64x32xbf16, #tpu.memory_space<vmem>>, vector<64x32xbf16>
    %cst_125 = arith.constant dense<0.000000e+00> : vector<2x32xf32>
    %208 = tpu.matmul %206, %207, %cst_125 {dimension_numbers = #tpu.dot_dimension_numbers<[1], [0], [0], [1], [0, 0, 1, 1], [], []>} : vector<2x64xbf16>, vector<64x32xbf16>, vector<2x32xf32> -> vector<2x32xf32>
    %c0_126 = arith.constant 0 : index
    %c0_127 = arith.constant 0 : index
    %209 = vector.load %arg6[%c0_126, %c0_127] : memref<1x32xf32, #tpu.memory_space<vmem>>, vector<1x32xf32>
    %210 = vector.broadcast %209 : vector<1x32xf32> to vector<2x32xf32>
    %211 = arith.addf %208, %210 : vector<2x32xf32>
    %cst_128 = arith.constant 0.000000e+00 : f32
    %212 = vector.broadcast %cst_128 : f32 to vector<2x32xf32>
    %213 = arith.cmpf ogt, %211, %212 : vector<2x32xf32>
    %cst_129 = arith.constant 0.000000e+00 : f32
    %214 = vector.broadcast %cst_129 : f32 to vector<2x32xf32>
    %215 = arith.minimumf %211, %214 : vector<2x32xf32>
    %cst_130 = arith.constant 1.000000e-01 : f32
    %216 = vector.broadcast %cst_130 : f32 to vector<2x32xf32>
    %217 = arith.divf %215, %216 : vector<2x32xf32>
    %218 = math.exp %217 : vector<2x32xf32>
    %cst_131 = arith.constant 1.000000e+00 : f32
    %219 = vector.broadcast %cst_131 : f32 to vector<2x32xf32>
    %220 = arith.subf %218, %219 : vector<2x32xf32>
    %cst_132 = arith.constant 1.000000e-01 : f32
    %221 = vector.broadcast %cst_132 : f32 to vector<2x32xf32>
    %222 = arith.mulf %221, %220 : vector<2x32xf32>
    %223 = arith.select %213, %211, %222 : vector<2x32xi1>, vector<2x32xf32>
    %224 = arith.truncf %223 : vector<2x32xf32> to vector<2x32xbf16>
    %c0_133 = arith.constant 0 : index
    %c0_134 = arith.constant 0 : index
    %225 = vector.load %arg7[%c0_133, %c0_134] : memref<32x16xbf16, #tpu.memory_space<vmem>>, vector<32x16xbf16>
    %cst_135 = arith.constant dense<0.000000e+00> : vector<2x16xf32>
    %226 = tpu.matmul %224, %225, %cst_135 {dimension_numbers = #tpu.dot_dimension_numbers<[1], [0], [0], [1], [0, 0, 1, 1], [], []>} : vector<2x32xbf16>, vector<32x16xbf16>, vector<2x16xf32> -> vector<2x16xf32>
    %c0_136 = arith.constant 0 : index
    %c0_137 = arith.constant 0 : index
    %227 = vector.load %arg8[%c0_136, %c0_137] : memref<1x16xf32, #tpu.memory_space<vmem>>, vector<1x16xf32>
    %228 = vector.broadcast %227 : vector<1x16xf32> to vector<2x16xf32>
    %229 = arith.addf %226, %228 : vector<2x16xf32>
    %cst_138 = arith.constant 0.000000e+00 : f32
    %230 = vector.broadcast %cst_138 : f32 to vector<2x16xf32>
    %231 = arith.cmpf ogt, %229, %230 : vector<2x16xf32>
    %cst_139 = arith.constant 0.000000e+00 : f32
    %232 = vector.broadcast %cst_139 : f32 to vector<2x16xf32>
    %233 = arith.minimumf %229, %232 : vector<2x16xf32>
    %cst_140 = arith.constant 1.000000e-01 : f32
    %234 = vector.broadcast %cst_140 : f32 to vector<2x16xf32>
    %235 = arith.divf %233, %234 : vector<2x16xf32>
    %236 = math.exp %235 : vector<2x16xf32>
    %cst_141 = arith.constant 1.000000e+00 : f32
    %237 = vector.broadcast %cst_141 : f32 to vector<2x16xf32>
    %238 = arith.subf %236, %237 : vector<2x16xf32>
    %cst_142 = arith.constant 1.000000e-01 : f32
    %239 = vector.broadcast %cst_142 : f32 to vector<2x16xf32>
    %240 = arith.mulf %239, %238 : vector<2x16xf32>
    %241 = arith.select %231, %229, %240 : vector<2x16xi1>, vector<2x16xf32>
    %242 = arith.truncf %241 : vector<2x16xf32> to vector<2x16xbf16>
    %c0_143 = arith.constant 0 : index
    %c0_144 = arith.constant 0 : index
    %243 = vector.load %arg9[%c0_143, %c0_144] : memref<16x1xbf16, #tpu.memory_space<vmem>>, vector<16x1xbf16>
    %cst_145 = arith.constant dense<0.000000e+00> : vector<2x1xf32>
    %244 = tpu.matmul %242, %243, %cst_145 {dimension_numbers = #tpu.dot_dimension_numbers<[1], [0], [0], [1], [0, 0, 1, 1], [], []>} : vector<2x16xbf16>, vector<16x1xbf16>, vector<2x1xf32> -> vector<2x1xf32>
    %c0_146 = arith.constant 0 : index
    %c0_147 = arith.constant 0 : index
    %245 = vector.load %arg10[%c0_146, %c0_147] : memref<1x1xf32, #tpu.memory_space<vmem>>, vector<1x1xf32>
    %246 = vector.broadcast %245 : vector<1x1xf32> to vector<2x1xf32>
    %247 = arith.addf %244, %246 : vector<2x1xf32>
    %248 = arith.addf %186, %247 : vector<2x1xf32>
    %c0_148 = arith.constant 0 : index
    %c0_149 = arith.constant 0 : index
    %c0_150 = arith.constant 0 : index
    %249 = vector.load %arg2[%c0_148, %c0_149, %c0_150] : memref<2x8x1408xbf16, #tpu.memory_space<vmem>>, vector<2x1x1408xbf16>
    %250 = vector.shape_cast %249 : vector<2x1x1408xbf16> to vector<2x1408xbf16>
    %c0_151 = arith.constant 0 : index
    %c0_152 = arith.constant 0 : index
    %251 = vector.load %arg11[%c0_151, %c0_152] : memref<1408x64xbf16, #tpu.memory_space<vmem>>, vector<1408x64xbf16>
    %cst_153 = arith.constant dense<0.000000e+00> : vector<2x64xf32>
    %252 = tpu.matmul %250, %251, %cst_153 {dimension_numbers = #tpu.dot_dimension_numbers<[1], [0], [0], [1], [0, 0, 1, 1], [], []>} : vector<2x1408xbf16>, vector<1408x64xbf16>, vector<2x64xf32> -> vector<2x64xf32>
    %c0_154 = arith.constant 0 : index
    %c0_155 = arith.constant 0 : index
    %253 = vector.load %arg12[%c0_154, %c0_155] : memref<1x64xf32, #tpu.memory_space<vmem>>, vector<1x64xf32>
    %254 = vector.broadcast %253 : vector<1x64xf32> to vector<2x64xf32>
    %255 = arith.addf %252, %254 : vector<2x64xf32>
    %cst_156 = arith.constant 0.000000e+00 : f32
    %256 = vector.broadcast %cst_156 : f32 to vector<2x64xf32>
    %257 = arith.cmpf ogt, %255, %256 : vector<2x64xf32>
    %cst_157 = arith.constant 0.000000e+00 : f32
    %258 = vector.broadcast %cst_157 : f32 to vector<2x64xf32>
    %259 = arith.minimumf %255, %258 : vector<2x64xf32>
    %cst_158 = arith.constant 1.000000e-01 : f32
    %260 = vector.broadcast %cst_158 : f32 to vector<2x64xf32>
    %261 = arith.divf %259, %260 : vector<2x64xf32>
    %262 = math.exp %261 : vector<2x64xf32>
    %cst_159 = arith.constant 1.000000e+00 : f32
    %263 = vector.broadcast %cst_159 : f32 to vector<2x64xf32>
    %264 = arith.subf %262, %263 : vector<2x64xf32>
    %cst_160 = arith.constant 1.000000e-01 : f32
    %265 = vector.broadcast %cst_160 : f32 to vector<2x64xf32>
    %266 = arith.mulf %265, %264 : vector<2x64xf32>
    %267 = arith.select %257, %255, %266 : vector<2x64xi1>, vector<2x64xf32>
    %268 = arith.truncf %267 : vector<2x64xf32> to vector<2x64xbf16>
    %c0_161 = arith.constant 0 : index
    %c0_162 = arith.constant 0 : index
    %269 = vector.load %arg13[%c0_161, %c0_162] : memref<64x32xbf16, #tpu.memory_space<vmem>>, vector<64x32xbf16>
    %cst_163 = arith.constant dense<0.000000e+00> : vector<2x32xf32>
    %270 = tpu.matmul %268, %269, %cst_163 {dimension_numbers = #tpu.dot_dimension_numbers<[1], [0], [0], [1], [0, 0, 1, 1], [], []>} : vector<2x64xbf16>, vector<64x32xbf16>, vector<2x32xf32> -> vector<2x32xf32>
    %c0_164 = arith.constant 0 : index
    %c0_165 = arith.constant 0 : index
    %271 = vector.load %arg14[%c0_164, %c0_165] : memref<1x32xf32, #tpu.memory_space<vmem>>, vector<1x32xf32>
    %272 = vector.broadcast %271 : vector<1x32xf32> to vector<2x32xf32>
    %273 = arith.addf %270, %272 : vector<2x32xf32>
    %cst_166 = arith.constant 0.000000e+00 : f32
    %274 = vector.broadcast %cst_166 : f32 to vector<2x32xf32>
    %275 = arith.cmpf ogt, %273, %274 : vector<2x32xf32>
    %cst_167 = arith.constant 0.000000e+00 : f32
    %276 = vector.broadcast %cst_167 : f32 to vector<2x32xf32>
    %277 = arith.minimumf %273, %276 : vector<2x32xf32>
    %cst_168 = arith.constant 1.000000e-01 : f32
    %278 = vector.broadcast %cst_168 : f32 to vector<2x32xf32>
    %279 = arith.divf %277, %278 : vector<2x32xf32>
    %280 = math.exp %279 : vector<2x32xf32>
    %cst_169 = arith.constant 1.000000e+00 : f32
    %281 = vector.broadcast %cst_169 : f32 to vector<2x32xf32>
    %282 = arith.subf %280, %281 : vector<2x32xf32>
    %cst_170 = arith.constant 1.000000e-01 : f32
    %283 = vector.broadcast %cst_170 : f32 to vector<2x32xf32>
    %284 = arith.mulf %283, %282 : vector<2x32xf32>
    %285 = arith.select %275, %273, %284 : vector<2x32xi1>, vector<2x32xf32>
    %286 = arith.truncf %285 : vector<2x32xf32> to vector<2x32xbf16>
    %c0_171 = arith.constant 0 : index
    %c0_172 = arith.constant 0 : index
    %287 = vector.load %arg15[%c0_171, %c0_172] : memref<32x16xbf16, #tpu.memory_space<vmem>>, vector<32x16xbf16>
    %cst_173 = arith.constant dense<0.000000e+00> : vector<2x16xf32>
    %288 = tpu.matmul %286, %287, %cst_173 {dimension_numbers = #tpu.dot_dimension_numbers<[1], [0], [0], [1], [0, 0, 1, 1], [], []>} : vector<2x32xbf16>, vector<32x16xbf16>, vector<2x16xf32> -> vector<2x16xf32>
    %c0_174 = arith.constant 0 : index
    %c0_175 = arith.constant 0 : index
    %289 = vector.load %arg16[%c0_174, %c0_175] : memref<1x16xf32, #tpu.memory_space<vmem>>, vector<1x16xf32>
    %290 = vector.broadcast %289 : vector<1x16xf32> to vector<2x16xf32>
    %291 = arith.addf %288, %290 : vector<2x16xf32>
    %cst_176 = arith.constant 0.000000e+00 : f32
    %292 = vector.broadcast %cst_176 : f32 to vector<2x16xf32>
    %293 = arith.cmpf ogt, %291, %292 : vector<2x16xf32>
    %cst_177 = arith.constant 0.000000e+00 : f32
    %294 = vector.broadcast %cst_177 : f32 to vector<2x16xf32>
    %295 = arith.minimumf %291, %294 : vector<2x16xf32>
    %cst_178 = arith.constant 1.000000e-01 : f32
    %296 = vector.broadcast %cst_178 : f32 to vector<2x16xf32>
    %297 = arith.divf %295, %296 : vector<2x16xf32>
    %298 = math.exp %297 : vector<2x16xf32>
    %cst_179 = arith.constant 1.000000e+00 : f32
    %299 = vector.broadcast %cst_179 : f32 to vector<2x16xf32>
    %300 = arith.subf %298, %299 : vector<2x16xf32>
    %cst_180 = arith.constant 1.000000e-01 : f32
    %301 = vector.broadcast %cst_180 : f32 to vector<2x16xf32>
    %302 = arith.mulf %301, %300 : vector<2x16xf32>
    %303 = arith.select %293, %291, %302 : vector<2x16xi1>, vector<2x16xf32>
    %304 = arith.truncf %303 : vector<2x16xf32> to vector<2x16xbf16>
    %c0_181 = arith.constant 0 : index
    %c0_182 = arith.constant 0 : index
    %305 = vector.load %arg17[%c0_181, %c0_182] : memref<16x1xbf16, #tpu.memory_space<vmem>>, vector<16x1xbf16>
    %cst_183 = arith.constant dense<0.000000e+00> : vector<2x1xf32>
    %306 = tpu.matmul %304, %305, %cst_183 {dimension_numbers = #tpu.dot_dimension_numbers<[1], [0], [0], [1], [0, 0, 1, 1], [], []>} : vector<2x16xbf16>, vector<16x1xbf16>, vector<2x1xf32> -> vector<2x1xf32>
    %c0_184 = arith.constant 0 : index
    %c0_185 = arith.constant 0 : index
    %307 = vector.load %arg18[%c0_184, %c0_185] : memref<1x1xf32, #tpu.memory_space<vmem>>, vector<1x1xf32>
    %308 = vector.broadcast %307 : vector<1x1xf32> to vector<2x1xf32>
    %309 = arith.addf %306, %308 : vector<2x1xf32>
    %310 = arith.addf %248, %309 : vector<2x1xf32>
    %c0_186 = arith.constant 0 : index
    %c1_187 = arith.constant 1 : index
    %c0_188 = arith.constant 0 : index
    %311 = vector.load %arg2[%c0_186, %c1_187, %c0_188] : memref<2x8x1408xbf16, #tpu.memory_space<vmem>>, vector<2x1x1408xbf16>
    %312 = vector.shape_cast %311 : vector<2x1x1408xbf16> to vector<2x1408xbf16>
    %c0_189 = arith.constant 0 : index
    %c0_190 = arith.constant 0 : index
    %313 = vector.load %arg11[%c0_189, %c0_190] : memref<1408x64xbf16, #tpu.memory_space<vmem>>, vector<1408x64xbf16>
    %cst_191 = arith.constant dense<0.000000e+00> : vector<2x64xf32>
    %314 = tpu.matmul %312, %313, %cst_191 {dimension_numbers = #tpu.dot_dimension_numbers<[1], [0], [0], [1], [0, 0, 1, 1], [], []>} : vector<2x1408xbf16>, vector<1408x64xbf16>, vector<2x64xf32> -> vector<2x64xf32>
    %c0_192 = arith.constant 0 : index
    %c0_193 = arith.constant 0 : index
    %315 = vector.load %arg12[%c0_192, %c0_193] : memref<1x64xf32, #tpu.memory_space<vmem>>, vector<1x64xf32>
    %316 = vector.broadcast %315 : vector<1x64xf32> to vector<2x64xf32>
    %317 = arith.addf %314, %316 : vector<2x64xf32>
    %cst_194 = arith.constant 0.000000e+00 : f32
    %318 = vector.broadcast %cst_194 : f32 to vector<2x64xf32>
    %319 = arith.cmpf ogt, %317, %318 : vector<2x64xf32>
    %cst_195 = arith.constant 0.000000e+00 : f32
    %320 = vector.broadcast %cst_195 : f32 to vector<2x64xf32>
    %321 = arith.minimumf %317, %320 : vector<2x64xf32>
    %cst_196 = arith.constant 1.000000e-01 : f32
    %322 = vector.broadcast %cst_196 : f32 to vector<2x64xf32>
    %323 = arith.divf %321, %322 : vector<2x64xf32>
    %324 = math.exp %323 : vector<2x64xf32>
    %cst_197 = arith.constant 1.000000e+00 : f32
    %325 = vector.broadcast %cst_197 : f32 to vector<2x64xf32>
    %326 = arith.subf %324, %325 : vector<2x64xf32>
    %cst_198 = arith.constant 1.000000e-01 : f32
    %327 = vector.broadcast %cst_198 : f32 to vector<2x64xf32>
    %328 = arith.mulf %327, %326 : vector<2x64xf32>
    %329 = arith.select %319, %317, %328 : vector<2x64xi1>, vector<2x64xf32>
    %330 = arith.truncf %329 : vector<2x64xf32> to vector<2x64xbf16>
    %c0_199 = arith.constant 0 : index
    %c0_200 = arith.constant 0 : index
    %331 = vector.load %arg13[%c0_199, %c0_200] : memref<64x32xbf16, #tpu.memory_space<vmem>>, vector<64x32xbf16>
    %cst_201 = arith.constant dense<0.000000e+00> : vector<2x32xf32>
    %332 = tpu.matmul %330, %331, %cst_201 {dimension_numbers = #tpu.dot_dimension_numbers<[1], [0], [0], [1], [0, 0, 1, 1], [], []>} : vector<2x64xbf16>, vector<64x32xbf16>, vector<2x32xf32> -> vector<2x32xf32>
    %c0_202 = arith.constant 0 : index
    %c0_203 = arith.constant 0 : index
    %333 = vector.load %arg14[%c0_202, %c0_203] : memref<1x32xf32, #tpu.memory_space<vmem>>, vector<1x32xf32>
    %334 = vector.broadcast %333 : vector<1x32xf32> to vector<2x32xf32>
    %335 = arith.addf %332, %334 : vector<2x32xf32>
    %cst_204 = arith.constant 0.000000e+00 : f32
    %336 = vector.broadcast %cst_204 : f32 to vector<2x32xf32>
    %337 = arith.cmpf ogt, %335, %336 : vector<2x32xf32>
    %cst_205 = arith.constant 0.000000e+00 : f32
    %338 = vector.broadcast %cst_205 : f32 to vector<2x32xf32>
    %339 = arith.minimumf %335, %338 : vector<2x32xf32>
    %cst_206 = arith.constant 1.000000e-01 : f32
    %340 = vector.broadcast %cst_206 : f32 to vector<2x32xf32>
    %341 = arith.divf %339, %340 : vector<2x32xf32>
    %342 = math.exp %341 : vector<2x32xf32>
    %cst_207 = arith.constant 1.000000e+00 : f32
    %343 = vector.broadcast %cst_207 : f32 to vector<2x32xf32>
    %344 = arith.subf %342, %343 : vector<2x32xf32>
    %cst_208 = arith.constant 1.000000e-01 : f32
    %345 = vector.broadcast %cst_208 : f32 to vector<2x32xf32>
    %346 = arith.mulf %345, %344 : vector<2x32xf32>
    %347 = arith.select %337, %335, %346 : vector<2x32xi1>, vector<2x32xf32>
    %348 = arith.truncf %347 : vector<2x32xf32> to vector<2x32xbf16>
    %c0_209 = arith.constant 0 : index
    %c0_210 = arith.constant 0 : index
    %349 = vector.load %arg15[%c0_209, %c0_210] : memref<32x16xbf16, #tpu.memory_space<vmem>>, vector<32x16xbf16>
    %cst_211 = arith.constant dense<0.000000e+00> : vector<2x16xf32>
    %350 = tpu.matmul %348, %349, %cst_211 {dimension_numbers = #tpu.dot_dimension_numbers<[1], [0], [0], [1], [0, 0, 1, 1], [], []>} : vector<2x32xbf16>, vector<32x16xbf16>, vector<2x16xf32> -> vector<2x16xf32>
    %c0_212 = arith.constant 0 : index
    %c0_213 = arith.constant 0 : index
    %351 = vector.load %arg16[%c0_212, %c0_213] : memref<1x16xf32, #tpu.memory_space<vmem>>, vector<1x16xf32>
    %352 = vector.broadcast %351 : vector<1x16xf32> to vector<2x16xf32>
    %353 = arith.addf %350, %352 : vector<2x16xf32>
    %cst_214 = arith.constant 0.000000e+00 : f32
    %354 = vector.broadcast %cst_214 : f32 to vector<2x16xf32>
    %355 = arith.cmpf ogt, %353, %354 : vector<2x16xf32>
    %cst_215 = arith.constant 0.000000e+00 : f32
    %356 = vector.broadcast %cst_215 : f32 to vector<2x16xf32>
    %357 = arith.minimumf %353, %356 : vector<2x16xf32>
    %cst_216 = arith.constant 1.000000e-01 : f32
    %358 = vector.broadcast %cst_216 : f32 to vector<2x16xf32>
    %359 = arith.divf %357, %358 : vector<2x16xf32>
    %360 = math.exp %359 : vector<2x16xf32>
    %cst_217 = arith.constant 1.000000e+00 : f32
    %361 = vector.broadcast %cst_217 : f32 to vector<2x16xf32>
    %362 = arith.subf %360, %361 : vector<2x16xf32>
    %cst_218 = arith.constant 1.000000e-01 : f32
    %363 = vector.broadcast %cst_218 : f32 to vector<2x16xf32>
    %364 = arith.mulf %363, %362 : vector<2x16xf32>
    %365 = arith.select %355, %353, %364 : vector<2x16xi1>, vector<2x16xf32>
    %366 = arith.truncf %365 : vector<2x16xf32> to vector<2x16xbf16>
    %c0_219 = arith.constant 0 : index
    %c0_220 = arith.constant 0 : index
    %367 = vector.load %arg17[%c0_219, %c0_220] : memref<16x1xbf16, #tpu.memory_space<vmem>>, vector<16x1xbf16>
    %cst_221 = arith.constant dense<0.000000e+00> : vector<2x1xf32>
    %368 = tpu.matmul %366, %367, %cst_221 {dimension_numbers = #tpu.dot_dimension_numbers<[1], [0], [0], [1], [0, 0, 1, 1], [], []>} : vector<2x16xbf16>, vector<16x1xbf16>, vector<2x1xf32> -> vector<2x1xf32>
    %c0_222 = arith.constant 0 : index
    %c0_223 = arith.constant 0 : index
    %369 = vector.load %arg18[%c0_222, %c0_223] : memref<1x1xf32, #tpu.memory_space<vmem>>, vector<1x1xf32>
    %370 = vector.broadcast %369 : vector<1x1xf32> to vector<2x1xf32>
    %371 = arith.addf %368, %370 : vector<2x1xf32>
    %372 = arith.addf %310, %371 : vector<2x1xf32>
    %c0_224 = arith.constant 0 : index
    %c2_225 = arith.constant 2 : index
    %c0_226 = arith.constant 0 : index
    %373 = vector.load %arg2[%c0_224, %c2_225, %c0_226] : memref<2x8x1408xbf16, #tpu.memory_space<vmem>>, vector<2x1x1408xbf16>
    %374 = vector.shape_cast %373 : vector<2x1x1408xbf16> to vector<2x1408xbf16>
    %c0_227 = arith.constant 0 : index
    %c0_228 = arith.constant 0 : index
    %375 = vector.load %arg11[%c0_227, %c0_228] : memref<1408x64xbf16, #tpu.memory_space<vmem>>, vector<1408x64xbf16>
    %cst_229 = arith.constant dense<0.000000e+00> : vector<2x64xf32>
    %376 = tpu.matmul %374, %375, %cst_229 {dimension_numbers = #tpu.dot_dimension_numbers<[1], [0], [0], [1], [0, 0, 1, 1], [], []>} : vector<2x1408xbf16>, vector<1408x64xbf16>, vector<2x64xf32> -> vector<2x64xf32>
    %c0_230 = arith.constant 0 : index
    %c0_231 = arith.constant 0 : index
    %377 = vector.load %arg12[%c0_230, %c0_231] : memref<1x64xf32, #tpu.memory_space<vmem>>, vector<1x64xf32>
    %378 = vector.broadcast %377 : vector<1x64xf32> to vector<2x64xf32>
    %379 = arith.addf %376, %378 : vector<2x64xf32>
    %cst_232 = arith.constant 0.000000e+00 : f32
    %380 = vector.broadcast %cst_232 : f32 to vector<2x64xf32>
    %381 = arith.cmpf ogt, %379, %380 : vector<2x64xf32>
    %cst_233 = arith.constant 0.000000e+00 : f32
    %382 = vector.broadcast %cst_233 : f32 to vector<2x64xf32>
    %383 = arith.minimumf %379, %382 : vector<2x64xf32>
    %cst_234 = arith.constant 1.000000e-01 : f32
    %384 = vector.broadcast %cst_234 : f32 to vector<2x64xf32>
    %385 = arith.divf %383, %384 : vector<2x64xf32>
    %386 = math.exp %385 : vector<2x64xf32>
    %cst_235 = arith.constant 1.000000e+00 : f32
    %387 = vector.broadcast %cst_235 : f32 to vector<2x64xf32>
    %388 = arith.subf %386, %387 : vector<2x64xf32>
    %cst_236 = arith.constant 1.000000e-01 : f32
    %389 = vector.broadcast %cst_236 : f32 to vector<2x64xf32>
    %390 = arith.mulf %389, %388 : vector<2x64xf32>
    %391 = arith.select %381, %379, %390 : vector<2x64xi1>, vector<2x64xf32>
    %392 = arith.truncf %391 : vector<2x64xf32> to vector<2x64xbf16>
    %c0_237 = arith.constant 0 : index
    %c0_238 = arith.constant 0 : index
    %393 = vector.load %arg13[%c0_237, %c0_238] : memref<64x32xbf16, #tpu.memory_space<vmem>>, vector<64x32xbf16>
    %cst_239 = arith.constant dense<0.000000e+00> : vector<2x32xf32>
    %394 = tpu.matmul %392, %393, %cst_239 {dimension_numbers = #tpu.dot_dimension_numbers<[1], [0], [0], [1], [0, 0, 1, 1], [], []>} : vector<2x64xbf16>, vector<64x32xbf16>, vector<2x32xf32> -> vector<2x32xf32>
    %c0_240 = arith.constant 0 : index
    %c0_241 = arith.constant 0 : index
    %395 = vector.load %arg14[%c0_240, %c0_241] : memref<1x32xf32, #tpu.memory_space<vmem>>, vector<1x32xf32>
    %396 = vector.broadcast %395 : vector<1x32xf32> to vector<2x32xf32>
    %397 = arith.addf %394, %396 : vector<2x32xf32>
    %cst_242 = arith.constant 0.000000e+00 : f32
    %398 = vector.broadcast %cst_242 : f32 to vector<2x32xf32>
    %399 = arith.cmpf ogt, %397, %398 : vector<2x32xf32>
    %cst_243 = arith.constant 0.000000e+00 : f32
    %400 = vector.broadcast %cst_243 : f32 to vector<2x32xf32>
    %401 = arith.minimumf %397, %400 : vector<2x32xf32>
    %cst_244 = arith.constant 1.000000e-01 : f32
    %402 = vector.broadcast %cst_244 : f32 to vector<2x32xf32>
    %403 = arith.divf %401, %402 : vector<2x32xf32>
    %404 = math.exp %403 : vector<2x32xf32>
    %cst_245 = arith.constant 1.000000e+00 : f32
    %405 = vector.broadcast %cst_245 : f32 to vector<2x32xf32>
    %406 = arith.subf %404, %405 : vector<2x32xf32>
    %cst_246 = arith.constant 1.000000e-01 : f32
    %407 = vector.broadcast %cst_246 : f32 to vector<2x32xf32>
    %408 = arith.mulf %407, %406 : vector<2x32xf32>
    %409 = arith.select %399, %397, %408 : vector<2x32xi1>, vector<2x32xf32>
    %410 = arith.truncf %409 : vector<2x32xf32> to vector<2x32xbf16>
    %c0_247 = arith.constant 0 : index
    %c0_248 = arith.constant 0 : index
    %411 = vector.load %arg15[%c0_247, %c0_248] : memref<32x16xbf16, #tpu.memory_space<vmem>>, vector<32x16xbf16>
    %cst_249 = arith.constant dense<0.000000e+00> : vector<2x16xf32>
    %412 = tpu.matmul %410, %411, %cst_249 {dimension_numbers = #tpu.dot_dimension_numbers<[1], [0], [0], [1], [0, 0, 1, 1], [], []>} : vector<2x32xbf16>, vector<32x16xbf16>, vector<2x16xf32> -> vector<2x16xf32>
    %c0_250 = arith.constant 0 : index
    %c0_251 = arith.constant 0 : index
    %413 = vector.load %arg16[%c0_250, %c0_251] : memref<1x16xf32, #tpu.memory_space<vmem>>, vector<1x16xf32>
    %414 = vector.broadcast %413 : vector<1x16xf32> to vector<2x16xf32>
    %415 = arith.addf %412, %414 : vector<2x16xf32>
    %cst_252 = arith.constant 0.000000e+00 : f32
    %416 = vector.broadcast %cst_252 : f32 to vector<2x16xf32>
    %417 = arith.cmpf ogt, %415, %416 : vector<2x16xf32>
    %cst_253 = arith.constant 0.000000e+00 : f32
    %418 = vector.broadcast %cst_253 : f32 to vector<2x16xf32>
    %419 = arith.minimumf %415, %418 : vector<2x16xf32>
    %cst_254 = arith.constant 1.000000e-01 : f32
    %420 = vector.broadcast %cst_254 : f32 to vector<2x16xf32>
    %421 = arith.divf %419, %420 : vector<2x16xf32>
    %422 = math.exp %421 : vector<2x16xf32>
    %cst_255 = arith.constant 1.000000e+00 : f32
    %423 = vector.broadcast %cst_255 : f32 to vector<2x16xf32>
    %424 = arith.subf %422, %423 : vector<2x16xf32>
    %cst_256 = arith.constant 1.000000e-01 : f32
    %425 = vector.broadcast %cst_256 : f32 to vector<2x16xf32>
    %426 = arith.mulf %425, %424 : vector<2x16xf32>
    %427 = arith.select %417, %415, %426 : vector<2x16xi1>, vector<2x16xf32>
    %428 = arith.truncf %427 : vector<2x16xf32> to vector<2x16xbf16>
    %c0_257 = arith.constant 0 : index
    %c0_258 = arith.constant 0 : index
    %429 = vector.load %arg17[%c0_257, %c0_258] : memref<16x1xbf16, #tpu.memory_space<vmem>>, vector<16x1xbf16>
    %cst_259 = arith.constant dense<0.000000e+00> : vector<2x1xf32>
    %430 = tpu.matmul %428, %429, %cst_259 {dimension_numbers = #tpu.dot_dimension_numbers<[1], [0], [0], [1], [0, 0, 1, 1], [], []>} : vector<2x16xbf16>, vector<16x1xbf16>, vector<2x1xf32> -> vector<2x1xf32>
    %c0_260 = arith.constant 0 : index
    %c0_261 = arith.constant 0 : index
    %431 = vector.load %arg18[%c0_260, %c0_261] : memref<1x1xf32, #tpu.memory_space<vmem>>, vector<1x1xf32>
    %432 = vector.broadcast %431 : vector<1x1xf32> to vector<2x1xf32>
    %433 = arith.addf %430, %432 : vector<2x1xf32>
    %434 = arith.addf %372, %433 : vector<2x1xf32>
    %c0_262 = arith.constant 0 : index
    %c3_263 = arith.constant 3 : index
    %c0_264 = arith.constant 0 : index
    %435 = vector.load %arg2[%c0_262, %c3_263, %c0_264] : memref<2x8x1408xbf16, #tpu.memory_space<vmem>>, vector<2x1x1408xbf16>
    %436 = vector.shape_cast %435 : vector<2x1x1408xbf16> to vector<2x1408xbf16>
    %c0_265 = arith.constant 0 : index
    %c0_266 = arith.constant 0 : index
    %437 = vector.load %arg11[%c0_265, %c0_266] : memref<1408x64xbf16, #tpu.memory_space<vmem>>, vector<1408x64xbf16>
    %cst_267 = arith.constant dense<0.000000e+00> : vector<2x64xf32>
    %438 = tpu.matmul %436, %437, %cst_267 {dimension_numbers = #tpu.dot_dimension_numbers<[1], [0], [0], [1], [0, 0, 1, 1], [], []>} : vector<2x1408xbf16>, vector<1408x64xbf16>, vector<2x64xf32> -> vector<2x64xf32>
    %c0_268 = arith.constant 0 : index
    %c0_269 = arith.constant 0 : index
    %439 = vector.load %arg12[%c0_268, %c0_269] : memref<1x64xf32, #tpu.memory_space<vmem>>, vector<1x64xf32>
    %440 = vector.broadcast %439 : vector<1x64xf32> to vector<2x64xf32>
    %441 = arith.addf %438, %440 : vector<2x64xf32>
    %cst_270 = arith.constant 0.000000e+00 : f32
    %442 = vector.broadcast %cst_270 : f32 to vector<2x64xf32>
    %443 = arith.cmpf ogt, %441, %442 : vector<2x64xf32>
    %cst_271 = arith.constant 0.000000e+00 : f32
    %444 = vector.broadcast %cst_271 : f32 to vector<2x64xf32>
    %445 = arith.minimumf %441, %444 : vector<2x64xf32>
    %cst_272 = arith.constant 1.000000e-01 : f32
    %446 = vector.broadcast %cst_272 : f32 to vector<2x64xf32>
    %447 = arith.divf %445, %446 : vector<2x64xf32>
    %448 = math.exp %447 : vector<2x64xf32>
    %cst_273 = arith.constant 1.000000e+00 : f32
    %449 = vector.broadcast %cst_273 : f32 to vector<2x64xf32>
    %450 = arith.subf %448, %449 : vector<2x64xf32>
    %cst_274 = arith.constant 1.000000e-01 : f32
    %451 = vector.broadcast %cst_274 : f32 to vector<2x64xf32>
    %452 = arith.mulf %451, %450 : vector<2x64xf32>
    %453 = arith.select %443, %441, %452 : vector<2x64xi1>, vector<2x64xf32>
    %454 = arith.truncf %453 : vector<2x64xf32> to vector<2x64xbf16>
    %c0_275 = arith.constant 0 : index
    %c0_276 = arith.constant 0 : index
    %455 = vector.load %arg13[%c0_275, %c0_276] : memref<64x32xbf16, #tpu.memory_space<vmem>>, vector<64x32xbf16>
    %cst_277 = arith.constant dense<0.000000e+00> : vector<2x32xf32>
    %456 = tpu.matmul %454, %455, %cst_277 {dimension_numbers = #tpu.dot_dimension_numbers<[1], [0], [0], [1], [0, 0, 1, 1], [], []>} : vector<2x64xbf16>, vector<64x32xbf16>, vector<2x32xf32> -> vector<2x32xf32>
    %c0_278 = arith.constant 0 : index
    %c0_279 = arith.constant 0 : index
    %457 = vector.load %arg14[%c0_278, %c0_279] : memref<1x32xf32, #tpu.memory_space<vmem>>, vector<1x32xf32>
    %458 = vector.broadcast %457 : vector<1x32xf32> to vector<2x32xf32>
    %459 = arith.addf %456, %458 : vector<2x32xf32>
    %cst_280 = arith.constant 0.000000e+00 : f32
    %460 = vector.broadcast %cst_280 : f32 to vector<2x32xf32>
    %461 = arith.cmpf ogt, %459, %460 : vector<2x32xf32>
    %cst_281 = arith.constant 0.000000e+00 : f32
    %462 = vector.broadcast %cst_281 : f32 to vector<2x32xf32>
    %463 = arith.minimumf %459, %462 : vector<2x32xf32>
    %cst_282 = arith.constant 1.000000e-01 : f32
    %464 = vector.broadcast %cst_282 : f32 to vector<2x32xf32>
    %465 = arith.divf %463, %464 : vector<2x32xf32>
    %466 = math.exp %465 : vector<2x32xf32>
    %cst_283 = arith.constant 1.000000e+00 : f32
    %467 = vector.broadcast %cst_283 : f32 to vector<2x32xf32>
    %468 = arith.subf %466, %467 : vector<2x32xf32>
    %cst_284 = arith.constant 1.000000e-01 : f32
    %469 = vector.broadcast %cst_284 : f32 to vector<2x32xf32>
    %470 = arith.mulf %469, %468 : vector<2x32xf32>
    %471 = arith.select %461, %459, %470 : vector<2x32xi1>, vector<2x32xf32>
    %472 = arith.truncf %471 : vector<2x32xf32> to vector<2x32xbf16>
    %c0_285 = arith.constant 0 : index
    %c0_286 = arith.constant 0 : index
    %473 = vector.load %arg15[%c0_285, %c0_286] : memref<32x16xbf16, #tpu.memory_space<vmem>>, vector<32x16xbf16>
    %cst_287 = arith.constant dense<0.000000e+00> : vector<2x16xf32>
    %474 = tpu.matmul %472, %473, %cst_287 {dimension_numbers = #tpu.dot_dimension_numbers<[1], [0], [0], [1], [0, 0, 1, 1], [], []>} : vector<2x32xbf16>, vector<32x16xbf16>, vector<2x16xf32> -> vector<2x16xf32>
    %c0_288 = arith.constant 0 : index
    %c0_289 = arith.constant 0 : index
    %475 = vector.load %arg16[%c0_288, %c0_289] : memref<1x16xf32, #tpu.memory_space<vmem>>, vector<1x16xf32>
    %476 = vector.broadcast %475 : vector<1x16xf32> to vector<2x16xf32>
    %477 = arith.addf %474, %476 : vector<2x16xf32>
    %cst_290 = arith.constant 0.000000e+00 : f32
    %478 = vector.broadcast %cst_290 : f32 to vector<2x16xf32>
    %479 = arith.cmpf ogt, %477, %478 : vector<2x16xf32>
    %cst_291 = arith.constant 0.000000e+00 : f32
    %480 = vector.broadcast %cst_291 : f32 to vector<2x16xf32>
    %481 = arith.minimumf %477, %480 : vector<2x16xf32>
    %cst_292 = arith.constant 1.000000e-01 : f32
    %482 = vector.broadcast %cst_292 : f32 to vector<2x16xf32>
    %483 = arith.divf %481, %482 : vector<2x16xf32>
    %484 = math.exp %483 : vector<2x16xf32>
    %cst_293 = arith.constant 1.000000e+00 : f32
    %485 = vector.broadcast %cst_293 : f32 to vector<2x16xf32>
    %486 = arith.subf %484, %485 : vector<2x16xf32>
    %cst_294 = arith.constant 1.000000e-01 : f32
    %487 = vector.broadcast %cst_294 : f32 to vector<2x16xf32>
    %488 = arith.mulf %487, %486 : vector<2x16xf32>
    %489 = arith.select %479, %477, %488 : vector<2x16xi1>, vector<2x16xf32>
    %490 = arith.truncf %489 : vector<2x16xf32> to vector<2x16xbf16>
    %c0_295 = arith.constant 0 : index
    %c0_296 = arith.constant 0 : index
    %491 = vector.load %arg17[%c0_295, %c0_296] : memref<16x1xbf16, #tpu.memory_space<vmem>>, vector<16x1xbf16>
    %cst_297 = arith.constant dense<0.000000e+00> : vector<2x1xf32>
    %492 = tpu.matmul %490, %491, %cst_297 {dimension_numbers = #tpu.dot_dimension_numbers<[1], [0], [0], [1], [0, 0, 1, 1], [], []>} : vector<2x16xbf16>, vector<16x1xbf16>, vector<2x1xf32> -> vector<2x1xf32>
    %c0_298 = arith.constant 0 : index
    %c0_299 = arith.constant 0 : index
    %493 = vector.load %arg18[%c0_298, %c0_299] : memref<1x1xf32, #tpu.memory_space<vmem>>, vector<1x1xf32>
    %494 = vector.broadcast %493 : vector<1x1xf32> to vector<2x1xf32>
    %495 = arith.addf %492, %494 : vector<2x1xf32>
    %496 = arith.addf %434, %495 : vector<2x1xf32>
    %c0_300 = arith.constant 0 : index
    %c4 = arith.constant 4 : index
    %c0_301 = arith.constant 0 : index
    %497 = vector.load %arg2[%c0_300, %c4, %c0_301] : memref<2x8x1408xbf16, #tpu.memory_space<vmem>>, vector<2x1x1408xbf16>
    %498 = vector.shape_cast %497 : vector<2x1x1408xbf16> to vector<2x1408xbf16>
    %c0_302 = arith.constant 0 : index
    %c0_303 = arith.constant 0 : index
    %499 = vector.load %arg11[%c0_302, %c0_303] : memref<1408x64xbf16, #tpu.memory_space<vmem>>, vector<1408x64xbf16>
    %cst_304 = arith.constant dense<0.000000e+00> : vector<2x64xf32>
    %500 = tpu.matmul %498, %499, %cst_304 {dimension_numbers = #tpu.dot_dimension_numbers<[1], [0], [0], [1], [0, 0, 1, 1], [], []>} : vector<2x1408xbf16>, vector<1408x64xbf16>, vector<2x64xf32> -> vector<2x64xf32>
    %c0_305 = arith.constant 0 : index
    %c0_306 = arith.constant 0 : index
    %501 = vector.load %arg12[%c0_305, %c0_306] : memref<1x64xf32, #tpu.memory_space<vmem>>, vector<1x64xf32>
    %502 = vector.broadcast %501 : vector<1x64xf32> to vector<2x64xf32>
    %503 = arith.addf %500, %502 : vector<2x64xf32>
    %cst_307 = arith.constant 0.000000e+00 : f32
    %504 = vector.broadcast %cst_307 : f32 to vector<2x64xf32>
    %505 = arith.cmpf ogt, %503, %504 : vector<2x64xf32>
    %cst_308 = arith.constant 0.000000e+00 : f32
    %506 = vector.broadcast %cst_308 : f32 to vector<2x64xf32>
    %507 = arith.minimumf %503, %506 : vector<2x64xf32>
    %cst_309 = arith.constant 1.000000e-01 : f32
    %508 = vector.broadcast %cst_309 : f32 to vector<2x64xf32>
    %509 = arith.divf %507, %508 : vector<2x64xf32>
    %510 = math.exp %509 : vector<2x64xf32>
    %cst_310 = arith.constant 1.000000e+00 : f32
    %511 = vector.broadcast %cst_310 : f32 to vector<2x64xf32>
    %512 = arith.subf %510, %511 : vector<2x64xf32>
    %cst_311 = arith.constant 1.000000e-01 : f32
    %513 = vector.broadcast %cst_311 : f32 to vector<2x64xf32>
    %514 = arith.mulf %513, %512 : vector<2x64xf32>
    %515 = arith.select %505, %503, %514 : vector<2x64xi1>, vector<2x64xf32>
    %516 = arith.truncf %515 : vector<2x64xf32> to vector<2x64xbf16>
    %c0_312 = arith.constant 0 : index
    %c0_313 = arith.constant 0 : index
    %517 = vector.load %arg13[%c0_312, %c0_313] : memref<64x32xbf16, #tpu.memory_space<vmem>>, vector<64x32xbf16>
    %cst_314 = arith.constant dense<0.000000e+00> : vector<2x32xf32>
    %518 = tpu.matmul %516, %517, %cst_314 {dimension_numbers = #tpu.dot_dimension_numbers<[1], [0], [0], [1], [0, 0, 1, 1], [], []>} : vector<2x64xbf16>, vector<64x32xbf16>, vector<2x32xf32> -> vector<2x32xf32>
    %c0_315 = arith.constant 0 : index
    %c0_316 = arith.constant 0 : index
    %519 = vector.load %arg14[%c0_315, %c0_316] : memref<1x32xf32, #tpu.memory_space<vmem>>, vector<1x32xf32>
    %520 = vector.broadcast %519 : vector<1x32xf32> to vector<2x32xf32>
    %521 = arith.addf %518, %520 : vector<2x32xf32>
    %cst_317 = arith.constant 0.000000e+00 : f32
    %522 = vector.broadcast %cst_317 : f32 to vector<2x32xf32>
    %523 = arith.cmpf ogt, %521, %522 : vector<2x32xf32>
    %cst_318 = arith.constant 0.000000e+00 : f32
    %524 = vector.broadcast %cst_318 : f32 to vector<2x32xf32>
    %525 = arith.minimumf %521, %524 : vector<2x32xf32>
    %cst_319 = arith.constant 1.000000e-01 : f32
    %526 = vector.broadcast %cst_319 : f32 to vector<2x32xf32>
    %527 = arith.divf %525, %526 : vector<2x32xf32>
    %528 = math.exp %527 : vector<2x32xf32>
    %cst_320 = arith.constant 1.000000e+00 : f32
    %529 = vector.broadcast %cst_320 : f32 to vector<2x32xf32>
    %530 = arith.subf %528, %529 : vector<2x32xf32>
    %cst_321 = arith.constant 1.000000e-01 : f32
    %531 = vector.broadcast %cst_321 : f32 to vector<2x32xf32>
    %532 = arith.mulf %531, %530 : vector<2x32xf32>
    %533 = arith.select %523, %521, %532 : vector<2x32xi1>, vector<2x32xf32>
    %534 = arith.truncf %533 : vector<2x32xf32> to vector<2x32xbf16>
    %c0_322 = arith.constant 0 : index
    %c0_323 = arith.constant 0 : index
    %535 = vector.load %arg15[%c0_322, %c0_323] : memref<32x16xbf16, #tpu.memory_space<vmem>>, vector<32x16xbf16>
    %cst_324 = arith.constant dense<0.000000e+00> : vector<2x16xf32>
    %536 = tpu.matmul %534, %535, %cst_324 {dimension_numbers = #tpu.dot_dimension_numbers<[1], [0], [0], [1], [0, 0, 1, 1], [], []>} : vector<2x32xbf16>, vector<32x16xbf16>, vector<2x16xf32> -> vector<2x16xf32>
    %c0_325 = arith.constant 0 : index
    %c0_326 = arith.constant 0 : index
    %537 = vector.load %arg16[%c0_325, %c0_326] : memref<1x16xf32, #tpu.memory_space<vmem>>, vector<1x16xf32>
    %538 = vector.broadcast %537 : vector<1x16xf32> to vector<2x16xf32>
    %539 = arith.addf %536, %538 : vector<2x16xf32>
    %cst_327 = arith.constant 0.000000e+00 : f32
    %540 = vector.broadcast %cst_327 : f32 to vector<2x16xf32>
    %541 = arith.cmpf ogt, %539, %540 : vector<2x16xf32>
    %cst_328 = arith.constant 0.000000e+00 : f32
    %542 = vector.broadcast %cst_328 : f32 to vector<2x16xf32>
    %543 = arith.minimumf %539, %542 : vector<2x16xf32>
    %cst_329 = arith.constant 1.000000e-01 : f32
    %544 = vector.broadcast %cst_329 : f32 to vector<2x16xf32>
    %545 = arith.divf %543, %544 : vector<2x16xf32>
    %546 = math.exp %545 : vector<2x16xf32>
    %cst_330 = arith.constant 1.000000e+00 : f32
    %547 = vector.broadcast %cst_330 : f32 to vector<2x16xf32>
    %548 = arith.subf %546, %547 : vector<2x16xf32>
    %cst_331 = arith.constant 1.000000e-01 : f32
    %549 = vector.broadcast %cst_331 : f32 to vector<2x16xf32>
    %550 = arith.mulf %549, %548 : vector<2x16xf32>
    %551 = arith.select %541, %539, %550 : vector<2x16xi1>, vector<2x16xf32>
    %552 = arith.truncf %551 : vector<2x16xf32> to vector<2x16xbf16>
    %c0_332 = arith.constant 0 : index
    %c0_333 = arith.constant 0 : index
    %553 = vector.load %arg17[%c0_332, %c0_333] : memref<16x1xbf16, #tpu.memory_space<vmem>>, vector<16x1xbf16>
    %cst_334 = arith.constant dense<0.000000e+00> : vector<2x1xf32>
    %554 = tpu.matmul %552, %553, %cst_334 {dimension_numbers = #tpu.dot_dimension_numbers<[1], [0], [0], [1], [0, 0, 1, 1], [], []>} : vector<2x16xbf16>, vector<16x1xbf16>, vector<2x1xf32> -> vector<2x1xf32>
    %c0_335 = arith.constant 0 : index
    %c0_336 = arith.constant 0 : index
    %555 = vector.load %arg18[%c0_335, %c0_336] : memref<1x1xf32, #tpu.memory_space<vmem>>, vector<1x1xf32>
    %556 = vector.broadcast %555 : vector<1x1xf32> to vector<2x1xf32>
    %557 = arith.addf %554, %556 : vector<2x1xf32>
    %558 = arith.addf %496, %557 : vector<2x1xf32>
    %c0_337 = arith.constant 0 : index
    %c5 = arith.constant 5 : index
    %c0_338 = arith.constant 0 : index
    %559 = vector.load %arg2[%c0_337, %c5, %c0_338] : memref<2x8x1408xbf16, #tpu.memory_space<vmem>>, vector<2x1x1408xbf16>
    %560 = vector.shape_cast %559 : vector<2x1x1408xbf16> to vector<2x1408xbf16>
    %c0_339 = arith.constant 0 : index
    %c0_340 = arith.constant 0 : index
    %561 = vector.load %arg11[%c0_339, %c0_340] : memref<1408x64xbf16, #tpu.memory_space<vmem>>, vector<1408x64xbf16>
    %cst_341 = arith.constant dense<0.000000e+00> : vector<2x64xf32>
    %562 = tpu.matmul %560, %561, %cst_341 {dimension_numbers = #tpu.dot_dimension_numbers<[1], [0], [0], [1], [0, 0, 1, 1], [], []>} : vector<2x1408xbf16>, vector<1408x64xbf16>, vector<2x64xf32> -> vector<2x64xf32>
    %c0_342 = arith.constant 0 : index
    %c0_343 = arith.constant 0 : index
    %563 = vector.load %arg12[%c0_342, %c0_343] : memref<1x64xf32, #tpu.memory_space<vmem>>, vector<1x64xf32>
    %564 = vector.broadcast %563 : vector<1x64xf32> to vector<2x64xf32>
    %565 = arith.addf %562, %564 : vector<2x64xf32>
    %cst_344 = arith.constant 0.000000e+00 : f32
    %566 = vector.broadcast %cst_344 : f32 to vector<2x64xf32>
    %567 = arith.cmpf ogt, %565, %566 : vector<2x64xf32>
    %cst_345 = arith.constant 0.000000e+00 : f32
    %568 = vector.broadcast %cst_345 : f32 to vector<2x64xf32>
    %569 = arith.minimumf %565, %568 : vector<2x64xf32>
    %cst_346 = arith.constant 1.000000e-01 : f32
    %570 = vector.broadcast %cst_346 : f32 to vector<2x64xf32>
    %571 = arith.divf %569, %570 : vector<2x64xf32>
    %572 = math.exp %571 : vector<2x64xf32>
    %cst_347 = arith.constant 1.000000e+00 : f32
    %573 = vector.broadcast %cst_347 : f32 to vector<2x64xf32>
    %574 = arith.subf %572, %573 : vector<2x64xf32>
    %cst_348 = arith.constant 1.000000e-01 : f32
    %575 = vector.broadcast %cst_348 : f32 to vector<2x64xf32>
    %576 = arith.mulf %575, %574 : vector<2x64xf32>
    %577 = arith.select %567, %565, %576 : vector<2x64xi1>, vector<2x64xf32>
    %578 = arith.truncf %577 : vector<2x64xf32> to vector<2x64xbf16>
    %c0_349 = arith.constant 0 : index
    %c0_350 = arith.constant 0 : index
    %579 = vector.load %arg13[%c0_349, %c0_350] : memref<64x32xbf16, #tpu.memory_space<vmem>>, vector<64x32xbf16>
    %cst_351 = arith.constant dense<0.000000e+00> : vector<2x32xf32>
    %580 = tpu.matmul %578, %579, %cst_351 {dimension_numbers = #tpu.dot_dimension_numbers<[1], [0], [0], [1], [0, 0, 1, 1], [], []>} : vector<2x64xbf16>, vector<64x32xbf16>, vector<2x32xf32> -> vector<2x32xf32>
    %c0_352 = arith.constant 0 : index
    %c0_353 = arith.constant 0 : index
    %581 = vector.load %arg14[%c0_352, %c0_353] : memref<1x32xf32, #tpu.memory_space<vmem>>, vector<1x32xf32>
    %582 = vector.broadcast %581 : vector<1x32xf32> to vector<2x32xf32>
    %583 = arith.addf %580, %582 : vector<2x32xf32>
    %cst_354 = arith.constant 0.000000e+00 : f32
    %584 = vector.broadcast %cst_354 : f32 to vector<2x32xf32>
    %585 = arith.cmpf ogt, %583, %584 : vector<2x32xf32>
    %cst_355 = arith.constant 0.000000e+00 : f32
    %586 = vector.broadcast %cst_355 : f32 to vector<2x32xf32>
    %587 = arith.minimumf %583, %586 : vector<2x32xf32>
    %cst_356 = arith.constant 1.000000e-01 : f32
    %588 = vector.broadcast %cst_356 : f32 to vector<2x32xf32>
    %589 = arith.divf %587, %588 : vector<2x32xf32>
    %590 = math.exp %589 : vector<2x32xf32>
    %cst_357 = arith.constant 1.000000e+00 : f32
    %591 = vector.broadcast %cst_357 : f32 to vector<2x32xf32>
    %592 = arith.subf %590, %591 : vector<2x32xf32>
    %cst_358 = arith.constant 1.000000e-01 : f32
    %593 = vector.broadcast %cst_358 : f32 to vector<2x32xf32>
    %594 = arith.mulf %593, %592 : vector<2x32xf32>
    %595 = arith.select %585, %583, %594 : vector<2x32xi1>, vector<2x32xf32>
    %596 = arith.truncf %595 : vector<2x32xf32> to vector<2x32xbf16>
    %c0_359 = arith.constant 0 : index
    %c0_360 = arith.constant 0 : index
    %597 = vector.load %arg15[%c0_359, %c0_360] : memref<32x16xbf16, #tpu.memory_space<vmem>>, vector<32x16xbf16>
    %cst_361 = arith.constant dense<0.000000e+00> : vector<2x16xf32>
    %598 = tpu.matmul %596, %597, %cst_361 {dimension_numbers = #tpu.dot_dimension_numbers<[1], [0], [0], [1], [0, 0, 1, 1], [], []>} : vector<2x32xbf16>, vector<32x16xbf16>, vector<2x16xf32> -> vector<2x16xf32>
    %c0_362 = arith.constant 0 : index
    %c0_363 = arith.constant 0 : index
    %599 = vector.load %arg16[%c0_362, %c0_363] : memref<1x16xf32, #tpu.memory_space<vmem>>, vector<1x16xf32>
    %600 = vector.broadcast %599 : vector<1x16xf32> to vector<2x16xf32>
    %601 = arith.addf %598, %600 : vector<2x16xf32>
    %cst_364 = arith.constant 0.000000e+00 : f32
    %602 = vector.broadcast %cst_364 : f32 to vector<2x16xf32>
    %603 = arith.cmpf ogt, %601, %602 : vector<2x16xf32>
    %cst_365 = arith.constant 0.000000e+00 : f32
    %604 = vector.broadcast %cst_365 : f32 to vector<2x16xf32>
    %605 = arith.minimumf %601, %604 : vector<2x16xf32>
    %cst_366 = arith.constant 1.000000e-01 : f32
    %606 = vector.broadcast %cst_366 : f32 to vector<2x16xf32>
    %607 = arith.divf %605, %606 : vector<2x16xf32>
    %608 = math.exp %607 : vector<2x16xf32>
    %cst_367 = arith.constant 1.000000e+00 : f32
    %609 = vector.broadcast %cst_367 : f32 to vector<2x16xf32>
    %610 = arith.subf %608, %609 : vector<2x16xf32>
    %cst_368 = arith.constant 1.000000e-01 : f32
    %611 = vector.broadcast %cst_368 : f32 to vector<2x16xf32>
    %612 = arith.mulf %611, %610 : vector<2x16xf32>
    %613 = arith.select %603, %601, %612 : vector<2x16xi1>, vector<2x16xf32>
    %614 = arith.truncf %613 : vector<2x16xf32> to vector<2x16xbf16>
    %c0_369 = arith.constant 0 : index
    %c0_370 = arith.constant 0 : index
    %615 = vector.load %arg17[%c0_369, %c0_370] : memref<16x1xbf16, #tpu.memory_space<vmem>>, vector<16x1xbf16>
    %cst_371 = arith.constant dense<0.000000e+00> : vector<2x1xf32>
    %616 = tpu.matmul %614, %615, %cst_371 {dimension_numbers = #tpu.dot_dimension_numbers<[1], [0], [0], [1], [0, 0, 1, 1], [], []>} : vector<2x16xbf16>, vector<16x1xbf16>, vector<2x1xf32> -> vector<2x1xf32>
    %c0_372 = arith.constant 0 : index
    %c0_373 = arith.constant 0 : index
    %617 = vector.load %arg18[%c0_372, %c0_373] : memref<1x1xf32, #tpu.memory_space<vmem>>, vector<1x1xf32>
    %618 = vector.broadcast %617 : vector<1x1xf32> to vector<2x1xf32>
    %619 = arith.addf %616, %618 : vector<2x1xf32>
    %620 = arith.addf %558, %619 : vector<2x1xf32>
    %c0_374 = arith.constant 0 : index
    %c6 = arith.constant 6 : index
    %c0_375 = arith.constant 0 : index
    %621 = vector.load %arg2[%c0_374, %c6, %c0_375] : memref<2x8x1408xbf16, #tpu.memory_space<vmem>>, vector<2x1x1408xbf16>
    %622 = vector.shape_cast %621 : vector<2x1x1408xbf16> to vector<2x1408xbf16>
    %c0_376 = arith.constant 0 : index
    %c0_377 = arith.constant 0 : index
    %623 = vector.load %arg11[%c0_376, %c0_377] : memref<1408x64xbf16, #tpu.memory_space<vmem>>, vector<1408x64xbf16>
    %cst_378 = arith.constant dense<0.000000e+00> : vector<2x64xf32>
    %624 = tpu.matmul %622, %623, %cst_378 {dimension_numbers = #tpu.dot_dimension_numbers<[1], [0], [0], [1], [0, 0, 1, 1], [], []>} : vector<2x1408xbf16>, vector<1408x64xbf16>, vector<2x64xf32> -> vector<2x64xf32>
    %c0_379 = arith.constant 0 : index
    %c0_380 = arith.constant 0 : index
    %625 = vector.load %arg12[%c0_379, %c0_380] : memref<1x64xf32, #tpu.memory_space<vmem>>, vector<1x64xf32>
    %626 = vector.broadcast %625 : vector<1x64xf32> to vector<2x64xf32>
    %627 = arith.addf %624, %626 : vector<2x64xf32>
    %cst_381 = arith.constant 0.000000e+00 : f32
    %628 = vector.broadcast %cst_381 : f32 to vector<2x64xf32>
    %629 = arith.cmpf ogt, %627, %628 : vector<2x64xf32>
    %cst_382 = arith.constant 0.000000e+00 : f32
    %630 = vector.broadcast %cst_382 : f32 to vector<2x64xf32>
    %631 = arith.minimumf %627, %630 : vector<2x64xf32>
    %cst_383 = arith.constant 1.000000e-01 : f32
    %632 = vector.broadcast %cst_383 : f32 to vector<2x64xf32>
    %633 = arith.divf %631, %632 : vector<2x64xf32>
    %634 = math.exp %633 : vector<2x64xf32>
    %cst_384 = arith.constant 1.000000e+00 : f32
    %635 = vector.broadcast %cst_384 : f32 to vector<2x64xf32>
    %636 = arith.subf %634, %635 : vector<2x64xf32>
    %cst_385 = arith.constant 1.000000e-01 : f32
    %637 = vector.broadcast %cst_385 : f32 to vector<2x64xf32>
    %638 = arith.mulf %637, %636 : vector<2x64xf32>
    %639 = arith.select %629, %627, %638 : vector<2x64xi1>, vector<2x64xf32>
    %640 = arith.truncf %639 : vector<2x64xf32> to vector<2x64xbf16>
    %c0_386 = arith.constant 0 : index
    %c0_387 = arith.constant 0 : index
    %641 = vector.load %arg13[%c0_386, %c0_387] : memref<64x32xbf16, #tpu.memory_space<vmem>>, vector<64x32xbf16>
    %cst_388 = arith.constant dense<0.000000e+00> : vector<2x32xf32>
    %642 = tpu.matmul %640, %641, %cst_388 {dimension_numbers = #tpu.dot_dimension_numbers<[1], [0], [0], [1], [0, 0, 1, 1], [], []>} : vector<2x64xbf16>, vector<64x32xbf16>, vector<2x32xf32> -> vector<2x32xf32>
    %c0_389 = arith.constant 0 : index
    %c0_390 = arith.constant 0 : index
    %643 = vector.load %arg14[%c0_389, %c0_390] : memref<1x32xf32, #tpu.memory_space<vmem>>, vector<1x32xf32>
    %644 = vector.broadcast %643 : vector<1x32xf32> to vector<2x32xf32>
    %645 = arith.addf %642, %644 : vector<2x32xf32>
    %cst_391 = arith.constant 0.000000e+00 : f32
    %646 = vector.broadcast %cst_391 : f32 to vector<2x32xf32>
    %647 = arith.cmpf ogt, %645, %646 : vector<2x32xf32>
    %cst_392 = arith.constant 0.000000e+00 : f32
    %648 = vector.broadcast %cst_392 : f32 to vector<2x32xf32>
    %649 = arith.minimumf %645, %648 : vector<2x32xf32>
    %cst_393 = arith.constant 1.000000e-01 : f32
    %650 = vector.broadcast %cst_393 : f32 to vector<2x32xf32>
    %651 = arith.divf %649, %650 : vector<2x32xf32>
    %652 = math.exp %651 : vector<2x32xf32>
    %cst_394 = arith.constant 1.000000e+00 : f32
    %653 = vector.broadcast %cst_394 : f32 to vector<2x32xf32>
    %654 = arith.subf %652, %653 : vector<2x32xf32>
    %cst_395 = arith.constant 1.000000e-01 : f32
    %655 = vector.broadcast %cst_395 : f32 to vector<2x32xf32>
    %656 = arith.mulf %655, %654 : vector<2x32xf32>
    %657 = arith.select %647, %645, %656 : vector<2x32xi1>, vector<2x32xf32>
    %658 = arith.truncf %657 : vector<2x32xf32> to vector<2x32xbf16>
    %c0_396 = arith.constant 0 : index
    %c0_397 = arith.constant 0 : index
    %659 = vector.load %arg15[%c0_396, %c0_397] : memref<32x16xbf16, #tpu.memory_space<vmem>>, vector<32x16xbf16>
    %cst_398 = arith.constant dense<0.000000e+00> : vector<2x16xf32>
    %660 = tpu.matmul %658, %659, %cst_398 {dimension_numbers = #tpu.dot_dimension_numbers<[1], [0], [0], [1], [0, 0, 1, 1], [], []>} : vector<2x32xbf16>, vector<32x16xbf16>, vector<2x16xf32> -> vector<2x16xf32>
    %c0_399 = arith.constant 0 : index
    %c0_400 = arith.constant 0 : index
    %661 = vector.load %arg16[%c0_399, %c0_400] : memref<1x16xf32, #tpu.memory_space<vmem>>, vector<1x16xf32>
    %662 = vector.broadcast %661 : vector<1x16xf32> to vector<2x16xf32>
    %663 = arith.addf %660, %662 : vector<2x16xf32>
    %cst_401 = arith.constant 0.000000e+00 : f32
    %664 = vector.broadcast %cst_401 : f32 to vector<2x16xf32>
    %665 = arith.cmpf ogt, %663, %664 : vector<2x16xf32>
    %cst_402 = arith.constant 0.000000e+00 : f32
    %666 = vector.broadcast %cst_402 : f32 to vector<2x16xf32>
    %667 = arith.minimumf %663, %666 : vector<2x16xf32>
    %cst_403 = arith.constant 1.000000e-01 : f32
    %668 = vector.broadcast %cst_403 : f32 to vector<2x16xf32>
    %669 = arith.divf %667, %668 : vector<2x16xf32>
    %670 = math.exp %669 : vector<2x16xf32>
    %cst_404 = arith.constant 1.000000e+00 : f32
    %671 = vector.broadcast %cst_404 : f32 to vector<2x16xf32>
    %672 = arith.subf %670, %671 : vector<2x16xf32>
    %cst_405 = arith.constant 1.000000e-01 : f32
    %673 = vector.broadcast %cst_405 : f32 to vector<2x16xf32>
    %674 = arith.mulf %673, %672 : vector<2x16xf32>
    %675 = arith.select %665, %663, %674 : vector<2x16xi1>, vector<2x16xf32>
    %676 = arith.truncf %675 : vector<2x16xf32> to vector<2x16xbf16>
    %c0_406 = arith.constant 0 : index
    %c0_407 = arith.constant 0 : index
    %677 = vector.load %arg17[%c0_406, %c0_407] : memref<16x1xbf16, #tpu.memory_space<vmem>>, vector<16x1xbf16>
    %cst_408 = arith.constant dense<0.000000e+00> : vector<2x1xf32>
    %678 = tpu.matmul %676, %677, %cst_408 {dimension_numbers = #tpu.dot_dimension_numbers<[1], [0], [0], [1], [0, 0, 1, 1], [], []>} : vector<2x16xbf16>, vector<16x1xbf16>, vector<2x1xf32> -> vector<2x1xf32>
    %c0_409 = arith.constant 0 : index
    %c0_410 = arith.constant 0 : index
    %679 = vector.load %arg18[%c0_409, %c0_410] : memref<1x1xf32, #tpu.memory_space<vmem>>, vector<1x1xf32>
    %680 = vector.broadcast %679 : vector<1x1xf32> to vector<2x1xf32>
    %681 = arith.addf %678, %680 : vector<2x1xf32>
    %682 = arith.addf %620, %681 : vector<2x1xf32>
    %c0_411 = arith.constant 0 : index
    %c7 = arith.constant 7 : index
    %c0_412 = arith.constant 0 : index
    %683 = vector.load %arg2[%c0_411, %c7, %c0_412] : memref<2x8x1408xbf16, #tpu.memory_space<vmem>>, vector<2x1x1408xbf16>
    %684 = vector.shape_cast %683 : vector<2x1x1408xbf16> to vector<2x1408xbf16>
    %c0_413 = arith.constant 0 : index
    %c0_414 = arith.constant 0 : index
    %685 = vector.load %arg11[%c0_413, %c0_414] : memref<1408x64xbf16, #tpu.memory_space<vmem>>, vector<1408x64xbf16>
    %cst_415 = arith.constant dense<0.000000e+00> : vector<2x64xf32>
    %686 = tpu.matmul %684, %685, %cst_415 {dimension_numbers = #tpu.dot_dimension_numbers<[1], [0], [0], [1], [0, 0, 1, 1], [], []>} : vector<2x1408xbf16>, vector<1408x64xbf16>, vector<2x64xf32> -> vector<2x64xf32>
    %c0_416 = arith.constant 0 : index
    %c0_417 = arith.constant 0 : index
    %687 = vector.load %arg12[%c0_416, %c0_417] : memref<1x64xf32, #tpu.memory_space<vmem>>, vector<1x64xf32>
    %688 = vector.broadcast %687 : vector<1x64xf32> to vector<2x64xf32>
    %689 = arith.addf %686, %688 : vector<2x64xf32>
    %cst_418 = arith.constant 0.000000e+00 : f32
    %690 = vector.broadcast %cst_418 : f32 to vector<2x64xf32>
    %691 = arith.cmpf ogt, %689, %690 : vector<2x64xf32>
    %cst_419 = arith.constant 0.000000e+00 : f32
    %692 = vector.broadcast %cst_419 : f32 to vector<2x64xf32>
    %693 = arith.minimumf %689, %692 : vector<2x64xf32>
    %cst_420 = arith.constant 1.000000e-01 : f32
    %694 = vector.broadcast %cst_420 : f32 to vector<2x64xf32>
    %695 = arith.divf %693, %694 : vector<2x64xf32>
    %696 = math.exp %695 : vector<2x64xf32>
    %cst_421 = arith.constant 1.000000e+00 : f32
    %697 = vector.broadcast %cst_421 : f32 to vector<2x64xf32>
    %698 = arith.subf %696, %697 : vector<2x64xf32>
    %cst_422 = arith.constant 1.000000e-01 : f32
    %699 = vector.broadcast %cst_422 : f32 to vector<2x64xf32>
    %700 = arith.mulf %699, %698 : vector<2x64xf32>
    %701 = arith.select %691, %689, %700 : vector<2x64xi1>, vector<2x64xf32>
    %702 = arith.truncf %701 : vector<2x64xf32> to vector<2x64xbf16>
    %c0_423 = arith.constant 0 : index
    %c0_424 = arith.constant 0 : index
    %703 = vector.load %arg13[%c0_423, %c0_424] : memref<64x32xbf16, #tpu.memory_space<vmem>>, vector<64x32xbf16>
    %cst_425 = arith.constant dense<0.000000e+00> : vector<2x32xf32>
    %704 = tpu.matmul %702, %703, %cst_425 {dimension_numbers = #tpu.dot_dimension_numbers<[1], [0], [0], [1], [0, 0, 1, 1], [], []>} : vector<2x64xbf16>, vector<64x32xbf16>, vector<2x32xf32> -> vector<2x32xf32>
    %c0_426 = arith.constant 0 : index
    %c0_427 = arith.constant 0 : index
    %705 = vector.load %arg14[%c0_426, %c0_427] : memref<1x32xf32, #tpu.memory_space<vmem>>, vector<1x32xf32>
    %706 = vector.broadcast %705 : vector<1x32xf32> to vector<2x32xf32>
    %707 = arith.addf %704, %706 : vector<2x32xf32>
    %cst_428 = arith.constant 0.000000e+00 : f32
    %708 = vector.broadcast %cst_428 : f32 to vector<2x32xf32>
    %709 = arith.cmpf ogt, %707, %708 : vector<2x32xf32>
    %cst_429 = arith.constant 0.000000e+00 : f32
    %710 = vector.broadcast %cst_429 : f32 to vector<2x32xf32>
    %711 = arith.minimumf %707, %710 : vector<2x32xf32>
    %cst_430 = arith.constant 1.000000e-01 : f32
    %712 = vector.broadcast %cst_430 : f32 to vector<2x32xf32>
    %713 = arith.divf %711, %712 : vector<2x32xf32>
    %714 = math.exp %713 : vector<2x32xf32>
    %cst_431 = arith.constant 1.000000e+00 : f32
    %715 = vector.broadcast %cst_431 : f32 to vector<2x32xf32>
    %716 = arith.subf %714, %715 : vector<2x32xf32>
    %cst_432 = arith.constant 1.000000e-01 : f32
    %717 = vector.broadcast %cst_432 : f32 to vector<2x32xf32>
    %718 = arith.mulf %717, %716 : vector<2x32xf32>
    %719 = arith.select %709, %707, %718 : vector<2x32xi1>, vector<2x32xf32>
    %720 = arith.truncf %719 : vector<2x32xf32> to vector<2x32xbf16>
    %c0_433 = arith.constant 0 : index
    %c0_434 = arith.constant 0 : index
    %721 = vector.load %arg15[%c0_433, %c0_434] : memref<32x16xbf16, #tpu.memory_space<vmem>>, vector<32x16xbf16>
    %cst_435 = arith.constant dense<0.000000e+00> : vector<2x16xf32>
    %722 = tpu.matmul %720, %721, %cst_435 {dimension_numbers = #tpu.dot_dimension_numbers<[1], [0], [0], [1], [0, 0, 1, 1], [], []>} : vector<2x32xbf16>, vector<32x16xbf16>, vector<2x16xf32> -> vector<2x16xf32>
    %c0_436 = arith.constant 0 : index
    %c0_437 = arith.constant 0 : index
    %723 = vector.load %arg16[%c0_436, %c0_437] : memref<1x16xf32, #tpu.memory_space<vmem>>, vector<1x16xf32>
    %724 = vector.broadcast %723 : vector<1x16xf32> to vector<2x16xf32>
    %725 = arith.addf %722, %724 : vector<2x16xf32>
    %cst_438 = arith.constant 0.000000e+00 : f32
    %726 = vector.broadcast %cst_438 : f32 to vector<2x16xf32>
    %727 = arith.cmpf ogt, %725, %726 : vector<2x16xf32>
    %cst_439 = arith.constant 0.000000e+00 : f32
    %728 = vector.broadcast %cst_439 : f32 to vector<2x16xf32>
    %729 = arith.minimumf %725, %728 : vector<2x16xf32>
    %cst_440 = arith.constant 1.000000e-01 : f32
    %730 = vector.broadcast %cst_440 : f32 to vector<2x16xf32>
    %731 = arith.divf %729, %730 : vector<2x16xf32>
    %732 = math.exp %731 : vector<2x16xf32>
    %cst_441 = arith.constant 1.000000e+00 : f32
    %733 = vector.broadcast %cst_441 : f32 to vector<2x16xf32>
    %734 = arith.subf %732, %733 : vector<2x16xf32>
    %cst_442 = arith.constant 1.000000e-01 : f32
    %735 = vector.broadcast %cst_442 : f32 to vector<2x16xf32>
    %736 = arith.mulf %735, %734 : vector<2x16xf32>
    %737 = arith.select %727, %725, %736 : vector<2x16xi1>, vector<2x16xf32>
    %738 = arith.truncf %737 : vector<2x16xf32> to vector<2x16xbf16>
    %c0_443 = arith.constant 0 : index
    %c0_444 = arith.constant 0 : index
    %739 = vector.load %arg17[%c0_443, %c0_444] : memref<16x1xbf16, #tpu.memory_space<vmem>>, vector<16x1xbf16>
    %cst_445 = arith.constant dense<0.000000e+00> : vector<2x1xf32>
    %740 = tpu.matmul %738, %739, %cst_445 {dimension_numbers = #tpu.dot_dimension_numbers<[1], [0], [0], [1], [0, 0, 1, 1], [], []>} : vector<2x16xbf16>, vector<16x1xbf16>, vector<2x1xf32> -> vector<2x1xf32>
    %c0_446 = arith.constant 0 : index
    %c0_447 = arith.constant 0 : index
    %741 = vector.load %arg18[%c0_446, %c0_447] : memref<1x1xf32, #tpu.memory_space<vmem>>, vector<1x1xf32>
    %742 = vector.broadcast %741 : vector<1x1xf32> to vector<2x1xf32>
    %743 = arith.addf %740, %742 : vector<2x1xf32>
    %744 = arith.addf %682, %743 : vector<2x1xf32>
    %c0_448 = arith.constant 0 : index
    %c0_449 = arith.constant 0 : index
    %745 = vector.load %arg19[%c0_448, %c0_449] : memref<2x1xf32, #tpu.memory_space<vmem>>, vector<2x1xf32>
    tpu.vector_store %arg19[%c0_448, %c0_449], %744 {strides = array<i32>} : memref<2x1xf32, #tpu.memory_space<vmem>>, vector<2x1xf32>,
    return
  }
  func.func @transform_0(%arg0: i32) -> (i32, i32, i32) {
    %c0_i32 = arith.constant 0 : i32
    %c0_i32_0 = arith.constant 0 : i32
    %c0_i32_1 = arith.constant 0 : i32
    return %arg0, %c0_i32, %c0_i32_0 : i32, i32, i32
  }
  func.func @transform_1(%arg0: i32) -> (i32, i32, i32) {
    %c0_i32 = arith.constant 0 : i32
    %c0_i32_0 = arith.constant 0 : i32
    %c0_i32_1 = arith.constant 0 : i32
    return %arg0, %c0_i32, %c0_i32_0 : i32, i32, i32
  }
  func.func @transform_2(%arg0: i32) -> (i32, i32) {
    %c0_i32 = arith.constant 0 : i32
    %c0_i32_0 = arith.constant 0 : i32
    %c0_i32_1 = arith.constant 0 : i32
    return %c0_i32, %c0_i32_0 : i32, i32
  }
  func.func @transform_3(%arg0: i32) -> (i32, i32) {
    %c0_i32 = arith.constant 0 : i32
    %c0_i32_0 = arith.constant 0 : i32
    %c0_i32_1 = arith.constant 0 : i32
    return %c0_i32, %c0_i32_0 : i32, i32
  }
  func.func @transform_4(%arg0: i32) -> (i32, i32) {
    %c0_i32 = arith.constant 0 : i32
    %c0_i32_0 = arith.constant 0 : i32
    %c0_i32_1 = arith.constant 0 : i32
    return %c0_i32, %c0_i32_0 : i32, i32
  }
  func.func @transform_5(%arg0: i32) -> (i32, i32) {
    %c0_i32 = arith.constant 0 : i32
    %c0_i32_0 = arith.constant 0 : i32
    %c0_i32_1 = arith.constant 0 : i32
    return %c0_i32, %c0_i32_0 : i32, i32
  }
  func.func @transform_6(%arg0: i32) -> (i32, i32) {
    %c0_i32 = arith.constant 0 : i32
    %c0_i32_0 = arith.constant 0 : i32
    %c0_i32_1 = arith.constant 0 : i32
    return %c0_i32, %c0_i32_0 : i32, i32
  }
  func.func @transform_7(%arg0: i32) -> (i32, i32) {
    %c0_i32 = arith.constant 0 : i32
    %c0_i32_0 = arith.constant 0 : i32
    %c0_i32_1 = arith.constant 0 : i32
    return %c0_i32, %c0_i32_0 : i32, i32
  }
  func.func @transform_8(%arg0: i32) -> (i32, i32) {
    %c0_i32 = arith.constant 0 : i32
    %c0_i32_0 = arith.constant 0 : i32
    %c0_i32_1 = arith.constant 0 : i32
    return %c0_i32, %c0_i32_0 : i32, i32
  }
  func.func @transform_9(%arg0: i32) -> (i32, i32) {
    %c0_i32 = arith.constant 0 : i32
    %c0_i32_0 = arith.constant 0 : i32
    %c0_i32_1 = arith.constant 0 : i32
    return %c0_i32, %c0_i32_0 : i32, i32
  }
  func.func @transform_10(%arg0: i32) -> (i32, i32) {
    %c0_i32 = arith.constant 0 : i32
    %c0_i32_0 = arith.constant 0 : i32
    %c0_i32_1 = arith.constant 0 : i32
    return %c0_i32, %c0_i32_0 : i32, i32
  }
  func.func @transform_11(%arg0: i32) -> (i32, i32) {
    %c0_i32 = arith.constant 0 : i32
    %c0_i32_0 = arith.constant 0 : i32
    %c0_i32_1 = arith.constant 0 : i32
    return %c0_i32, %c0_i32_0 : i32, i32
  }
  func.func @transform_12(%arg0: i32) -> (i32, i32) {
    %c0_i32 = arith.constant 0 : i32
    %c0_i32_0 = arith.constant 0 : i32
    %c0_i32_1 = arith.constant 0 : i32
    return %c0_i32, %c0_i32_0 : i32, i32
  }
  func.func @transform_13(%arg0: i32) -> (i32, i32) {
    %c0_i32 = arith.constant 0 : i32
    %c0_i32_0 = arith.constant 0 : i32
    %c0_i32_1 = arith.constant 0 : i32
    return %c0_i32, %c0_i32_0 : i32, i32
  }
  func.func @transform_14(%arg0: i32) -> (i32, i32) {
    %c0_i32 = arith.constant 0 : i32
    %c0_i32_0 = arith.constant 0 : i32
    %c0_i32_1 = arith.constant 0 : i32
    return %c0_i32, %c0_i32_0 : i32, i32
  }
  func.func @transform_15(%arg0: i32) -> (i32, i32) {
    %c0_i32 = arith.constant 0 : i32
    %c0_i32_0 = arith.constant 0 : i32
    %c0_i32_1 = arith.constant 0 : i32
    return %c0_i32, %c0_i32_0 : i32, i32
  }
  func.func @transform_16(%arg0: i32) -> (i32, i32) {
    %c0_i32 = arith.constant 0 : i32
    %c0_i32_0 = arith.constant 0 : i32
    %c0_i32_1 = arith.constant 0 : i32
    return %c0_i32, %c0_i32_0 : i32, i32
  }
  func.func @transform_17(%arg0: i32) -> (i32, i32) {
    %c0_i32 = arith.constant 0 : i32
    %c0_i32_0 = arith.constant 0 : i32
    %c0_i32_1 = arith.constant 0 : i32
    return %c0_i32, %c0_i32_0 : i32, i32
  }
  func.func @transform_18(%arg0: i32) -> (i32, i32) {
    %c0_i32 = arith.constant 0 : i32
    %c0_i32_0 = arith.constant 0 : i32
    return %arg0, %c0_i32 : i32, i32
  }
}

</mosaic_0001>

<llo_original>
// kernel: tpu_custom_call.1
$region0: #{tpu_custom_call.1}
  #allocation0 [shape = 'u32[]', space=smem, size = 0x4, offset = 0x4, fixed_abs, tag = 'smem constant byte address 0x4 - core index']
  #allocation1 [shape = 'u32[72,128]{1,0:T(1,128)}', space=vmem, size = 0x9000, scoped, tag = 'internal scratch']
  #allocation2 [shape = 'f32[1,1]{1,0:T(1,128)S(1)}', space=vmem, size = 0x200, scoped, tag = 'scoped memory for tpu_custom_call.1']
  #allocation3 [shape = 'f32[1,1]{1,0:T(1,128)S(1)}', space=vmem, size = 0x200, scoped, tag = 'scoped memory for tpu_custom_call.1']
  %s0 = inlined_call_operand.vmem [shape: bf16[2,4,384], index: 0, kind: input, shape index: {}]
  %s1 = inlined_call_operand.vmem [shape: bf16[2,8,1408], index: 1, kind: input, shape index: {}]
  %s2 = inlined_call_operand.vmem [shape: bf16[384,64], index: 2, kind: input, shape index: {}]
  %s3 = inlined_call_operand.vmem [shape: f32[1,64], index: 3, kind: input, shape index: {}]
  %s4 = inlined_call_operand.vmem [shape: bf16[64,32], index: 4, kind: input, shape index: {}]
  %s5 = inlined_call_operand.vmem [shape: f32[1,32], index: 5, kind: input, shape index: {}]
  %s6 = inlined_call_operand.vmem [shape: bf16[32,16], index: 6, kind: input, shape index: {}]
  %s7 = inlined_call_operand.vmem [shape: f32[1,16], index: 7, kind: input, shape index: {}]
  %s8 = inlined_call_operand.vmem [shape: bf16[16,1], index: 8, kind: input, shape index: {}]
  %s9 = inlined_call_operand.<no memory space> [shape: f32[1,1], index: 9, kind: input, shape index: {}]
  %s10 = inlined_call_operand.vmem [shape: bf16[1408,64], index: 10, kind: input, shape index: {}]
  %s11 = inlined_call_operand.vmem [shape: f32[1,64], index: 11, kind: input, shape index: {}]
  %s12 = inlined_call_operand.vmem [shape: bf16[64,32], index: 12, kind: input, shape index: {}]
  %s13 = inlined_call_operand.vmem [shape: f32[1,32], index: 13, kind: input, shape index: {}]
  %s14 = inlined_call_operand.vmem [shape: bf16[32,16], index: 14, kind: input, shape index: {}]
  %s15 = inlined_call_operand.vmem [shape: f32[1,16], index: 15, kind: input, shape index: {}]
  %s16 = inlined_call_operand.vmem [shape: bf16[16,1], index: 16, kind: input, shape index: {}]
  %s17 = inlined_call_operand.<no memory space> [shape: f32[1,1], index: 17, kind: input, shape index: {}]
  %s18 = inlined_call_operand.vmem [shape: f32[2,1], index: 18, kind: output, shape index: {}]
  %s19 = sld [smem:[#allocation0]]
  $region82: #{tpu_custom_call.1} parent=0
    _
  %s21 = ssub.s32 1, %s19
  %s22 = scalar_select 0, %s21, %s19
  %v23 = vstv %s9
  %24 = vst [vmem:[#allocation2] sm:$0x1] %v23
  %v25 = vstv %s17
  %26 = vst [vmem:[#allocation3] sm:$0x1] %v25
  // Predicated region
  $region2: #{tpu_custom_call.1} parent=0 // pred_check
    _
  $region3: #{tpu_custom_call.1} parent=0 // pred_check_branch
    %28 = sbr.rel (0) target = $region5
  $region4: #{tpu_custom_call.1} parent=0 // pred_region
    _
  $region5: #{tpu_custom_call.1} parent=0 // pred_fallthru
    _
  // Predicated region
  $region6: #{tpu_custom_call.1} parent=0 // pred_check
    _
  $region7: #{tpu_custom_call.1} parent=0 // pred_check_branch
    %30 = sbr.rel (0) target = $region9
  $region8: #{tpu_custom_call.1} parent=0 // pred_region
    _
  $region9: #{tpu_custom_call.1} parent=0 // pred_fallthru
    _
  // Predicated region
  $region10: #{tpu_custom_call.1} parent=0 // pred_check
    _
  $region11: #{tpu_custom_call.1} parent=0 // pred_check_branch
    %32 = sbr.rel (0) target = $region13
  $region12: #{tpu_custom_call.1} parent=0 // pred_region
    _
  $region13: #{tpu_custom_call.1} parent=0 // pred_fallthru
    _
  // Predicated region
  $region14: #{tpu_custom_call.1} parent=0 // pred_check
    _
  $region15: #{tpu_custom_call.1} parent=0 // pred_check_branch
    %34 = sbr.rel (0) target = $region17
  $region16: #{tpu_custom_call.1} parent=0 // pred_region
    _
  $region17: #{tpu_custom_call.1} parent=0 // pred_fallthru
    _
  // Predicated region
  $region18: #{tpu_custom_call.1} parent=0 // pred_check
    _
  $region19: #{tpu_custom_call.1} parent=0 // pred_check_branch
    %36 = sbr.rel (0) target = $region21
  $region20: #{tpu_custom_call.1} parent=0 // pred_region
    _
  $region21: #{tpu_custom_call.1} parent=0 // pred_fallthru
    _
  // Predicated region
  $region22: #{tpu_custom_call.1} parent=0 // pred_check
    _
  $region23: #{tpu_custom_call.1} parent=0 // pred_check_branch
    %38 = sbr.rel (0) target = $region25
  $region24: #{tpu_custom_call.1} parent=0 // pred_region
    _
  $region25: #{tpu_custom_call.1} parent=0 // pred_fallthru
    _
  // Predicated region
  $region26: #{tpu_custom_call.1} parent=0 // pred_check
    _
  $region27: #{tpu_custom_call.1} parent=0 // pred_check_branch
    %40 = sbr.rel (0) target = $region29
  $region28: #{tpu_custom_call.1} parent=0 // pred_region
    _
  $region29: #{tpu_custom_call.1} parent=0 // pred_fallthru
    _
  // Predicated region
  $region30: #{tpu_custom_call.1} parent=0 // pred_check
    _
  $region31: #{tpu_custom_call.1} parent=0 // pred_check_branch
    %42 = sbr.rel (0) target = $region33
  $region32: #{tpu_custom_call.1} parent=0 // pred_region
    _
  $region33: #{tpu_custom_call.1} parent=0 // pred_fallthru
    _
  // Predicated region
  $region34: #{tpu_custom_call.1} parent=0 // pred_check
    _
  $region35: #{tpu_custom_call.1} parent=0 // pred_check_branch
    %44 = sbr.rel (0) target = $region37
  $region36: #{tpu_custom_call.1} parent=0 // pred_region
    _
  $region37: #{tpu_custom_call.1} parent=0 // pred_fallthru
    _
  // Predicated region
  $region38: #{tpu_custom_call.1} parent=0 // pred_check
    _
  $region39: #{tpu_custom_call.1} parent=0 // pred_check_branch
    %46 = sbr.rel (0) target = $region41
  $region40: #{tpu_custom_call.1} parent=0 // pred_region
    _
  $region41: #{tpu_custom_call.1} parent=0 // pred_fallthru
    _
  // Predicated region
  $region42: #{tpu_custom_call.1} parent=0 // pred_check
    _
  $region43: #{tpu_custom_call.1} parent=0 // pred_check_branch
    %48 = sbr.rel (0) target = $region45
  $region44: #{tpu_custom_call.1} parent=0 // pred_region
    _
  $region45: #{tpu_custom_call.1} parent=0 // pred_fallthru
    _
  // Predicated region
  $region46: #{tpu_custom_call.1} parent=0 // pred_check
    _
  $region47: #{tpu_custom_call.1} parent=0 // pred_check_branch
    %50 = sbr.rel (0) target = $region49
  $region48: #{tpu_custom_call.1} parent=0 // pred_region
    _
  $region49: #{tpu_custom_call.1} parent=0 // pred_fallthru
    _
  // Predicated region
  $region50: #{tpu_custom_call.1} parent=0 // pred_check
    _
  $region51: #{tpu_custom_call.1} parent=0 // pred_check_branch
    %52 = sbr.rel (0) target = $region53
  $region52: #{tpu_custom_call.1} parent=0 // pred_region
    _
  $region53: #{tpu_custom_call.1} parent=0 // pred_fallthru
    _
  // Predicated region
  $region54: #{tpu_custom_call.1} parent=0 // pred_check
    _
  $region55: #{tpu_custom_call.1} parent=0 // pred_check_branch
    %54 = sbr.rel (0) target = $region57
  $region56: #{tpu_custom_call.1} parent=0 // pred_region
    _
  $region57: #{tpu_custom_call.1} parent=0 // pred_fallthru
    _
  // Predicated region
  $region58: #{tpu_custom_call.1} parent=0 // pred_check
    _
  $region59: #{tpu_custom_call.1} parent=0 // pred_check_branch
    %56 = sbr.rel (0) target = $region61
  $region60: #{tpu_custom_call.1} parent=0 // pred_region
    _
  $region61: #{tpu_custom_call.1} parent=0 // pred_fallthru
    _
  // Predicated region
  $region62: #{tpu_custom_call.1} parent=0 // pred_check
    _
  $region63: #{tpu_custom_call.1} parent=0 // pred_check_branch
    %58 = sbr.rel (0) target = $region65
  $region64: #{tpu_custom_call.1} parent=0 // pred_region
    _
  $region65: #{tpu_custom_call.1} parent=0 // pred_fallthru
    _
  // Predicated region
  $region66: #{tpu_custom_call.1} parent=0 // pred_check
    _
  $region67: #{tpu_custom_call.1} parent=0 // pred_check_branch
    %60 = sbr.rel (0) target = $region69
  $region68: #{tpu_custom_call.1} parent=0 // pred_region
    _
  $region69: #{tpu_custom_call.1} parent=0 // pred_fallthru
    _
  // Predicated region
  $region70: #{tpu_custom_call.1} parent=0 // pred_check
    _
  $region71: #{tpu_custom_call.1} parent=0 // pred_check_branch
    %62 = sbr.rel (0) target = $region73
  $region72: #{tpu_custom_call.1} parent=0 // pred_region
    _
  $region73: #{tpu_custom_call.1} parent=0 // pred_fallthru
    _
  %v64 = vld [vmem:[%s0] sm:$0x15]
  %v65 = vld [vmem:[%s0 + $0x6] sm:$0x15]
  %v66 = vld [vmem:[%s2] sm:$0xf]
  %v67 = vld [vmem:[%s2 + $0x4] sm:$0xf]
  %v68 = vld [vmem:[%s2 + $0x8] sm:$0xf]
  %v69 = vld [vmem:[%s2 + $0xc] sm:$0xf]
  %v70 = vld [vmem:[%s2 + $0x10] sm:$0xf]
  %v71 = vld [vmem:[%s2 + $0x14] sm:$0xf]
  %v72 = vld [vmem:[%s2 + $0x18] sm:$0xf]
  %v73 = vld [vmem:[%s2 + $0x1c] sm:$0xf]
  %v74 = vld [vmem:[%s2 + $0x20] sm:$0xf]
  %v75 = vld [vmem:[%s2 + $0x24] sm:$0xf]
  %v76 = vld [vmem:[%s2 + $0x28] sm:$0xf]
  %v77 = vld [vmem:[%s2 + $0x2c] sm:$0xf]
  %v78 = vld [vmem:[%s2 + $0x30] sm:$0xf]
  %v79 = vld [vmem:[%s2 + $0x34] sm:$0xf]
  %v80 = vld [vmem:[%s2 + $0x38] sm:$0xf]
  %v81 = vld [vmem:[%s2 + $0x3c] sm:$0xf]
  %v82 = vld [vmem:[%s2 + $0x40] sm:$0xf]
  %v83 = vld [vmem:[%s2 + $0x44] sm:$0xf]
  %v84 = vld [vmem:[%s2 + $0x48] sm:$0xf]
  %v85 = vld [vmem:[%s2 + $0x4c] sm:$0xf]
  %v86 = vld [vmem:[%s2 + $0x50] sm:$0xf]
  %v87 = vld [vmem:[%s2 + $0x54] sm:$0xf]
  %v88 = vld [vmem:[%s2 + $0x58] sm:$0xf]
  %v89 = vld [vmem:[%s2 + $0x5c] sm:$0xf]
  %v90 = vld [vmem:[%s2 + $0x60] sm:$0xf]
  %v91 = vld [vmem:[%s2 + $0x64] sm:$0xf]
  %v92 = vld [vmem:[%s2 + $0x68] sm:$0xf]
  %v93 = vld [vmem:[%s2 + $0x6c] sm:$0xf]
  %v94 = vld [vmem:[%s2 + $0x70] sm:$0xf]
  %v95 = vld [vmem:[%s2 + $0x74] sm:$0xf]
  %v96 = vld [vmem:[%s2 + $0x78] sm:$0xf]
  %v97 = vld [vmem:[%s2 + $0x7c] sm:$0xf]
  %v98 = vld [vmem:[%s2 + $0x80] sm:$0xf]
  %v99 = vld [vmem:[%s2 + $0x84] sm:$0xf]
  %v100 = vld [vmem:[%s2 + $0x88] sm:$0xf]
  %v101 = vld [vmem:[%s2 + $0x8c] sm:$0xf]
  %v102 = vld [vmem:[%s2 + $0x90] sm:$0xf]
  %v103 = vld [vmem:[%s2 + $0x94] sm:$0xf]
  %v104 = vld [vmem:[%s2 + $0x98] sm:$0xf]
  %v105 = vld [vmem:[%s2 + $0x9c] sm:$0xf]
  %v106 = vld [vmem:[%s2 + $0xa0] sm:$0xf]
  %v107 = vld [vmem:[%s2 + $0xa4] sm:$0xf]
  %v108 = vld [vmem:[%s2 + $0xa8] sm:$0xf]
  %v109 = vld [vmem:[%s2 + $0xac] sm:$0xf]
  %v110 = vld [vmem:[%s2 + $0xb0] sm:$0xf]
  %v111 = vld [vmem:[%s2 + $0xb4] sm:$0xf]
  %v112 = vld [vmem:[%s2 + $0xb8] sm:$0xf]
  %v113 = vld [vmem:[%s2 + $0xbc] sm:$0xf]
  %v114 = vld [vmem:[%s3] sm:$0x1]
  %v116 = vperm.slane %v114, 0
  %119 = vst [vmem:[#allocation1] ss:$4 sm:$0xff] %v64
  %v120 = vld.sshfl [vmem:[#allocation1] sm:$0xff pattern:$0x73625140]
  %v122 = vld.sshfl [vmem:[#allocation1 + $0x8] sm:$0xff pattern:$0x73625140]
  %v124 = vld.sshfl [vmem:[#allocation1 + $0x10] sm:$0xff pattern:$0x73625140]
  %s127 = scalar_lea.vmem [#allocation1], 32
  %128 = vst [vmem:[%s127] ss:$4 sm:$0xff] %v65
  %v129 = vld.sshfl [vmem:[#allocation1 + $0x20] sm:$0xff pattern:$0x73625140]
  %v131 = vld.sshfl [vmem:[#allocation1 + $0x28] sm:$0xff pattern:$0x73625140]
  %v133 = vld.sshfl [vmem:[#allocation1 + $0x30] sm:$0xff pattern:$0x73625140]
  %v135 = vunpack.c.l.b16 %v120
  %v136 = vunpack.c.l.b16 %v122
  %v137 = vunpack.c.l.b16 %v124
  %v138 = vunpack.c.l.b16 %v129
  %v139 = vunpack.c.l.b16 %v131
  %v140 = vunpack.c.l.b16 %v133
  %v141 = vrot.slane %v138, 7
  %vm142 = vcmask 1041409
  %v143 = vsel %vm142, %v141, %v135
  %v144 = vrot.slane %v139, 7
  %v145 = vsel %vm142, %v144, %v136
  %v146 = vrot.slane %v140, 7
  %v147 = vsel %vm142, %v146, %v137
  %v148 = vpack.c.b16 %v143, %v143
  %v149 = vpack.c.b16 %v145, %v145
  %v150 = vpack.c.b16 %v147, %v147
  %v202 = vunpack.c.l.b16 %v66
  %v203 = vunpack.c.l.b16 %v67
  %v204 = vunpack.c.l.b16 %v68
  %v205 = vunpack.c.l.b16 %v69
  %v206 = vunpack.c.l.b16 %v70
  %v207 = vunpack.c.l.b16 %v71
  %v208 = vunpack.c.l.b16 %v72
  %v209 = vunpack.c.l.b16 %v73
  %v210 = vunpack.c.l.b16 %v74
  %v211 = vunpack.c.l.b16 %v75
  %v212 = vunpack.c.l.b16 %v76
  %v213 = vunpack.c.l.b16 %v77
  %v214 = vunpack.c.l.b16 %v78
  %v215 = vunpack.c.l.b16 %v79
  %v216 = vunpack.c.l.b16 %v80
  %v217 = vunpack.c.l.b16 %v81
  %v218 = vunpack.c.l.b16 %v82
  %v219 = vunpack.c.l.b16 %v83
  %v220 = vunpack.c.l.b16 %v84
  %v221 = vunpack.c.l.b16 %v85
  %v222 = vunpack.c.l.b16 %v86
  %v223 = vunpack.c.l.b16 %v87
  %v224 = vunpack.c.l.b16 %v88
  %v225 = vunpack.c.l.b16 %v89
  %v226 = vunpack.c.l.b16 %v90
  %v227 = vunpack.c.l.b16 %v91
  %v228 = vunpack.c.l.b16 %v92
  %v229 = vunpack.c.l.b16 %v93
  %v230 = vunpack.c.l.b16 %v94
  %v231 = vunpack.c.l.b16 %v95
  %v232 = vunpack.c.l.b16 %v96
  %v233 = vunpack.c.l.b16 %v97
  %v234 = vunpack.c.l.b16 %v98
  %v235 = vunpack.c.l.b16 %v99
  %v236 = vunpack.c.l.b16 %v100
  %v237 = vunpack.c.l.b16 %v101
  %v238 = vunpack.c.l.b16 %v102
  %v239 = vunpack.c.l.b16 %v103
  %v240 = vunpack.c.l.b16 %v104
  %v241 = vunpack.c.l.b16 %v105
  %v242 = vunpack.c.l.b16 %v106
  %v243 = vunpack.c.l.b16 %v107
  %v244 = vunpack.c.l.b16 %v108
  %v245 = vunpack.c.l.b16 %v109
  %v246 = vunpack.c.l.b16 %v110
  %v247 = vunpack.c.l.b16 %v111
  %v248 = vunpack.c.l.b16 %v112
  %v249 = vunpack.c.l.b16 %v113
  %v250 = vpack.c.b16 %v203, %v202
  %v251 = vpack.c.b16 %v205, %v204
  %v252 = vpack.c.b16 %v207, %v206
  %v253 = vpack.c.b16 %v209, %v208
  %v254 = vpack.c.b16 %v211, %v210
  %v255 = vpack.c.b16 %v213, %v212
  %v256 = vpack.c.b16 %v215, %v214
  %v257 = vpack.c.b16 %v217, %v216
  %v258 = vpack.c.b16 %v219, %v218
  %v259 = vpack.c.b16 %v221, %v220
  %v260 = vpack.c.b16 %v223, %v222
  %v261 = vpack.c.b16 %v225, %v224
  %v262 = vpack.c.b16 %v227, %v226
  %v263 = vpack.c.b16 %v229, %v228
  %v264 = vpack.c.b16 %v231, %v230
  %v265 = vpack.c.b16 %v233, %v232
  %v266 = vpack.c.b16 %v235, %v234
  %v267 = vpack.c.b16 %v237, %v236
  %v268 = vpack.c.b16 %v239, %v238
  %v269 = vpack.c.b16 %v241, %v240
  %v270 = vpack.c.b16 %v243, %v242
  %v271 = vpack.c.b16 %v245, %v244
  %v272 = vpack.c.b16 %v247, %v246
  %v273 = vpack.c.b16 %v249, %v248
  %298 = vmatpush.bf16.msra.mxu0 %v257
  %299 = vmatpush.bf16.msra.mxu0 %v256
  %300 = vmatpush.bf16.msra.mxu0 %v255
  %301 = vmatpush.bf16.msra.mxu0 %v254
  %302 = vmatpush.bf16.msra.mxu0 %v253
  %303 = vmatpush.bf16.msra.mxu0 %v252
  %304 = vmatpush.bf16.msra.mxu0 %v251
  %305 = vmatpush.bf16.msra.mxu0 %v250
  %306 = vmatmul.bf16.gmra.mxu0 %v148
  %v307 = vpop.f32.mrf.mxu0
  %v308 = vadd.f32 %v116, %v307
  %v309 = vpop.f32.mrf.mxu0
  %310 = vdwg.mxu0
  %311 = vmatpush.bf16.msra.mxu0 %v265
  %312 = vmatpush.bf16.msra.mxu0 %v264
  %313 = vmatpush.bf16.msra.mxu0 %v263
  %314 = vmatpush.bf16.msra.mxu0 %v262
  %315 = vmatpush.bf16.msra.mxu0 %v261
  %316 = vmatpush.bf16.msra.mxu0 %v260
  %317 = vmatpush.bf16.msra.mxu0 %v259
  %318 = vmatpush.bf16.msra.mxu0 %v258
  %319 = vmatmul.bf16.gmra.mxu0 %v149
  %v320 = vpop.f32.mrf.mxu0
  %v321 = vadd.f32 %v308, %v320
  %v322 = vpop.f32.mrf.mxu0
  %323 = vdwg.mxu0
  %324 = vmatpush.bf16.msra.mxu0 %v273
  %325 = vmatpush.bf16.msra.mxu0 %v272
  %326 = vmatpush.bf16.msra.mxu0 %v271
  %327 = vmatpush.bf16.msra.mxu0 %v270
  %328 = vmatpush.bf16.msra.mxu0 %v269
  %329 = vmatpush.bf16.msra.mxu0 %v268
  %330 = vmatpush.bf16.msra.mxu0 %v267
  %331 = vmatpush.bf16.msra.mxu0 %v266
  %332 = vmatmul.bf16.gmra.mxu0 %v150
  %v333 = vpop.f32.mrf.mxu0
  %v334 = vadd.f32 %v321, %v333
  %v335 = vpop.f32.mrf.mxu0
  %336 = vdwg.mxu0
  %vm337 = vcmp.gt.f32.partialorder %v334, 0.0
  %v338 = vmin.f32 %v334, 0.0
  %v339 = vrcp.pop 0.1
  %v340 = vmul.f32 0.1, %v339
  %v341 = vsub.f32 1.0, %v340
  %v342 = vmul.f32 %v339, %v341
  %v343 = vadd.f32 %v339, %v342
  %vm344 = vweird.f32 %v339
  %v345 = vsel %vm344, %v339, %v343
  %v346 = vmul.f32 %v338, %v345
  %v347 = vmul.f32 %v346, 1.442695
  %v348 = vpow.pop %v347
  %v349 = vsub.f32 %v348, 1.0
  %v350 = vmul.f32 %v349, 0.1
  %v351 = vsel %vm337, %v334, %v350
  %v352 = vpack.c.bf16 %v351, %v351
  %v353 = vld [vmem:[%s4] sm:$0xf]
  %v354 = vld [vmem:[%s4 + $0x4] sm:$0xf]
  %v355 = vld [vmem:[%s4 + $0x8] sm:$0xf]
  %v356 = vld [vmem:[%s4 + $0xc] sm:$0xf]
  %v357 = vld [vmem:[%s4 + $0x10] sm:$0xf]
  %v358 = vld [vmem:[%s4 + $0x14] sm:$0xf]
  %v359 = vld [vmem:[%s4 + $0x18] sm:$0xf]
  %v360 = vld [vmem:[%s4 + $0x1c] sm:$0xf]
  %v361 = vld [vmem:[%s5] sm:$0x1]
  %v363 = vperm.slane %v361, 0
  %v373 = vunpack.c.l.b16 %v353
  %v374 = vunpack.c.l.b16 %v354
  %v375 = vunpack.c.l.b16 %v355
  %v376 = vunpack.c.l.b16 %v356
  %v377 = vunpack.c.l.b16 %v357
  %v378 = vunpack.c.l.b16 %v358
  %v379 = vunpack.c.l.b16 %v359
  %v380 = vunpack.c.l.b16 %v360
  %v381 = vpack.c.b16 %v374, %v373
  %v382 = vpack.c.b16 %v376, %v375
  %v383 = vpack.c.b16 %v378, %v377
  %v384 = vpack.c.b16 %v380, %v379
  %vm389 = vcmask 523264
  %v391 = vsel %vm389, %v352, 0
  %393 = vmatpush.bf16.msra.mxu0 0
  %394 = vmatpush.bf16.msra.mxu0 0
  %395 = vmatpush.bf16.msra.mxu0 0
  %396 = vmatpush.bf16.msra.mxu0 0
  %397 = vmatpush.bf16.msra.mxu0 %v384
  %398 = vmatpush.bf16.msra.mxu0 %v383
  %399 = vmatpush.bf16.msra.mxu0 %v382
  %400 = vmatpush.bf16.msra.mxu0 %v381
  %401 = vmatmul.bf16.gmra.mxu0 %v391
  %v402 = vpop.f32.mrf.mxu0
  %v403 = vadd.f32 %v363, %v402
  %v404 = vpop.f32.mrf.mxu0
  %405 = vdwg.mxu0
  %vm406 = vcmp.gt.f32.partialorder %v403, 0.0
  %v407 = vmin.f32 %v403, 0.0
  %v408 = vmul.f32 %v407, %v345
  %v409 = vmul.f32 %v408, 1.442695
  %v410 = vpow.pop %v409
  %v411 = vsub.f32 %v410, 1.0
  %v412 = vmul.f32 %v411, 0.1
  %v413 = vsel %vm406, %v403, %v412
  %v414 = vpack.c.bf16 %v413, %v413
  %v415 = vld [vmem:[%s6] sm:$0xf]
  %v416 = vld [vmem:[%s6 + $0x4] sm:$0xf]
  %v417 = vld [vmem:[%s6 + $0x8] sm:$0xf]
  %v418 = vld [vmem:[%s6 + $0xc] sm:$0xf]
  %v419 = vld [vmem:[%s7] sm:$0x1]
  %v421 = vperm.slane %v419, 0
  %v427 = vunpack.c.l.b16 %v415
  %v428 = vunpack.c.l.b16 %v416
  %v429 = vunpack.c.l.b16 %v417
  %v430 = vunpack.c.l.b16 %v418
  %v431 = vpack.c.b16 %v428, %v427
  %v432 = vpack.c.b16 %v430, %v429
  %vm435 = vcmask 261120
  %v437 = vsel %vm435, %v414, 0
  %439 = vmatpush.bf16.msra.mxu0 0
  %440 = vmatpush.bf16.msra.mxu0 0
  %441 = vmatpush.bf16.msra.mxu0 0
  %442 = vmatpush.bf16.msra.mxu0 0
  %443 = vmatpush.bf16.msra.mxu0 0
  %444 = vmatpush.bf16.msra.mxu0 0
  %445 = vmatpush.bf16.msra.mxu0 %v432
  %446 = vmatpush.bf16.msra.mxu0 %v431
  %447 = vmatmul.bf16.gmra.mxu0 %v437
  %v448 = vpop.f32.mrf.mxu0
  %v449 = vadd.f32 %v421, %v448
  %v450 = vpop.f32.mrf.mxu0
  %451 = vdwg.mxu0
  %vm452 = vcmp.gt.f32.partialorder %v449, 0.0
  %v453 = vmin.f32 %v449, 0.0
  %v454 = vmul.f32 %v453, %v345
  %v455 = vmul.f32 %v454, 1.442695
  %v456 = vpow.pop %v455
  %v457 = vsub.f32 %v456, 1.0
  %v458 = vmul.f32 %v457, 0.1
  %v459 = vsel %vm452, %v449, %v458
  %v460 = vpack.c.bf16 %v459, %v459
  %v461 = vld [vmem:[%s8] sm:$0xf]
  %v462 = vld [vmem:[%s8 + $0x4] sm:$0xf]
  %v463 = vld [vmem:[#allocation2] sm:$0x1]
  %v465 = vperm.slane %v463, 0
  %v469 = vunpack.c.l.b16 %v461
  %v470 = vunpack.c.l.b16 %v462
  %v471 = vpack.c.b16 %v470, %v469
  %vm473 = vcmask 130048
  %v475 = vsel %vm473, %v460, 0
  %477 = vmatpush.bf16.msra.mxu0 0
  %478 = vmatpush.bf16.msra.mxu0 0
  %479 = vmatpush.bf16.msra.mxu0 0
  %480 = vmatpush.bf16.msra.mxu0 0
  %481 = vmatpush.bf16.msra.mxu0 0
  %482 = vmatpush.bf16.msra.mxu0 0
  %483 = vmatpush.bf16.msra.mxu0 0
  %484 = vmatpush.bf16.msra.mxu0 %v471
  %485 = vmatmul.bf16.gmra.mxu0 %v475
  %v486 = vpop.f32.mrf.mxu0
  %v487 = vadd.f32 %v465, %v486
  %v488 = vpop.f32.mrf.mxu0
  %489 = vdwg.mxu0
  %v490 = vadd.f32 %v487, 0.0
  %v491 = vld [vmem:[%s0] sm:$0x15]
  %v492 = vld [vmem:[%s0 + $0x6] sm:$0x15]
  %494 = vst [vmem:[#allocation1] ss:$4 sm:$0xff] %v491
  %v495 = vld.sshfl [vmem:[#allocation1] sm:$0xff pattern:$0x73625140]
  %v497 = vld.sshfl [vmem:[#allocation1 + $0x8] sm:$0xff pattern:$0x73625140]
  %v499 = vld.sshfl [vmem:[#allocation1 + $0x10] sm:$0xff pattern:$0x73625140]
  %s502 = scalar_lea.vmem [#allocation1], 32
  %503 = vst [vmem:[%s502] ss:$4 sm:$0xff] %v492
  %v504 = vld.sshfl [vmem:[#allocation1 + $0x20] sm:$0xff pattern:$0x73625140]
  %v506 = vld.sshfl [vmem:[#allocation1 + $0x28] sm:$0xff pattern:$0x73625140]
  %v508 = vld.sshfl [vmem:[#allocation1 + $0x30] sm:$0xff pattern:$0x73625140]
  %v510 = vunpack.c.l.b16 %v495
  %v511 = vunpack.c.l.b16 %v497
  %v512 = vunpack.c.l.b16 %v499
  %v513 = vunpack.c.l.b16 %v504
  %v514 = vunpack.c.l.b16 %v506
  %v515 = vunpack.c.l.b16 %v508
  %v516 = vrot.slane %v510, 1
  %v517 = vsel %vm142, %v513, %v516
  %v518 = vrot.slane %v511, 1
  %v519 = vsel %vm142, %v514, %v518
  %v520 = vrot.slane %v512, 1
  %v521 = vsel %vm142, %v515, %v520
  %v522 = vpack.c.b16 %v517, %v517
  %v523 = vpack.c.b16 %v519, %v519
  %v524 = vpack.c.b16 %v521, %v521
  %528 = vmatpush.bf16.msra.mxu0 %v257
  %529 = vmatpush.bf16.msra.mxu0 %v256
  %530 = vmatpush.bf16.msra.mxu0 %v255
  %531 = vmatpush.bf16.msra.mxu0 %v254
  %532 = vmatpush.bf16.msra.mxu0 %v253
  %533 = vmatpush.bf16.msra.mxu0 %v252
  %534 = vmatpush.bf16.msra.mxu0 %v251
  %535 = vmatpush.bf16.msra.mxu0 %v250
  %536 = vmatmul.bf16.gmra.mxu0 %v522
  %v537 = vpop.f32.mrf.mxu0
  %v538 = vadd.f32 %v116, %v537
  %v539 = vpop.f32.mrf.mxu0
  %540 = vdwg.mxu0
  %541 = vmatpush.bf16.msra.mxu0 %v265
  %542 = vmatpush.bf16.msra.mxu0 %v264
  %543 = vmatpush.bf16.msra.mxu0 %v263
  %544 = vmatpush.bf16.msra.mxu0 %v262
  %545 = vmatpush.bf16.msra.mxu0 %v261
  %546 = vmatpush.bf16.msra.mxu0 %v260
  %547 = vmatpush.bf16.msra.mxu0 %v259
  %548 = vmatpush.bf16.msra.mxu0 %v258
  %549 = vmatmul.bf16.gmra.mxu0 %v523
  %v550 = vpop.f32.mrf.mxu0
  %v551 = vadd.f32 %v538, %v550
  %v552 = vpop.f32.mrf.mxu0
  %553 = vdwg.mxu0
  %554 = vmatpush.bf16.msra.mxu0 %v273
  %555 = vmatpush.bf16.msra.mxu0 %v272
  %556 = vmatpush.bf16.msra.mxu0 %v271
  %557 = vmatpush.bf16.msra.mxu0 %v270
  %558 = vmatpush.bf16.msra.mxu0 %v269
  %559 = vmatpush.bf16.msra.mxu0 %v268
  %560 = vmatpush.bf16.msra.mxu0 %v267
  %561 = vmatpush.bf16.msra.mxu0 %v266
  %562 = vmatmul.bf16.gmra.mxu0 %v524
  %v563 = vpop.f32.mrf.mxu0
  %v564 = vadd.f32 %v551, %v563
  %v565 = vpop.f32.mrf.mxu0
  %566 = vdwg.mxu0
  %vm567 = vcmp.gt.f32.partialorder %v564, 0.0
  %v568 = vmin.f32 %v564, 0.0
  %v569 = vmul.f32 %v568, %v345
  %v570 = vmul.f32 %v569, 1.442695
  %v571 = vpow.pop %v570
  %v572 = vsub.f32 %v571, 1.0
  %v573 = vmul.f32 %v572, 0.1
  %v574 = vsel %vm567, %v564, %v573
  %v575 = vpack.c.bf16 %v574, %v574
  %v577 = vsel %vm389, %v575, 0
  %579 = vmatpush.bf16.msra.mxu0 0
  %580 = vmatpush.bf16.msra.mxu0 0
  %581 = vmatpush.bf16.msra.mxu0 0
  %582 = vmatpush.bf16.msra.mxu0 0
  %583 = vmatpush.bf16.msra.mxu0 %v384
  %584 = vmatpush.bf16.msra.mxu0 %v383
  %585 = vmatpush.bf16.msra.mxu0 %v382
  %586 = vmatpush.bf16.msra.mxu0 %v381
  %587 = vmatmul.bf16.gmra.mxu0 %v577
  %v588 = vpop.f32.mrf.mxu0
  %v589 = vadd.f32 %v363, %v588
  %v590 = vpop.f32.mrf.mxu0
  %591 = vdwg.mxu0
  %vm592 = vcmp.gt.f32.partialorder %v589, 0.0
  %v593 = vmin.f32 %v589, 0.0
  %v594 = vmul.f32 %v593, %v345
  %v595 = vmul.f32 %v594, 1.442695
  %v596 = vpow.pop %v595
  %v597 = vsub.f32 %v596, 1.0
  %v598 = vmul.f32 %v597, 0.1
  %v599 = vsel %vm592, %v589, %v598
  %v600 = vpack.c.bf16 %v599, %v599
  %v602 = vsel %vm435, %v600, 0
  %604 = vmatpush.bf16.msra.mxu0 0
  %605 = vmatpush.bf16.msra.mxu0 0
  %606 = vmatpush.bf16.msra.mxu0 0
  %607 = vmatpush.bf16.msra.mxu0 0
  %608 = vmatpush.bf16.msra.mxu0 0
  %609 = vmatpush.bf16.msra.mxu0 0
  %610 = vmatpush.bf16.msra.mxu0 %v432
  %611 = vmatpush.bf16.msra.mxu0 %v431
  %612 = vmatmul.bf16.gmra.mxu0 %v602
  %v613 = vpop.f32.mrf.mxu0
  %v614 = vadd.f32 %v421, %v613
  %v615 = vpop.f32.mrf.mxu0
  %616 = vdwg.mxu0
  %vm617 = vcmp.gt.f32.partialorder %v614, 0.0
  %v618 = vmin.f32 %v614, 0.0
  %v619 = vmul.f32 %v618, %v345
  %v620 = vmul.f32 %v619, 1.442695
  %v621 = vpow.pop %v620
  %v622 = vsub.f32 %v621, 1.0
  %v623 = vmul.f32 %v622, 0.1
  %v624 = vsel %vm617, %v614, %v623
  %v625 = vpack.c.bf16 %v624, %v624
  %v627 = vsel %vm473, %v625, 0
  %629 = vmatpush.bf16.msra.mxu0 0
  %630 = vmatpush.bf16.msra.mxu0 0
  %631 = vmatpush.bf16.msra.mxu0 0
  %632 = vmatpush.bf16.msra.mxu0 0
  %633 = vmatpush.bf16.msra.mxu0 0
  %634 = vmatpush.bf16.msra.mxu0 0
  %635 = vmatpush.bf16.msra.mxu0 0
  %636 = vmatpush.bf16.msra.mxu0 %v471
  %637 = vmatmul.bf16.gmra.mxu0 %v627
  %v638 = vpop.f32.mrf.mxu0
  %v639 = vadd.f32 %v465, %v638
  %v640 = vpop.f32.mrf.mxu0
  %641 = vdwg.mxu0
  %v642 = vadd.f32 %v490, %v639
  %v643 = vld [vmem:[%s0] sm:$0x2a]
  %v644 = vld [vmem:[%s0 + $0x6] sm:$0x2a]
  %646 = vst [vmem:[#allocation1] ss:$4 sm:$0xff] %v643
  %v647 = vld.sshfl [vmem:[#allocation1] sm:$0xff pattern:$0x73625140]
  %v649 = vld.sshfl [vmem:[#allocation1 + $0x8] sm:$0xff pattern:$0x73625140]
  %v651 = vld.sshfl [vmem:[#allocation1 + $0x10] sm:$0xff pattern:$0x73625140]
  %s654 = scalar_lea.vmem [#allocation1], 32
  %655 = vst [vmem:[%s654] ss:$4 sm:$0xff] %v644
  %v656 = vld.sshfl [vmem:[#allocation1 + $0x20] sm:$0xff pattern:$0x73625140]
  %v658 = vld.sshfl [vmem:[#allocation1 + $0x28] sm:$0xff pattern:$0x73625140]
  %v660 = vld.sshfl [vmem:[#allocation1 + $0x30] sm:$0xff pattern:$0x73625140]
  %v662 = vunpack.c.l.b16 %v647
  %v663 = vunpack.c.l.b16 %v649
  %v664 = vunpack.c.l.b16 %v651
  %v665 = vunpack.c.l.b16 %v656
  %v666 = vunpack.c.l.b16 %v658
  %v667 = vunpack.c.l.b16 %v660
  %v668 = vrot.slane %v662, 2
  %v669 = vrot.slane %v665, 1
  %v670 = vsel %vm142, %v669, %v668
  %v671 = vrot.slane %v663, 2
  %v672 = vrot.slane %v666, 1
  %v673 = vsel %vm142, %v672, %v671
  %v674 = vrot.slane %v664, 2
  %v675 = vrot.slane %v667, 1
  %v676 = vsel %vm142, %v675, %v674
  %v677 = vpack.c.b16 %v670, %v670
  %v678 = vpack.c.b16 %v673, %v673
  %v679 = vpack.c.b16 %v676, %v676
  %683 = vmatpush.bf16.msra.mxu0 %v257
  %684 = vmatpush.bf16.msra.mxu0 %v256
  %685 = vmatpush.bf16.msra.mxu0 %v255
  %686 = vmatpush.bf16.msra.mxu0 %v254
  %687 = vmatpush.bf16.msra.mxu0 %v253
  %688 = vmatpush.bf16.msra.mxu0 %v252
  %689 = vmatpush.bf16.msra.mxu0 %v251
  %690 = vmatpush.bf16.msra.mxu0 %v250
  %691 = vmatmul.bf16.gmra.mxu0 %v677
  %v692 = vpop.f32.mrf.mxu0
  %v693 = vadd.f32 %v116, %v692
  %v694 = vpop.f32.mrf.mxu0
  %695 = vdwg.mxu0
  %696 = vmatpush.bf16.msra.mxu0 %v265
  %697 = vmatpush.bf16.msra.mxu0 %v264
  %698 = vmatpush.bf16.msra.mxu0 %v263
  %699 = vmatpush.bf16.msra.mxu0 %v262
  %700 = vmatpush.bf16.msra.mxu0 %v261
  %701 = vmatpush.bf16.msra.mxu0 %v260
  %702 = vmatpush.bf16.msra.mxu0 %v259
  %703 = vmatpush.bf16.msra.mxu0 %v258
  %704 = vmatmul.bf16.gmra.mxu0 %v678
  %v705 = vpop.f32.mrf.mxu0
  %v706 = vadd.f32 %v693, %v705
  %v707 = vpop.f32.mrf.mxu0
  %708 = vdwg.mxu0
  %709 = vmatpush.bf16.msra.mxu0 %v273
  %710 = vmatpush.bf16.msra.mxu0 %v272
  %711 = vmatpush.bf16.msra.mxu0 %v271
  %712 = vmatpush.bf16.msra.mxu0 %v270
  %713 = vmatpush.bf16.msra.mxu0 %v269
  %714 = vmatpush.bf16.msra.mxu0 %v268
  %715 = vmatpush.bf16.msra.mxu0 %v267
  %716 = vmatpush.bf16.msra.mxu0 %v266
  %717 = vmatmul.bf16.gmra.mxu0 %v679
  %v718 = vpop.f32.mrf.mxu0
  %v719 = vadd.f32 %v706, %v718
  %v720 = vpop.f32.mrf.mxu0
  %721 = vdwg.mxu0
  %vm722 = vcmp.gt.f32.partialorder %v719, 0.0
  %v723 = vmin.f32 %v719, 0.0
  %v724 = vmul.f32 %v723, %v345
  %v725 = vmul.f32 %v724, 1.442695
  %v726 = vpow.pop %v725
  %v727 = vsub.f32 %v726, 1.0
  %v728 = vmul.f32 %v727, 0.1
  %v729 = vsel %vm722, %v719, %v728
  %v730 = vpack.c.bf16 %v729, %v729
  %v732 = vsel %vm389, %v730, 0
  %734 = vmatpush.bf16.msra.mxu0 0
  %735 = vmatpush.bf16.msra.mxu0 0
  %736 = vmatpush.bf16.msra.mxu0 0
  %737 = vmatpush.bf16.msra.mxu0 0
  %738 = vmatpush.bf16.msra.mxu0 %v384
  %739 = vmatpush.bf16.msra.mxu0 %v383
  %740 = vmatpush.bf16.msra.mxu0 %v382
  %741 = vmatpush.bf16.msra.mxu0 %v381
  %742 = vmatmul.bf16.gmra.mxu0 %v732
  %v743 = vpop.f32.mrf.mxu0
  %v744 = vadd.f32 %v363, %v743
  %v745 = vpop.f32.mrf.mxu0
  %746 = vdwg.mxu0
  %vm747 = vcmp.gt.f32.partialorder %v744, 0.0
  %v748 = vmin.f32 %v744, 0.0
  %v749 = vmul.f32 %v748, %v345
  %v750 = vmul.f32 %v749, 1.442695
  %v751 = vpow.pop %v750
  %v752 = vsub.f32 %v751, 1.0
  %v753 = vmul.f32 %v752, 0.1
  %v754 = vsel %vm747, %v744, %v753
  %v755 = vpack.c.bf16 %v754, %v754
  %v757 = vsel %vm435, %v755, 0
  %759 = vmatpush.bf16.msra.mxu0 0
  %760 = vmatpush.bf16.msra.mxu0 0
  %761 = vmatpush.bf16.msra.mxu0 0
  %762 = vmatpush.bf16.msra.mxu0 0
  %763 = vmatpush.bf16.msra.mxu0 0
  %764 = vmatpush.bf16.msra.mxu0 0
  %765 = vmatpush.bf16.msra.mxu0 %v432
  %766 = vmatpush.bf16.msra.mxu0 %v431
  %767 = vmatmul.bf16.gmra.mxu0 %v757
  %v768 = vpop.f32.mrf.mxu0
  %v769 = vadd.f32 %v421, %v768
  %v770 = vpop.f32.mrf.mxu0
  %771 = vdwg.mxu0
  %vm772 = vcmp.gt.f32.partialorder %v769, 0.0
  %v773 = vmin.f32 %v769, 0.0
  %v774 = vmul.f32 %v773, %v345
  %v775 = vmul.f32 %v774, 1.442695
  %v776 = vpow.pop %v775
  %v777 = vsub.f32 %v776, 1.0
  %v778 = vmul.f32 %v777, 0.1
  %v779 = vsel %vm772, %v769, %v778
  %v780 = vpack.c.bf16 %v779, %v779
  %v782 = vsel %vm473, %v780, 0
  %784 = vmatpush.bf16.msra.mxu0 0
  %785 = vmatpush.bf16.msra.mxu0 0
  %786 = vmatpush.bf16.msra.mxu0 0
  %787 = vmatpush.bf16.msra.mxu0 0
  %788 = vmatpush.bf16.msra.mxu0 0
  %789 = vmatpush.bf16.msra.mxu0 0
  %790 = vmatpush.bf16.msra.mxu0 0
  %791 = vmatpush.bf16.msra.mxu0 %v471
  %792 = vmatmul.bf16.gmra.mxu0 %v782
  %v793 = vpop.f32.mrf.mxu0
  %v794 = vadd.f32 %v465, %v793
  %v795 = vpop.f32.mrf.mxu0
  %796 = vdwg.mxu0
  %v797 = vadd.f32 %v642, %v794
  %v798 = vld [vmem:[%s0] sm:$0x2a]
  %v799 = vld [vmem:[%s0 + $0x6] sm:$0x2a]
  %801 = vst [vmem:[#allocation1] ss:$4 sm:$0xff] %v798
  %v802 = vld.sshfl [vmem:[#allocation1] sm:$0xff pattern:$0x73625140]
  %v804 = vld.sshfl [vmem:[#allocation1 + $0x8] sm:$0xff pattern:$0x73625140]
  %v806 = vld.sshfl [vmem:[#allocation1 + $0x10] sm:$0xff pattern:$0x73625140]
  %s809 = scalar_lea.vmem [#allocation1], 32
  %810 = vst [vmem:[%s809] ss:$4 sm:$0xff] %v799
  %v811 = vld.sshfl [vmem:[#allocation1 + $0x20] sm:$0xff pattern:$0x73625140]
  %v813 = vld.sshfl [vmem:[#allocation1 + $0x28] sm:$0xff pattern:$0x73625140]
  %v815 = vld.sshfl [vmem:[#allocation1 + $0x30] sm:$0xff pattern:$0x73625140]
  %v817 = vunpack.c.l.b16 %v802
  %v818 = vunpack.c.l.b16 %v804
  %v819 = vunpack.c.l.b16 %v806
  %v820 = vunpack.c.l.b16 %v811
  %v821 = vunpack.c.l.b16 %v813
  %v822 = vunpack.c.l.b16 %v815
  %v823 = vrot.slane %v817, 3
  %v824 = vrot.slane %v820, 2
  %v825 = vsel %vm142, %v824, %v823
  %v826 = vrot.slane %v818, 3
  %v827 = vrot.slane %v821, 2
  %v828 = vsel %vm142, %v827, %v826
  %v829 = vrot.slane %v819, 3
  %v830 = vrot.slane %v822, 2
  %v831 = vsel %vm142, %v830, %v829
  %v832 = vpack.c.b16 %v825, %v825
  %v833 = vpack.c.b16 %v828, %v828
  %v834 = vpack.c.b16 %v831, %v831
  %838 = vmatpush.bf16.msra.mxu0 %v257
  %839 = vmatpush.bf16.msra.mxu0 %v256
  %840 = vmatpush.bf16.msra.mxu0 %v255
  %841 = vmatpush.bf16.msra.mxu0 %v254
  %842 = vmatpush.bf16.msra.mxu0 %v253
  %843 = vmatpush.bf16.msra.mxu0 %v252
  %844 = vmatpush.bf16.msra.mxu0 %v251
  %845 = vmatpush.bf16.msra.mxu0 %v250
  %846 = vmatmul.bf16.gmra.mxu0 %v832
  %v847 = vpop.f32.mrf.mxu0
  %v848 = vadd.f32 %v116, %v847
  %v849 = vpop.f32.mrf.mxu0
  %850 = vdwg.mxu0
  %851 = vmatpush.bf16.msra.mxu0 %v265
  %852 = vmatpush.bf16.msra.mxu0 %v264
  %853 = vmatpush.bf16.msra.mxu0 %v263
  %854 = vmatpush.bf16.msra.mxu0 %v262
  %855 = vmatpush.bf16.msra.mxu0 %v261
  %856 = vmatpush.bf16.msra.mxu0 %v260
  %857 = vmatpush.bf16.msra.mxu0 %v259
  %858 = vmatpush.bf16.msra.mxu0 %v258
  %859 = vmatmul.bf16.gmra.mxu0 %v833
  %v860 = vpop.f32.mrf.mxu0
  %v861 = vadd.f32 %v848, %v860
  %v862 = vpop.f32.mrf.mxu0
  %863 = vdwg.mxu0
  %864 = vmatpush.bf16.msra.mxu0 %v273
  %865 = vmatpush.bf16.msra.mxu0 %v272
  %866 = vmatpush.bf16.msra.mxu0 %v271
  %867 = vmatpush.bf16.msra.mxu0 %v270
  %868 = vmatpush.bf16.msra.mxu0 %v269
  %869 = vmatpush.bf16.msra.mxu0 %v268
  %870 = vmatpush.bf16.msra.mxu0 %v267
  %871 = vmatpush.bf16.msra.mxu0 %v266
  %872 = vmatmul.bf16.gmra.mxu0 %v834
  %v873 = vpop.f32.mrf.mxu0
  %v874 = vadd.f32 %v861, %v873
  %v875 = vpop.f32.mrf.mxu0
  %876 = vdwg.mxu0
  %vm877 = vcmp.gt.f32.partialorder %v874, 0.0
  %v878 = vmin.f32 %v874, 0.0
  %v879 = vmul.f32 %v878, %v345
  %v880 = vmul.f32 %v879, 1.442695
  %v881 = vpow.pop %v880
  %v882 = vsub.f32 %v881, 1.0
  %v883 = vmul.f32 %v882, 0.1
  %v884 = vsel %vm877, %v874, %v883
  %v885 = vpack.c.bf16 %v884, %v884
  %v887 = vsel %vm389, %v885, 0
  %889 = vmatpush.bf16.msra.mxu0 0
  %890 = vmatpush.bf16.msra.mxu0 0
  %891 = vmatpush.bf16.msra.mxu0 0
  %892 = vmatpush.bf16.msra.mxu0 0
  %893 = vmatpush.bf16.msra.mxu0 %v384
  %894 = vmatpush.bf16.msra.mxu0 %v383
  %895 = vmatpush.bf16.msra.mxu0 %v382
  %896 = vmatpush.bf16.msra.mxu0 %v381
  %897 = vmatmul.bf16.gmra.mxu0 %v887
  %v898 = vpop.f32.mrf.mxu0
  %v899 = vadd.f32 %v363, %v898
  %v900 = vpop.f32.mrf.mxu0
  %901 = vdwg.mxu0
  %vm902 = vcmp.gt.f32.partialorder %v899, 0.0
  %v903 = vmin.f32 %v899, 0.0
  %v904 = vmul.f32 %v903, %v345
  %v905 = vmul.f32 %v904, 1.442695
  %v906 = vpow.pop %v905
  %v907 = vsub.f32 %v906, 1.0
  %v908 = vmul.f32 %v907, 0.1
  %v909 = vsel %vm902, %v899, %v908
  %v910 = vpack.c.bf16 %v909, %v909
  %v912 = vsel %vm435, %v910, 0
  %914 = vmatpush.bf16.msra.mxu0 0
  %915 = vmatpush.bf16.msra.mxu0 0
  %916 = vmatpush.bf16.msra.mxu0 0
  %917 = vmatpush.bf16.msra.mxu0 0
  %918 = vmatpush.bf16.msra.mxu0 0
  %919 = vmatpush.bf16.msra.mxu0 0
  %920 = vmatpush.bf16.msra.mxu0 %v432
  %921 = vmatpush.bf16.msra.mxu0 %v431
  %922 = vmatmul.bf16.gmra.mxu0 %v912
  %v923 = vpop.f32.mrf.mxu0
  %v924 = vadd.f32 %v421, %v923
  %v925 = vpop.f32.mrf.mxu0
  %926 = vdwg.mxu0
  %vm927 = vcmp.gt.f32.partialorder %v924, 0.0
  %v928 = vmin.f32 %v924, 0.0
  %v929 = vmul.f32 %v928, %v345
  %v930 = vmul.f32 %v929, 1.442695
  %v931 = vpow.pop %v930
  %v932 = vsub.f32 %v931, 1.0
  %v933 = vmul.f32 %v932, 0.1
  %v934 = vsel %vm927, %v924, %v933
  %v935 = vpack.c.bf16 %v934, %v934
  %v937 = vsel %vm473, %v935, 0
  %939 = vmatpush.bf16.msra.mxu0 0
  %940 = vmatpush.bf16.msra.mxu0 0
  %941 = vmatpush.bf16.msra.mxu0 0
  %942 = vmatpush.bf16.msra.mxu0 0
  %943 = vmatpush.bf16.msra.mxu0 0
  %944 = vmatpush.bf16.msra.mxu0 0
  %945 = vmatpush.bf16.msra.mxu0 0
  %946 = vmatpush.bf16.msra.mxu0 %v471
  %947 = vmatmul.bf16.gmra.mxu0 %v937
  %v948 = vpop.f32.mrf.mxu0
  %v949 = vadd.f32 %v465, %v948
  %v950 = vpop.f32.mrf.mxu0
  %951 = vdwg.mxu0
  %v952 = vadd.f32 %v797, %v949
  %v953 = vld [vmem:[%s1] sm:$0x11]
  %v954 = vld [vmem:[%s1 + $0x8] sm:$0x11]
  %v955 = vld [vmem:[%s1 + $0x10] sm:$0x11]
  %v956 = vld [vmem:[%s1 + $0x18] sm:$0x11]
  %v957 = vld [vmem:[%s1 + $0x20] sm:$0x11]
  %v958 = vld [vmem:[%s1 + $0x28] sm:$0x1]
  %v959 = vld [vmem:[%s1 + $0x2c] sm:$0x11]
  %v960 = vld [vmem:[%s1 + $0x34] sm:$0x11]
  %v961 = vld [vmem:[%s1 + $0x3c] sm:$0x11]
  %v962 = vld [vmem:[%s1 + $0x44] sm:$0x11]
  %v963 = vld [vmem:[%s1 + $0x4c] sm:$0x11]
  %v964 = vld [vmem:[%s1 + $0x54] sm:$0x1]
  %v965 = vld [vmem:[%s10] sm:$0xf]
  %v966 = vld [vmem:[%s10 + $0x4] sm:$0xf]
  %v967 = vld [vmem:[%s10 + $0x8] sm:$0xf]
  %v968 = vld [vmem:[%s10 + $0xc] sm:$0xf]
  %v969 = vld [vmem:[%s10 + $0x10] sm:$0xf]
  %v970 = vld [vmem:[%s10 + $0x14] sm:$0xf]
  %v971 = vld [vmem:[%s10 + $0x18] sm:$0xf]
  %v972 = vld [vmem:[%s10 + $0x1c] sm:$0xf]
  %v973 = vld [vmem:[%s10 + $0x20] sm:$0xf]
  %v974 = vld [vmem:[%s10 + $0x24] sm:$0xf]
  %v975 = vld [vmem:[%s10 + $0x28] sm:$0xf]
  %v976 = vld [vmem:[%s10 + $0x2c] sm:$0xf]
  %v977 = vld [vmem:[%s10 + $0x30] sm:$0xf]
  %v978 = vld [vmem:[%s10 + $0x34] sm:$0xf]
  %v979 = vld [vmem:[%s10 + $0x38] sm:$0xf]
  %v980 = vld [vmem:[%s10 + $0x3c] sm:$0xf]
  %v981 = vld [vmem:[%s10 + $0x40] sm:$0xf]
  %v982 = vld [vmem:[%s10 + $0x44] sm:$0xf]
  %v983 = vld [vmem:[%s10 + $0x48] sm:$0xf]
  %v984 = vld [vmem:[%s10 + $0x4c] sm:$0xf]
  %v985 = vld [vmem:[%s10 + $0x50] sm:$0xf]
  %v986 = vld [vmem:[%s10 + $0x54] sm:$0xf]
  %v987 = vld [vmem:[%s10 + $0x58] sm:$0xf]
  %v988 = vld [vmem:[%s10 + $0x5c] sm:$0xf]
  %v989 = vld [vmem:[%s10 + $0x60] sm:$0xf]
  %v990 = vld [vmem:[%s10 + $0x64] sm:$0xf]
  %v991 = vld [vmem:[%s10 + $0x68] sm:$0xf]
  %v992 = vld [vmem:[%s10 + $0x6c] sm:$0xf]
  %v993 = vld [vmem:[%s10 + $0x70] sm:$0xf]
  %v994 = vld [vmem:[%s10 + $0x74] sm:$0xf]
  %v995 = vld [vmem:[%s10 + $0x78] sm:$0xf]
  %v996 = vld [vmem:[%s10 + $0x7c] sm:$0xf]
  %v997 = vld [vmem:[%s10 + $0x80] sm:$0xf]
  %v998 = vld [vmem:[%s10 + $0x84] sm:$0xf]
  %v999 = vld [vmem:[%s10 + $0x88] sm:$0xf]
  %v1000 = vld [vmem:[%s10 + $0x8c] sm:$0xf]
  %v1001 = vld [vmem:[%s10 + $0x90] sm:$0xf]
  %v1002 = vld [vmem:[%s10 + $0x94] sm:$0xf]
  %v1003 = vld [vmem:[%s10 + $0x98] sm:$0xf]
  %v1004 = vld [vmem:[%s10 + $0x9c] sm:$0xf]
  %v1005 = vld [vmem:[%s10 + $0xa0] sm:$0xf]
  %v1006 = vld [vmem:[%s10 + $0xa4] sm:$0xf]
  %v1007 = vld [vmem:[%s10 + $0xa8] sm:$0xf]
  %v1008 = vld [vmem:[%s10 + $0xac] sm:$0xf]
  %v1009 = vld [vmem:[%s10 + $0xb0] sm:$0xf]
  %v1010 = vld [vmem:[%s10 + $0xb4] sm:$0xf]
  %v1011 = vld [vmem:[%s10 + $0xb8] sm:$0xf]
  %v1012 = vld [vmem:[%s10 + $0xbc] sm:$0xf]
  %v1013 = vld [vmem:[%s10 + $0xc0] sm:$0xf]
  %v1014 = vld [vmem:[%s10 + $0xc4] sm:$0xf]
  %v1015 = vld [vmem:[%s10 + $0xc8] sm:$0xf]
  %v1016 = vld [vmem:[%s10 + $0xcc] sm:$0xf]
  %v1017 = vld [vmem:[%s10 + $0xd0] sm:$0xf]
  %v1018 = vld [vmem:[%s10 + $0xd4] sm:$0xf]
  %v1019 = vld [vmem:[%s10 + $0xd8] sm:$0xf]
  %v1020 = vld [vmem:[%s10 + $0xdc] sm:$0xf]
  %v1021 = vld [vmem:[%s10 + $0xe0] sm:$0xf]
  %v1022 = vld [vmem:[%s10 + $0xe4] sm:$0xf]
  %v1023 = vld [vmem:[%s10 + $0xe8] sm:$0xf]
  %v1024 = vld [vmem:[%s10 + $0xec] sm:$0xf]
  %v1025 = vld [vmem:[%s10 + $0xf0] sm:$0xf]
  %v1026 = vld [vmem:[%s10 + $0xf4] sm:$0xf]
  %v1027 = vld [vmem:[%s10 + $0xf8] sm:$0xf]
  %v1028 = vld [vmem:[%s10 + $0xfc] sm:$0xf]
  %v1029 = vld [vmem:[%s10 + $0x100] sm:$0xf]
  %v1030 = vld [vmem:[%s10 + $0x104] sm:$0xf]
  %v1031 = vld [vmem:[%s10 + $0x108] sm:$0xf]
  %v1032 = vld [vmem:[%s10 + $0x10c] sm:$0xf]
  %v1033 = vld [vmem:[%s10 + $0x110] sm:$0xf]
  %v1034 = vld [vmem:[%s10 + $0x114] sm:$0xf]
  %v1035 = vld [vmem:[%s10 + $0x118] sm:$0xf]
  %v1036 = vld [vmem:[%s10 + $0x11c] sm:$0xf]
  %v1037 = vld [vmem:[%s10 + $0x120] sm:$0xf]
  %v1038 = vld [vmem:[%s10 + $0x124] sm:$0xf]
  %v1039 = vld [vmem:[%s10 + $0x128] sm:$0xf]
  %v1040 = vld [vmem:[%s10 + $0x12c] sm:$0xf]
  %v1041 = vld [vmem:[%s10 + $0x130] sm:$0xf]
  %v1042 = vld [vmem:[%s10 + $0x134] sm:$0xf]
  %v1043 = vld [vmem:[%s10 + $0x138] sm:$0xf]
  %v1044 = vld [vmem:[%s10 + $0x13c] sm:$0xf]
  %v1045 = vld [vmem:[%s10 + $0x140] sm:$0xf]
  %v1046 = vld [vmem:[%s10 + $0x144] sm:$0xf]
  %v1047 = vld [vmem:[%s10 + $0x148] sm:$0xf]
  %v1048 = vld [vmem:[%s10 + $0x14c] sm:$0xf]
  %v1049 = vld [vmem:[%s10 + $0x150] sm:$0xf]
  %v1050 = vld [vmem:[%s10 + $0x154] sm:$0xf]
  %v1051 = vld [vmem:[%s10 + $0x158] sm:$0xf]
  %v1052 = vld [vmem:[%s10 + $0x15c] sm:$0xf]
  %v1053 = vld [vmem:[%s10 + $0x160] sm:$0xf]
  %v1054 = vld [vmem:[%s10 + $0x164] sm:$0xf]
  %v1055 = vld [vmem:[%s10 + $0x168] sm:$0xf]
  %v1056 = vld [vmem:[%s10 + $0x16c] sm:$0xf]
  %v1057 = vld [vmem:[%s10 + $0x170] sm:$0xf]
  %v1058 = vld [vmem:[%s10 + $0x174] sm:$0xf]
  %v1059 = vld [vmem:[%s10 + $0x178] sm:$0xf]
  %v1060 = vld [vmem:[%s10 + $0x17c] sm:$0xf]
  %v1061 = vld [vmem:[%s10 + $0x180] sm:$0xf]
  %v1062 = vld [vmem:[%s10 + $0x184] sm:$0xf]
  %v1063 = vld [vmem:[%s10 + $0x188] sm:$0xf]
  %v1064 = vld [vmem:[%s10 + $0x18c] sm:$0xf]
  %v1065 = vld [vmem:[%s10 + $0x190] sm:$0xf]
  %v1066 = vld [vmem:[%s10 + $0x194] sm:$0xf]
  %v1067 = vld [vmem:[%s10 + $0x198] sm:$0xf]
  %v1068 = vld [vmem:[%s10 + $0x19c] sm:$0xf]
  %v1069 = vld [vmem:[%s10 + $0x1a0] sm:$0xf]
  %v1070 = vld [vmem:[%s10 + $0x1a4] sm:$0xf]
  %v1071 = vld [vmem:[%s10 + $0x1a8] sm:$0xf]
  %v1072 = vld [vmem:[%s10 + $0x1ac] sm:$0xf]
  %v1073 = vld [vmem:[%s10 + $0x1b0] sm:$0xf]
  %v1074 = vld [vmem:[%s10 + $0x1b4] sm:$0xf]
  %v1075 = vld [vmem:[%s10 + $0x1b8] sm:$0xf]
  %v1076 = vld [vmem:[%s10 + $0x1bc] sm:$0xf]
  %v1077 = vld [vmem:[%s10 + $0x1c0] sm:$0xf]
  %v1078 = vld [vmem:[%s10 + $0x1c4] sm:$0xf]
  %v1079 = vld [vmem:[%s10 + $0x1c8] sm:$0xf]
  %v1080 = vld [vmem:[%s10 + $0x1cc] sm:$0xf]
  %v1081 = vld [vmem:[%s10 + $0x1d0] sm:$0xf]
  %v1082 = vld [vmem:[%s10 + $0x1d4] sm:$0xf]
  %v1083 = vld [vmem:[%s10 + $0x1d8] sm:$0xf]
  %v1084 = vld [vmem:[%s10 + $0x1dc] sm:$0xf]
  %v1085 = vld [vmem:[%s10 + $0x1e0] sm:$0xf]
  %v1086 = vld [vmem:[%s10 + $0x1e4] sm:$0xf]
  %v1087 = vld [vmem:[%s10 + $0x1e8] sm:$0xf]
  %v1088 = vld [vmem:[%s10 + $0x1ec] sm:$0xf]
  %v1089 = vld [vmem:[%s10 + $0x1f0] sm:$0xf]
  %v1090 = vld [vmem:[%s10 + $0x1f4] sm:$0xf]
  %v1091 = vld [vmem:[%s10 + $0x1f8] sm:$0xf]
  %v1092 = vld [vmem:[%s10 + $0x1fc] sm:$0xf]
  %v1093 = vld [vmem:[%s10 + $0x200] sm:$0xf]
  %v1094 = vld [vmem:[%s10 + $0x204] sm:$0xf]
  %v1095 = vld [vmem:[%s10 + $0x208] sm:$0xf]
  %v1096 = vld [vmem:[%s10 + $0x20c] sm:$0xf]
  %v1097 = vld [vmem:[%s10 + $0x210] sm:$0xf]
  %v1098 = vld [vmem:[%s10 + $0x214] sm:$0xf]
  %v1099 = vld [vmem:[%s10 + $0x218] sm:$0xf]
  %v1100 = vld [vmem:[%s10 + $0x21c] sm:$0xf]
  %v1101 = vld [vmem:[%s10 + $0x220] sm:$0xf]
  %v1102 = vld [vmem:[%s10 + $0x224] sm:$0xf]
  %v1103 = vld [vmem:[%s10 + $0x228] sm:$0xf]
  %v1104 = vld [vmem:[%s10 + $0x22c] sm:$0xf]
  %v1105 = vld [vmem:[%s10 + $0x230] sm:$0xf]
  %v1106 = vld [vmem:[%s10 + $0x234] sm:$0xf]
  %v1107 = vld [vmem:[%s10 + $0x238] sm:$0xf]
  %v1108 = vld [vmem:[%s10 + $0x23c] sm:$0xf]
  %v1109 = vld [vmem:[%s10 + $0x240] sm:$0xf]
  %v1110 = vld [vmem:[%s10 + $0x244] sm:$0xf]
  %v1111 = vld [vmem:[%s10 + $0x248] sm:$0xf]
  %v1112 = vld [vmem:[%s10 + $0x24c] sm:$0xf]
  %v1113 = vld [vmem:[%s10 + $0x250] sm:$0xf]
  %v1114 = vld [vmem:[%s10 + $0x254] sm:$0xf]
  %v1115 = vld [vmem:[%s10 + $0x258] sm:$0xf]
  %v1116 = vld [vmem:[%s10 + $0x25c] sm:$0xf]
  %v1117 = vld [vmem:[%s10 + $0x260] sm:$0xf]
  %v1118 = vld [vmem:[%s10 + $0x264] sm:$0xf]
  %v1119 = vld [vmem:[%s10 + $0x268] sm:$0xf]
  %v1120 = vld [vmem:[%s10 + $0x26c] sm:$0xf]
  %v1121 = vld [vmem:[%s10 + $0x270] sm:$0xf]
  %v1122 = vld [vmem:[%s10 + $0x274] sm:$0xf]
  %v1123 = vld [vmem:[%s10 + $0x278] sm:$0xf]
  %v1124 = vld [vmem:[%s10 + $0x27c] sm:$0xf]
  %v1125 = vld [vmem:[%s10 + $0x280] sm:$0xf]
  %v1126 = vld [vmem:[%s10 + $0x284] sm:$0xf]
  %v1127 = vld [vmem:[%s10 + $0x288] sm:$0xf]
  %v1128 = vld [vmem:[%s10 + $0x28c] sm:$0xf]
  %v1129 = vld [vmem:[%s10 + $0x290] sm:$0xf]
  %v1130 = vld [vmem:[%s10 + $0x294] sm:$0xf]
  %v1131 = vld [vmem:[%s10 + $0x298] sm:$0xf]
  %v1132 = vld [vmem:[%s10 + $0x29c] sm:$0xf]
  %v1133 = vld [vmem:[%s10 + $0x2a0] sm:$0xf]
  %v1134 = vld [vmem:[%s10 + $0x2a4] sm:$0xf]
  %v1135 = vld [vmem:[%s10 + $0x2a8] sm:$0xf]
  %v1136 = vld [vmem:[%s10 + $0x2ac] sm:$0xf]
  %v1137 = vld [vmem:[%s10 + $0x2b0] sm:$0xf]
  %v1138 = vld [vmem:[%s10 + $0x2b4] sm:$0xf]
  %v1139 = vld [vmem:[%s10 + $0x2b8] sm:$0xf]
  %v1140 = vld [vmem:[%s10 + $0x2bc] sm:$0xf]
  %v1141 = vld [vmem:[%s11] sm:$0x1]
  %v1143 = vperm.slane %v1141, 0
  %v1157 = vunpack.c.l.b16 %v953
  %v1158 = vunpack.c.h.b16 %v953
  %v1159 = vunpack.c.l.b16 %v954
  %v1160 = vunpack.c.h.b16 %v954
  %v1161 = vunpack.c.l.b16 %v955
  %v1162 = vunpack.c.h.b16 %v955
  %v1163 = vunpack.c.l.b16 %v956
  %v1164 = vunpack.c.h.b16 %v956
  %v1165 = vunpack.c.l.b16 %v957
  %v1166 = vunpack.c.h.b16 %v957
  %v1167 = vunpack.c.l.b16 %v958
  %v1168 = vunpack.c.l.b16 %v959
  %v1169 = vunpack.c.h.b16 %v959
  %v1170 = vunpack.c.l.b16 %v960
  %v1171 = vunpack.c.h.b16 %v960
  %v1172 = vunpack.c.l.b16 %v961
  %v1173 = vunpack.c.h.b16 %v961
  %v1174 = vunpack.c.l.b16 %v962
  %v1175 = vunpack.c.h.b16 %v962
  %v1176 = vunpack.c.l.b16 %v963
  %v1177 = vunpack.c.h.b16 %v963
  %v1178 = vunpack.c.l.b16 %v964
  %v1179 = vpack.c.b16 %v1157, %v1157
  %v1180 = vpack.c.b16 %v1158, %v1158
  %v1181 = vpack.c.b16 %v1159, %v1159
  %v1182 = vpack.c.b16 %v1160, %v1160
  %v1183 = vpack.c.b16 %v1161, %v1161
  %v1184 = vpack.c.b16 %v1162, %v1162
  %v1185 = vpack.c.b16 %v1163, %v1163
  %v1186 = vpack.c.b16 %v1164, %v1164
  %v1187 = vpack.c.b16 %v1165, %v1165
  %v1188 = vpack.c.b16 %v1166, %v1166
  %v1189 = vpack.c.b16 %v1167, %v1167
  %v1190 = vpack.c.b16 %v1168, %v1168
  %v1191 = vpack.c.b16 %v1169, %v1169
  %v1192 = vpack.c.b16 %v1170, %v1170
  %v1193 = vpack.c.b16 %v1171, %v1171
  %v1194 = vpack.c.b16 %v1172, %v1172
  %v1195 = vpack.c.b16 %v1173, %v1173
  %v1196 = vpack.c.b16 %v1174, %v1174
  %v1197 = vpack.c.b16 %v1175, %v1175
  %v1198 = vpack.c.b16 %v1176, %v1176
  %v1199 = vpack.c.b16 %v1177, %v1177
  %v1200 = vpack.c.b16 %v1178, %v1178
  %v1201 = vunpack.c.l.b16 %v1179
  %v1202 = vunpack.c.l.b16 %v1180
  %v1203 = vunpack.c.l.b16 %v1181
  %v1204 = vunpack.c.l.b16 %v1182
  %v1205 = vunpack.c.l.b16 %v1183
  %v1206 = vunpack.c.l.b16 %v1184
  %v1207 = vunpack.c.l.b16 %v1185
  %v1208 = vunpack.c.l.b16 %v1186
  %v1209 = vunpack.c.l.b16 %v1187
  %v1210 = vunpack.c.l.b16 %v1188
  %v1211 = vunpack.c.l.b16 %v1189
  %v1212 = vunpack.c.l.b16 %v1190
  %v1213 = vunpack.c.l.b16 %v1191
  %v1214 = vunpack.c.l.b16 %v1192
  %v1215 = vunpack.c.l.b16 %v1193
  %v1216 = vunpack.c.l.b16 %v1194
  %v1217 = vunpack.c.l.b16 %v1195
  %v1218 = vunpack.c.l.b16 %v1196
  %v1219 = vunpack.c.l.b16 %v1197
  %v1220 = vunpack.c.l.b16 %v1198
  %v1221 = vunpack.c.l.b16 %v1199
  %v1222 = vunpack.c.l.b16 %v1200
  %v1223 = vrot.slane %v1212, 7
  %v1224 = vsel %vm142, %v1223, %v1201
  %v1225 = vrot.slane %v1213, 7
  %v1226 = vsel %vm142, %v1225, %v1202
  %v1227 = vrot.slane %v1214, 7
  %v1228 = vsel %vm142, %v1227, %v1203
  %v1229 = vrot.slane %v1215, 7
  %v1230 = vsel %vm142, %v1229, %v1204
  %v1231 = vrot.slane %v1216, 7
  %v1232 = vsel %vm142, %v1231, %v1205
  %v1233 = vrot.slane %v1217, 7
  %v1234 = vsel %vm142, %v1233, %v1206
  %v1235 = vrot.slane %v1218, 7
  %v1236 = vsel %vm142, %v1235, %v1207
  %v1237 = vrot.slane %v1219, 7
  %v1238 = vsel %vm142, %v1237, %v1208
  %v1239 = vrot.slane %v1220, 7
  %v1240 = vsel %vm142, %v1239, %v1209
  %v1241 = vrot.slane %v1221, 7
  %v1242 = vsel %vm142, %v1241, %v1210
  %v1243 = vrot.slane %v1222, 7
  %v1244 = vsel %vm142, %v1243, %v1211
  %v1245 = vpack.c.b16 %v1224, %v1224
  %v1246 = vpack.c.b16 %v1226, %v1226
  %v1247 = vpack.c.b16 %v1228, %v1228
  %v1248 = vpack.c.b16 %v1230, %v1230
  %v1249 = vpack.c.b16 %v1232, %v1232
  %v1250 = vpack.c.b16 %v1234, %v1234
  %v1251 = vpack.c.b16 %v1236, %v1236
  %v1252 = vpack.c.b16 %v1238, %v1238
  %v1253 = vpack.c.b16 %v1240, %v1240
  %v1254 = vpack.c.b16 %v1242, %v1242
  %v1255 = vpack.c.b16 %v1244, %v1244
  %v1443 = vunpack.c.l.b16 %v965
  %v1444 = vunpack.c.l.b16 %v966
  %v1445 = vunpack.c.l.b16 %v967
  %v1446 = vunpack.c.l.b16 %v968
  %v1447 = vunpack.c.l.b16 %v969
  %v1448 = vunpack.c.l.b16 %v970
  %v1449 = vunpack.c.l.b16 %v971
  %v1450 = vunpack.c.l.b16 %v972
  %v1451 = vunpack.c.l.b16 %v973
  %v1452 = vunpack.c.l.b16 %v974
  %v1453 = vunpack.c.l.b16 %v975
  %v1454 = vunpack.c.l.b16 %v976
  %v1455 = vunpack.c.l.b16 %v977
  %v1456 = vunpack.c.l.b16 %v978
  %v1457 = vunpack.c.l.b16 %v979
  %v1458 = vunpack.c.l.b16 %v980
  %v1459 = vunpack.c.l.b16 %v981
  %v1460 = vunpack.c.l.b16 %v982
  %v1461 = vunpack.c.l.b16 %v983
  %v1462 = vunpack.c.l.b16 %v984
  %v1463 = vunpack.c.l.b16 %v985
  %v1464 = vunpack.c.l.b16 %v986
  %v1465 = vunpack.c.l.b16 %v987
  %v1466 = vunpack.c.l.b16 %v988
  %v1467 = vunpack.c.l.b16 %v989
  %v1468 = vunpack.c.l.b16 %v990
  %v1469 = vunpack.c.l.b16 %v991
  %v1470 = vunpack.c.l.b16 %v992
  %v1471 = vunpack.c.l.b16 %v993
  %v1472 = vunpack.c.l.b16 %v994
  %v1473 = vunpack.c.l.b16 %v995
  %v1474 = vunpack.c.l.b16 %v996
  %v1475 = vunpack.c.l.b16 %v997
  %v1476 = vunpack.c.l.b16 %v998
  %v1477 = vunpack.c.l.b16 %v999
  %v1478 = vunpack.c.l.b16 %v1000
  %v1479 = vunpack.c.l.b16 %v1001
  %v1480 = vunpack.c.l.b16 %v1002
  %v1481 = vunpack.c.l.b16 %v1003
  %v1482 = vunpack.c.l.b16 %v1004
  %v1483 = vunpack.c.l.b16 %v1005
  %v1484 = vunpack.c.l.b16 %v1006
  %v1485 = vunpack.c.l.b16 %v1007
  %v1486 = vunpack.c.l.b16 %v1008
  %v1487 = vunpack.c.l.b16 %v1009
  %v1488 = vunpack.c.l.b16 %v1010
  %v1489 = vunpack.c.l.b16 %v1011
  %v1490 = vunpack.c.l.b16 %v1012
  %v1491 = vunpack.c.l.b16 %v1013
  %v1492 = vunpack.c.l.b16 %v1014
  %v1493 = vunpack.c.l.b16 %v1015
  %v1494 = vunpack.c.l.b16 %v1016
  %v1495 = vunpack.c.l.b16 %v1017
  %v1496 = vunpack.c.l.b16 %v1018
  %v1497 = vunpack.c.l.b16 %v1019
  %v1498 = vunpack.c.l.b16 %v1020
  %v1499 = vunpack.c.l.b16 %v1021
  %v1500 = vunpack.c.l.b16 %v1022
  %v1501 = vunpack.c.l.b16 %v1023
  %v1502 = vunpack.c.l.b16 %v1024
  %v1503 = vunpack.c.l.b16 %v1025
  %v1504 = vunpack.c.l.b16 %v1026
  %v1505 = vunpack.c.l.b16 %v1027
  %v1506 = vunpack.c.l.b16 %v1028
  %v1507 = vunpack.c.l.b16 %v1029
  %v1508 = vunpack.c.l.b16 %v1030
  %v1509 = vunpack.c.l.b16 %v1031
  %v1510 = vunpack.c.l.b16 %v1032
  %v1511 = vunpack.c.l.b16 %v1033
  %v1512 = vunpack.c.l.b16 %v1034
  %v1513 = vunpack.c.l.b16 %v1035
  %v1514 = vunpack.c.l.b16 %v1036
  %v1515 = vunpack.c.l.b16 %v1037
  %v1516 = vunpack.c.l.b16 %v1038
  %v1517 = vunpack.c.l.b16 %v1039
  %v1518 = vunpack.c.l.b16 %v1040
  %v1519 = vunpack.c.l.b16 %v1041
  %v1520 = vunpack.c.l.b16 %v1042
  %v1521 = vunpack.c.l.b16 %v1043
  %v1522 = vunpack.c.l.b16 %v1044
  %v1523 = vunpack.c.l.b16 %v1045
  %v1524 = vunpack.c.l.b16 %v1046
  %v1525 = vunpack.c.l.b16 %v1047
  %v1526 = vunpack.c.l.b16 %v1048
  %v1527 = vunpack.c.l.b16 %v1049
  %v1528 = vunpack.c.l.b16 %v1050
  %v1529 = vunpack.c.l.b16 %v1051
  %v1530 = vunpack.c.l.b16 %v1052
  %v1531 = vunpack.c.l.b16 %v1053
  %v1532 = vunpack.c.l.b16 %v1054
  %v1533 = vunpack.c.l.b16 %v1055
  %v1534 = vunpack.c.l.b16 %v1056
  %v1535 = vunpack.c.l.b16 %v1057
  %v1536 = vunpack.c.l.b16 %v1058
  %v1537 = vunpack.c.l.b16 %v1059
  %v1538 = vunpack.c.l.b16 %v1060
  %v1539 = vunpack.c.l.b16 %v1061
  %v1540 = vunpack.c.l.b16 %v1062
  %v1541 = vunpack.c.l.b16 %v1063
  %v1542 = vunpack.c.l.b16 %v1064
  %v1543 = vunpack.c.l.b16 %v1065
  %v1544 = vunpack.c.l.b16 %v1066
  %v1545 = vunpack.c.l.b16 %v1067
  %v1546 = vunpack.c.l.b16 %v1068
  %v1547 = vunpack.c.l.b16 %v1069
  %v1548 = vunpack.c.l.b16 %v1070
  %v1549 = vunpack.c.l.b16 %v1071
  %v1550 = vunpack.c.l.b16 %v1072
  %v1551 = vunpack.c.l.b16 %v1073
  %v1552 = vunpack.c.l.b16 %v1074
  %v1553 = vunpack.c.l.b16 %v1075
  %v1554 = vunpack.c.l.b16 %v1076
  %v1555 = vunpack.c.l.b16 %v1077
  %v1556 = vunpack.c.l.b16 %v1078
  %v1557 = vunpack.c.l.b16 %v1079
  %v1558 = vunpack.c.l.b16 %v1080
  %v1559 = vunpack.c.l.b16 %v1081
  %v1560 = vunpack.c.l.b16 %v1082
  %v1561 = vunpack.c.l.b16 %v1083
  %v1562 = vunpack.c.l.b16 %v1084
  %v1563 = vunpack.c.l.b16 %v1085
  %v1564 = vunpack.c.l.b16 %v1086
  %v1565 = vunpack.c.l.b16 %v1087
  %v1566 = vunpack.c.l.b16 %v1088
  %v1567 = vunpack.c.l.b16 %v1089
  %v1568 = vunpack.c.l.b16 %v1090
  %v1569 = vunpack.c.l.b16 %v1091
  %v1570 = vunpack.c.l.b16 %v1092
  %v1571 = vunpack.c.l.b16 %v1093
  %v1572 = vunpack.c.l.b16 %v1094
  %v1573 = vunpack.c.l.b16 %v1095
  %v1574 = vunpack.c.l.b16 %v1096
  %v1575 = vunpack.c.l.b16 %v1097
  %v1576 = vunpack.c.l.b16 %v1098
  %v1577 = vunpack.c.l.b16 %v1099
  %v1578 = vunpack.c.l.b16 %v1100
  %v1579 = vunpack.c.l.b16 %v1101
  %v1580 = vunpack.c.l.b16 %v1102
  %v1581 = vunpack.c.l.b16 %v1103
  %v1582 = vunpack.c.l.b16 %v1104
  %v1583 = vunpack.c.l.b16 %v1105
  %v1584 = vunpack.c.l.b16 %v1106
  %v1585 = vunpack.c.l.b16 %v1107
  %v1586 = vunpack.c.l.b16 %v1108
  %v1587 = vunpack.c.l.b16 %v1109
  %v1588 = vunpack.c.l.b16 %v1110
  %v1589 = vunpack.c.l.b16 %v1111
  %v1590 = vunpack.c.l.b16 %v1112
  %v1591 = vunpack.c.l.b16 %v1113
  %v1592 = vunpack.c.l.b16 %v1114
  %v1593 = vunpack.c.l.b16 %v1115
  %v1594 = vunpack.c.l.b16 %v1116
  %v1595 = vunpack.c.l.b16 %v1117
  %v1596 = vunpack.c.l.b16 %v1118
  %v1597 = vunpack.c.l.b16 %v1119
  %v1598 = vunpack.c.l.b16 %v1120
  %v1599 = vunpack.c.l.b16 %v1121
  %v1600 = vunpack.c.l.b16 %v1122
  %v1601 = vunpack.c.l.b16 %v1123
  %v1602 = vunpack.c.l.b16 %v1124
  %v1603 = vunpack.c.l.b16 %v1125
  %v1604 = vunpack.c.l.b16 %v1126
  %v1605 = vunpack.c.l.b16 %v1127
  %v1606 = vunpack.c.l.b16 %v1128
  %v1607 = vunpack.c.l.b16 %v1129
  %v1608 = vunpack.c.l.b16 %v1130
  %v1609 = vunpack.c.l.b16 %v1131
  %v1610 = vunpack.c.l.b16 %v1132
  %v1611 = vunpack.c.l.b16 %v1133
  %v1612 = vunpack.c.l.b16 %v1134
  %v1613 = vunpack.c.l.b16 %v1135
  %v1614 = vunpack.c.l.b16 %v1136
  %v1615 = vunpack.c.l.b16 %v1137
  %v1616 = vunpack.c.l.b16 %v1138
  %v1617 = vunpack.c.l.b16 %v1139
  %v1618 = vunpack.c.l.b16 %v1140
  %v1619 = vpack.c.b16 %v1444, %v1443
  %v1620 = vpack.c.b16 %v1446, %v1445
  %v1621 = vpack.c.b16 %v1448, %v1447
  %v1622 = vpack.c.b16 %v1450, %v1449
  %v1623 = vpack.c.b16 %v1452, %v1451
  %v1624 = vpack.c.b16 %v1454, %v1453
  %v1625 = vpack.c.b16 %v1456, %v1455
  %v1626 = vpack.c.b16 %v1458, %v1457
  %v1627 = vpack.c.b16 %v1460, %v1459
  %v1628 = vpack.c.b16 %v1462, %v1461
  %v1629 = vpack.c.b16 %v1464, %v1463
  %v1630 = vpack.c.b16 %v1466, %v1465
  %v1631 = vpack.c.b16 %v1468, %v1467
  %v1632 = vpack.c.b16 %v1470, %v1469
  %v1633 = vpack.c.b16 %v1472, %v1471
  %v1634 = vpack.c.b16 %v1474, %v1473
  %v1635 = vpack.c.b16 %v1476, %v1475
  %v1636 = vpack.c.b16 %v1478, %v1477
  %v1637 = vpack.c.b16 %v1480, %v1479
  %v1638 = vpack.c.b16 %v1482, %v1481
  %v1639 = vpack.c.b16 %v1484, %v1483
  %v1640 = vpack.c.b16 %v1486, %v1485
  %v1641 = vpack.c.b16 %v1488, %v1487
  %v1642 = vpack.c.b16 %v1490, %v1489
  %v1643 = vpack.c.b16 %v1492, %v1491
  %v1644 = vpack.c.b16 %v1494, %v1493
  %v1645 = vpack.c.b16 %v1496, %v1495
  %v1646 = vpack.c.b16 %v1498, %v1497
  %v1647 = vpack.c.b16 %v1500, %v1499
  %v1648 = vpack.c.b16 %v1502, %v1501
  %v1649 = vpack.c.b16 %v1504, %v1503
  %v1650 = vpack.c.b16 %v1506, %v1505
  %v1651 = vpack.c.b16 %v1508, %v1507
  %v1652 = vpack.c.b16 %v1510, %v1509
  %v1653 = vpack.c.b16 %v1512, %v1511
  %v1654 = vpack.c.b16 %v1514, %v1513
  %v1655 = vpack.c.b16 %v1516, %v1515
  %v1656 = vpack.c.b16 %v1518, %v1517
  %v1657 = vpack.c.b16 %v1520, %v1519
  %v1658 = vpack.c.b16 %v1522, %v1521
  %v1659 = vpack.c.b16 %v1524, %v1523
  %v1660 = vpack.c.b16 %v1526, %v1525
  %v1661 = vpack.c.b16 %v1528, %v1527
  %v1662 = vpack.c.b16 %v1530, %v1529
  %v1663 = vpack.c.b16 %v1532, %v1531
  %v1664 = vpack.c.b16 %v1534, %v1533
  %v1665 = vpack.c.b16 %v1536, %v1535
  %v1666 = vpack.c.b16 %v1538, %v1537
  %v1667 = vpack.c.b16 %v1540, %v1539
  %v1668 = vpack.c.b16 %v1542, %v1541
  %v1669 = vpack.c.b16 %v1544, %v1543
  %v1670 = vpack.c.b16 %v1546, %v1545
  %v1671 = vpack.c.b16 %v1548, %v1547
  %v1672 = vpack.c.b16 %v1550, %v1549
  %v1673 = vpack.c.b16 %v1552, %v1551
  %v1674 = vpack.c.b16 %v1554, %v1553
  %v1675 = vpack.c.b16 %v1556, %v1555
  %v1676 = vpack.c.b16 %v1558, %v1557
  %v1677 = vpack.c.b16 %v1560, %v1559
  %v1678 = vpack.c.b16 %v1562, %v1561
  %v1679 = vpack.c.b16 %v1564, %v1563
  %v1680 = vpack.c.b16 %v1566, %v1565
  %v1681 = vpack.c.b16 %v1568, %v1567
  %v1682 = vpack.c.b16 %v1570, %v1569
  %v1683 = vpack.c.b16 %v1572, %v1571
  %v1684 = vpack.c.b16 %v1574, %v1573
  %v1685 = vpack.c.b16 %v1576, %v1575
  %v1686 = vpack.c.b16 %v1578, %v1577
  %v1687 = vpack.c.b16 %v1580, %v1579
  %v1688 = vpack.c.b16 %v1582, %v1581
  %v1689 = vpack.c.b16 %v1584, %v1583
  %v1690 = vpack.c.b16 %v1586, %v1585
  %v1691 = vpack.c.b16 %v1588, %v1587
  %v1692 = vpack.c.b16 %v1590, %v1589
  %v1693 = vpack.c.b16 %v1592, %v1591
  %v1694 = vpack.c.b16 %v1594, %v1593
  %v1695 = vpack.c.b16 %v1596, %v1595
  %v1696 = vpack.c.b16 %v1598, %v1597
  %v1697 = vpack.c.b16 %v1600, %v1599
  %v1698 = vpack.c.b16 %v1602, %v1601
  %v1699 = vpack.c.b16 %v1604, %v1603
  %v1700 = vpack.c.b16 %v1606, %v1605
  %v1701 = vpack.c.b16 %v1608, %v1607
  %v1702 = vpack.c.b16 %v1610, %v1609
  %v1703 = vpack.c.b16 %v1612, %v1611
  %v1704 = vpack.c.b16 %v1614, %v1613
  %v1705 = vpack.c.b16 %v1616, %v1615
  %v1706 = vpack.c.b16 %v1618, %v1617
  %1795 = vmatpush.bf16.msra.mxu0 %v1626
  %1796 = vmatpush.bf16.msra.mxu0 %v1625
  %1797 = vmatpush.bf16.msra.mxu0 %v1624
  %1798 = vmatpush.bf16.msra.mxu0 %v1623
  %1799 = vmatpush.bf16.msra.mxu0 %v1622
  %1800 = vmatpush.bf16.msra.mxu0 %v1621
  %1801 = vmatpush.bf16.msra.mxu0 %v1620
  %1802 = vmatpush.bf16.msra.mxu0 %v1619
  %1803 = vmatmul.bf16.gmra.mxu0 %v1245
  %v1804 = vpop.f32.mrf.mxu0
  %v1805 = vadd.f32 %v1143, %v1804
  %v1806 = vpop.f32.mrf.mxu0
  %1807 = vdwg.mxu0
  %1808 = vmatpush.bf16.msra.mxu0 %v1634
  %1809 = vmatpush.bf16.msra.mxu0 %v1633
  %1810 = vmatpush.bf16.msra.mxu0 %v1632
  %1811 = vmatpush.bf16.msra.mxu0 %v1631
  %1812 = vmatpush.bf16.msra.mxu0 %v1630
  %1813 = vmatpush.bf16.msra.mxu0 %v1629
  %1814 = vmatpush.bf16.msra.mxu0 %v1628
  %1815 = vmatpush.bf16.msra.mxu0 %v1627
  %1816 = vmatmul.bf16.gmra.mxu0 %v1246
  %v1817 = vpop.f32.mrf.mxu0
  %v1818 = vadd.f32 %v1805, %v1817
  %v1819 = vpop.f32.mrf.mxu0
  %1820 = vdwg.mxu0
  %1821 = vmatpush.bf16.msra.mxu0 %v1642
  %1822 = vmatpush.bf16.msra.mxu0 %v1641
  %1823 = vmatpush.bf16.msra.mxu0 %v1640
  %1824 = vmatpush.bf16.msra.mxu0 %v1639
  %1825 = vmatpush.bf16.msra.mxu0 %v1638
  %1826 = vmatpush.bf16.msra.mxu0 %v1637
  %1827 = vmatpush.bf16.msra.mxu0 %v1636
  %1828 = vmatpush.bf16.msra.mxu0 %v1635
  %1829 = vmatmul.bf16.gmra.mxu0 %v1247
  %v1830 = vpop.f32.mrf.mxu0
  %v1831 = vadd.f32 %v1818, %v1830
  %v1832 = vpop.f32.mrf.mxu0
  %1833 = vdwg.mxu0
  %1834 = vmatpush.bf16.msra.mxu0 %v1650
  %1835 = vmatpush.bf16.msra.mxu0 %v1649
  %1836 = vmatpush.bf16.msra.mxu0 %v1648
  %1837 = vmatpush.bf16.msra.mxu0 %v1647
  %1838 = vmatpush.bf16.msra.mxu0 %v1646
  %1839 = vmatpush.bf16.msra.mxu0 %v1645
  %1840 = vmatpush.bf16.msra.mxu0 %v1644
  %1841 = vmatpush.bf16.msra.mxu0 %v1643
  %1842 = vmatmul.bf16.gmra.mxu0 %v1248
  %v1843 = vpop.f32.mrf.mxu0
  %v1844 = vadd.f32 %v1831, %v1843
  %v1845 = vpop.f32.mrf.mxu0
  %1846 = vdwg.mxu0
  %1847 = vmatpush.bf16.msra.mxu0 %v1658
  %1848 = vmatpush.bf16.msra.mxu0 %v1657
  %1849 = vmatpush.bf16.msra.mxu0 %v1656
  %1850 = vmatpush.bf16.msra.mxu0 %v1655
  %1851 = vmatpush.bf16.msra.mxu0 %v1654
  %1852 = vmatpush.bf16.msra.mxu0 %v1653
  %1853 = vmatpush.bf16.msra.mxu0 %v1652
  %1854 = vmatpush.bf16.msra.mxu0 %v1651
  %1855 = vmatmul.bf16.gmra.mxu0 %v1249
  %v1856 = vpop.f32.mrf.mxu0
  %v1857 = vadd.f32 %v1844, %v1856
  %v1858 = vpop.f32.mrf.mxu0
  %1859 = vdwg.mxu0
  %1860 = vmatpush.bf16.msra.mxu0 %v1666
  %1861 = vmatpush.bf16.msra.mxu0 %v1665
  %1862 = vmatpush.bf16.msra.mxu0 %v1664
  %1863 = vmatpush.bf16.msra.mxu0 %v1663
  %1864 = vmatpush.bf16.msra.mxu0 %v1662
  %1865 = vmatpush.bf16.msra.mxu0 %v1661
  %1866 = vmatpush.bf16.msra.mxu0 %v1660
  %1867 = vmatpush.bf16.msra.mxu0 %v1659
  %1868 = vmatmul.bf16.gmra.mxu0 %v1250
  %v1869 = vpop.f32.mrf.mxu0
  %v1870 = vadd.f32 %v1857, %v1869
  %v1871 = vpop.f32.mrf.mxu0
  %1872 = vdwg.mxu0
  %1873 = vmatpush.bf16.msra.mxu0 %v1674
  %1874 = vmatpush.bf16.msra.mxu0 %v1673
  %1875 = vmatpush.bf16.msra.mxu0 %v1672
  %1876 = vmatpush.bf16.msra.mxu0 %v1671
  %1877 = vmatpush.bf16.msra.mxu0 %v1670
  %1878 = vmatpush.bf16.msra.mxu0 %v1669
  %1879 = vmatpush.bf16.msra.mxu0 %v1668
  %1880 = vmatpush.bf16.msra.mxu0 %v1667
  %1881 = vmatmul.bf16.gmra.mxu0 %v1251
  %v1882 = vpop.f32.mrf.mxu0
  %v1883 = vadd.f32 %v1870, %v1882
  %v1884 = vpop.f32.mrf.mxu0
  %1885 = vdwg.mxu0
  %1886 = vmatpush.bf16.msra.mxu0 %v1682
  %1887 = vmatpush.bf16.msra.mxu0 %v1681
  %1888 = vmatpush.bf16.msra.mxu0 %v1680
  %1889 = vmatpush.bf16.msra.mxu0 %v1679
  %1890 = vmatpush.bf16.msra.mxu0 %v1678
  %1891 = vmatpush.bf16.msra.mxu0 %v1677
  %1892 = vmatpush.bf16.msra.mxu0 %v1676
  %1893 = vmatpush.bf16.msra.mxu0 %v1675
  %1894 = vmatmul.bf16.gmra.mxu0 %v1252
  %v1895 = vpop.f32.mrf.mxu0
  %v1896 = vadd.f32 %v1883, %v1895
  %v1897 = vpop.f32.mrf.mxu0
  %1898 = vdwg.mxu0
  %1899 = vmatpush.bf16.msra.mxu0 %v1690
  %1900 = vmatpush.bf16.msra.mxu0 %v1689
  %1901 = vmatpush.bf16.msra.mxu0 %v1688
  %1902 = vmatpush.bf16.msra.mxu0 %v1687
  %1903 = vmatpush.bf16.msra.mxu0 %v1686
  %1904 = vmatpush.bf16.msra.mxu0 %v1685
  %1905 = vmatpush.bf16.msra.mxu0 %v1684
  %1906 = vmatpush.bf16.msra.mxu0 %v1683
  %1907 = vmatmul.bf16.gmra.mxu0 %v1253
  %v1908 = vpop.f32.mrf.mxu0
  %v1909 = vadd.f32 %v1896, %v1908
  %v1910 = vpop.f32.mrf.mxu0
  %1911 = vdwg.mxu0
  %1912 = vmatpush.bf16.msra.mxu0 %v1698
  %1913 = vmatpush.bf16.msra.mxu0 %v1697
  %1914 = vmatpush.bf16.msra.mxu0 %v1696
  %1915 = vmatpush.bf16.msra.mxu0 %v1695
  %1916 = vmatpush.bf16.msra.mxu0 %v1694
  %1917 = vmatpush.bf16.msra.mxu0 %v1693
  %1918 = vmatpush.bf16.msra.mxu0 %v1692
  %1919 = vmatpush.bf16.msra.mxu0 %v1691
  %1920 = vmatmul.bf16.gmra.mxu0 %v1254
  %v1921 = vpop.f32.mrf.mxu0
  %v1922 = vadd.f32 %v1909, %v1921
  %v1923 = vpop.f32.mrf.mxu0
  %1924 = vdwg.mxu0
  %1925 = vmatpush.bf16.msra.mxu0 %v1706
  %1926 = vmatpush.bf16.msra.mxu0 %v1705
  %1927 = vmatpush.bf16.msra.mxu0 %v1704
  %1928 = vmatpush.bf16.msra.mxu0 %v1703
  %1929 = vmatpush.bf16.msra.mxu0 %v1702
  %1930 = vmatpush.bf16.msra.mxu0 %v1701
  %1931 = vmatpush.bf16.msra.mxu0 %v1700
  %1932 = vmatpush.bf16.msra.mxu0 %v1699
  %1933 = vmatmul.bf16.gmra.mxu0 %v1255
  %v1934 = vpop.f32.mrf.mxu0
  %v1935 = vadd.f32 %v1922, %v1934
  %v1936 = vpop.f32.mrf.mxu0
  %1937 = vdwg.mxu0
  %vm1938 = vcmp.gt.f32.partialorder %v1935, 0.0
  %v1939 = vmin.f32 %v1935, 0.0
  %v1940 = vmul.f32 %v1939, %v345
  %v1941 = vmul.f32 %v1940, 1.442695
  %v1942 = vpow.pop %v1941
  %v1943 = vsub.f32 %v1942, 1.0
  %v1944 = vmul.f32 %v1943, 0.1
  %v1945 = vsel %vm1938, %v1935, %v1944
  %v1946 = vpack.c.bf16 %v1945, %v1945
  %v1947 = vld [vmem:[%s12] sm:$0xf]
  %v1948 = vld [vmem:[%s12 + $0x4] sm:$0xf]
  %v1949 = vld [vmem:[%s12 + $0x8] sm:$0xf]
  %v1950 = vld [vmem:[%s12 + $0xc] sm:$0xf]
  %v1951 = vld [vmem:[%s12 + $0x10] sm:$0xf]
  %v1952 = vld [vmem:[%s12 + $0x14] sm:$0xf]
  %v1953 = vld [vmem:[%s12 + $0x18] sm:$0xf]
  %v1954 = vld [vmem:[%s12 + $0x1c] sm:$0xf]
  %v1955 = vld [vmem:[%s13] sm:$0x1]
  %v1957 = vperm.slane %v1955, 0
  %v1967 = vunpack.c.l.b16 %v1947
  %v1968 = vunpack.c.l.b16 %v1948
  %v1969 = vunpack.c.l.b16 %v1949
  %v1970 = vunpack.c.l.b16 %v1950
  %v1971 = vunpack.c.l.b16 %v1951
  %v1972 = vunpack.c.l.b16 %v1952
  %v1973 = vunpack.c.l.b16 %v1953
  %v1974 = vunpack.c.l.b16 %v1954
  %v1975 = vpack.c.b16 %v1968, %v1967
  %v1976 = vpack.c.b16 %v1970, %v1969
  %v1977 = vpack.c.b16 %v1972, %v1971
  %v1978 = vpack.c.b16 %v1974, %v1973
  %v1984 = vsel %vm389, %v1946, 0
  %1986 = vmatpush.bf16.msra.mxu0 0
  %1987 = vmatpush.bf16.msra.mxu0 0
  %1988 = vmatpush.bf16.msra.mxu0 0
  %1989 = vmatpush.bf16.msra.mxu0 0
  %1990 = vmatpush.bf16.msra.mxu0 %v1978
  %1991 = vmatpush.bf16.msra.mxu0 %v1977
  %1992 = vmatpush.bf16.msra.mxu0 %v1976
  %1993 = vmatpush.bf16.msra.mxu0 %v1975
  %1994 = vmatmul.bf16.gmra.mxu0 %v1984
  %v1995 = vpop.f32.mrf.mxu0
  %v1996 = vadd.f32 %v1957, %v1995
  %v1997 = vpop.f32.mrf.mxu0
  %1998 = vdwg.mxu0
  %vm1999 = vcmp.gt.f32.partialorder %v1996, 0.0
  %v2000 = vmin.f32 %v1996, 0.0
  %v2001 = vmul.f32 %v2000, %v345
  %v2002 = vmul.f32 %v2001, 1.442695
  %v2003 = vpow.pop %v2002
  %v2004 = vsub.f32 %v2003, 1.0
  %v2005 = vmul.f32 %v2004, 0.1
  %v2006 = vsel %vm1999, %v1996, %v2005
  %v2007 = vpack.c.bf16 %v2006, %v2006
  %v2008 = vld [vmem:[%s14] sm:$0xf]
  %v2009 = vld [vmem:[%s14 + $0x4] sm:$0xf]
  %v2010 = vld [vmem:[%s14 + $0x8] sm:$0xf]
  %v2011 = vld [vmem:[%s14 + $0xc] sm:$0xf]
  %v2012 = vld [vmem:[%s15] sm:$0x1]
  %v2014 = vperm.slane %v2012, 0
  %v2020 = vunpack.c.l.b16 %v2008
  %v2021 = vunpack.c.l.b16 %v2009
  %v2022 = vunpack.c.l.b16 %v2010
  %v2023 = vunpack.c.l.b16 %v2011
  %v2024 = vpack.c.b16 %v2021, %v2020
  %v2025 = vpack.c.b16 %v2023, %v2022
  %v2029 = vsel %vm435, %v2007, 0
  %2031 = vmatpush.bf16.msra.mxu0 0
  %2032 = vmatpush.bf16.msra.mxu0 0
  %2033 = vmatpush.bf16.msra.mxu0 0
  %2034 = vmatpush.bf16.msra.mxu0 0
  %2035 = vmatpush.bf16.msra.mxu0 0
  %2036 = vmatpush.bf16.msra.mxu0 0
  %2037 = vmatpush.bf16.msra.mxu0 %v2025
  %2038 = vmatpush.bf16.msra.mxu0 %v2024
  %2039 = vmatmul.bf16.gmra.mxu0 %v2029
  %v2040 = vpop.f32.mrf.mxu0
  %v2041 = vadd.f32 %v2014, %v2040
  %v2042 = vpop.f32.mrf.mxu0
  %2043 = vdwg.mxu0
  %vm2044 = vcmp.gt.f32.partialorder %v2041, 0.0
  %v2045 = vmin.f32 %v2041, 0.0
  %v2046 = vmul.f32 %v2045, %v345
  %v2047 = vmul.f32 %v2046, 1.442695
  %v2048 = vpow.pop %v2047
  %v2049 = vsub.f32 %v2048, 1.0
  %v2050 = vmul.f32 %v2049, 0.1
  %v2051 = vsel %vm2044, %v2041, %v2050
  %v2052 = vpack.c.bf16 %v2051, %v2051
  %v2053 = vld [vmem:[%s16] sm:$0xf]
  %v2054 = vld [vmem:[%s16 + $0x4] sm:$0xf]
  %v2055 = vld [vmem:[#allocation3] sm:$0x1]
  %v2057 = vperm.slane %v2055, 0
  %v2061 = vunpack.c.l.b16 %v2053
  %v2062 = vunpack.c.l.b16 %v2054
  %v2063 = vpack.c.b16 %v2062, %v2061
  %v2066 = vsel %vm473, %v2052, 0
  %2068 = vmatpush.bf16.msra.mxu0 0
  %2069 = vmatpush.bf16.msra.mxu0 0
  %2070 = vmatpush.bf16.msra.mxu0 0
  %2071 = vmatpush.bf16.msra.mxu0 0
  %2072 = vmatpush.bf16.msra.mxu0 0
  %2073 = vmatpush.bf16.msra.mxu0 0
  %2074 = vmatpush.bf16.msra.mxu0 0
  %2075 = vmatpush.bf16.msra.mxu0 %v2063
  %2076 = vmatmul.bf16.gmra.mxu0 %v2066
  %v2077 = vpop.f32.mrf.mxu0
  %v2078 = vadd.f32 %v2057, %v2077
  %v2079 = vpop.f32.mrf.mxu0
  %2080 = vdwg.mxu0
  %v2081 = vadd.f32 %v952, %v2078
  %v2082 = vrot.slane %v1201, 1
  %v2083 = vsel %vm142, %v1212, %v2082
  %v2084 = vrot.slane %v1202, 1
  %v2085 = vsel %vm142, %v1213, %v2084
  %v2086 = vrot.slane %v1203, 1
  %v2087 = vsel %vm142, %v1214, %v2086
  %v2088 = vrot.slane %v1204, 1
  %v2089 = vsel %vm142, %v1215, %v2088
  %v2090 = vrot.slane %v1205, 1
  %v2091 = vsel %vm142, %v1216, %v2090
  %v2092 = vrot.slane %v1206, 1
  %v2093 = vsel %vm142, %v1217, %v2092
  %v2094 = vrot.slane %v1207, 1
  %v2095 = vsel %vm142, %v1218, %v2094
  %v2096 = vrot.slane %v1208, 1
  %v2097 = vsel %vm142, %v1219, %v2096
  %v2098 = vrot.slane %v1209, 1
  %v2099 = vsel %vm142, %v1220, %v2098
  %v2100 = vrot.slane %v1210, 1
  %v2101 = vsel %vm142, %v1221, %v2100
  %v2102 = vrot.slane %v1211, 1
  %v2103 = vsel %vm142, %v1222, %v2102
  %v2104 = vpack.c.b16 %v2083, %v2083
  %v2105 = vpack.c.b16 %v2085, %v2085
  %v2106 = vpack.c.b16 %v2087, %v2087
  %v2107 = vpack.c.b16 %v2089, %v2089
  %v2108 = vpack.c.b16 %v2091, %v2091
  %v2109 = vpack.c.b16 %v2093, %v2093
  %v2110 = vpack.c.b16 %v2095, %v2095
  %v2111 = vpack.c.b16 %v2097, %v2097
  %v2112 = vpack.c.b16 %v2099, %v2099
  %v2113 = vpack.c.b16 %v2101, %v2101
  %v2114 = vpack.c.b16 %v2103, %v2103
  %2126 = vmatpush.bf16.msra.mxu0 %v1626
  %2127 = vmatpush.bf16.msra.mxu0 %v1625
  %2128 = vmatpush.bf16.msra.mxu0 %v1624
  %2129 = vmatpush.bf16.msra.mxu0 %v1623
  %2130 = vmatpush.bf16.msra.mxu0 %v1622
  %2131 = vmatpush.bf16.msra.mxu0 %v1621
  %2132 = vmatpush.bf16.msra.mxu0 %v1620
  %2133 = vmatpush.bf16.msra.mxu0 %v1619
  %2134 = vmatmul.bf16.gmra.mxu0 %v2104
  %v2135 = vpop.f32.mrf.mxu0
  %v2136 = vadd.f32 %v1143, %v2135
  %v2137 = vpop.f32.mrf.mxu0
  %2138 = vdwg.mxu0
  %2139 = vmatpush.bf16.msra.mxu0 %v1634
  %2140 = vmatpush.bf16.msra.mxu0 %v1633
  %2141 = vmatpush.bf16.msra.mxu0 %v1632
  %2142 = vmatpush.bf16.msra.mxu0 %v1631
  %2143 = vmatpush.bf16.msra.mxu0 %v1630
  %2144 = vmatpush.bf16.msra.mxu0 %v1629
  %2145 = vmatpush.bf16.msra.mxu0 %v1628
  %2146 = vmatpush.bf16.msra.mxu0 %v1627
  %2147 = vmatmul.bf16.gmra.mxu0 %v2105
  %v2148 = vpop.f32.mrf.mxu0
  %v2149 = vadd.f32 %v2136, %v2148
  %v2150 = vpop.f32.mrf.mxu0
  %2151 = vdwg.mxu0
  %2152 = vmatpush.bf16.msra.mxu0 %v1642
  %2153 = vmatpush.bf16.msra.mxu0 %v1641
  %2154 = vmatpush.bf16.msra.mxu0 %v1640
  %2155 = vmatpush.bf16.msra.mxu0 %v1639
  %2156 = vmatpush.bf16.msra.mxu0 %v1638
  %2157 = vmatpush.bf16.msra.mxu0 %v1637
  %2158 = vmatpush.bf16.msra.mxu0 %v1636
  %2159 = vmatpush.bf16.msra.mxu0 %v1635
  %2160 = vmatmul.bf16.gmra.mxu0 %v2106
  %v2161 = vpop.f32.mrf.mxu0
  %v2162 = vadd.f32 %v2149, %v2161
  %v2163 = vpop.f32.mrf.mxu0
  %2164 = vdwg.mxu0
  %2165 = vmatpush.bf16.msra.mxu0 %v1650
  %2166 = vmatpush.bf16.msra.mxu0 %v1649
  %2167 = vmatpush.bf16.msra.mxu0 %v1648
  %2168 = vmatpush.bf16.msra.mxu0 %v1647
  %2169 = vmatpush.bf16.msra.mxu0 %v1646
  %2170 = vmatpush.bf16.msra.mxu0 %v1645
  %2171 = vmatpush.bf16.msra.mxu0 %v1644
  %2172 = vmatpush.bf16.msra.mxu0 %v1643
  %2173 = vmatmul.bf16.gmra.mxu0 %v2107
  %v2174 = vpop.f32.mrf.mxu0
  %v2175 = vadd.f32 %v2162, %v2174
  %v2176 = vpop.f32.mrf.mxu0
  %2177 = vdwg.mxu0
  %2178 = vmatpush.bf16.msra.mxu0 %v1658
  %2179 = vmatpush.bf16.msra.mxu0 %v1657
  %2180 = vmatpush.bf16.msra.mxu0 %v1656
  %2181 = vmatpush.bf16.msra.mxu0 %v1655
  %2182 = vmatpush.bf16.msra.mxu0 %v1654
  %2183 = vmatpush.bf16.msra.mxu0 %v1653
  %2184 = vmatpush.bf16.msra.mxu0 %v1652
  %2185 = vmatpush.bf16.msra.mxu0 %v1651
  %2186 = vmatmul.bf16.gmra.mxu0 %v2108
  %v2187 = vpop.f32.mrf.mxu0
  %v2188 = vadd.f32 %v2175, %v2187
  %v2189 = vpop.f32.mrf.mxu0
  %2190 = vdwg.mxu0
  %2191 = vmatpush.bf16.msra.mxu0 %v1666
  %2192 = vmatpush.bf16.msra.mxu0 %v1665
  %2193 = vmatpush.bf16.msra.mxu0 %v1664
  %2194 = vmatpush.bf16.msra.mxu0 %v1663
  %2195 = vmatpush.bf16.msra.mxu0 %v1662
  %2196 = vmatpush.bf16.msra.mxu0 %v1661
  %2197 = vmatpush.bf16.msra.mxu0 %v1660
  %2198 = vmatpush.bf16.msra.mxu0 %v1659
  %2199 = vmatmul.bf16.gmra.mxu0 %v2109
  %v2200 = vpop.f32.mrf.mxu0
  %v2201 = vadd.f32 %v2188, %v2200
  %v2202 = vpop.f32.mrf.mxu0
  %2203 = vdwg.mxu0
  %2204 = vmatpush.bf16.msra.mxu0 %v1674
  %2205 = vmatpush.bf16.msra.mxu0 %v1673
  %2206 = vmatpush.bf16.msra.mxu0 %v1672
  %2207 = vmatpush.bf16.msra.mxu0 %v1671
  %2208 = vmatpush.bf16.msra.mxu0 %v1670
  %2209 = vmatpush.bf16.msra.mxu0 %v1669
  %2210 = vmatpush.bf16.msra.mxu0 %v1668
  %2211 = vmatpush.bf16.msra.mxu0 %v1667
  %2212 = vmatmul.bf16.gmra.mxu0 %v2110
  %v2213 = vpop.f32.mrf.mxu0
  %v2214 = vadd.f32 %v2201, %v2213
  %v2215 = vpop.f32.mrf.mxu0
  %2216 = vdwg.mxu0
  %2217 = vmatpush.bf16.msra.mxu0 %v1682
  %2218 = vmatpush.bf16.msra.mxu0 %v1681
  %2219 = vmatpush.bf16.msra.mxu0 %v1680
  %2220 = vmatpush.bf16.msra.mxu0 %v1679
  %2221 = vmatpush.bf16.msra.mxu0 %v1678
  %2222 = vmatpush.bf16.msra.mxu0 %v1677
  %2223 = vmatpush.bf16.msra.mxu0 %v1676
  %2224 = vmatpush.bf16.msra.mxu0 %v1675
  %2225 = vmatmul.bf16.gmra.mxu0 %v2111
  %v2226 = vpop.f32.mrf.mxu0
  %v2227 = vadd.f32 %v2214, %v2226
  %v2228 = vpop.f32.mrf.mxu0
  %2229 = vdwg.mxu0
  %2230 = vmatpush.bf16.msra.mxu0 %v1690
  %2231 = vmatpush.bf16.msra.mxu0 %v1689
  %2232 = vmatpush.bf16.msra.mxu0 %v1688
  %2233 = vmatpush.bf16.msra.mxu0 %v1687
  %2234 = vmatpush.bf16.msra.mxu0 %v1686
  %2235 = vmatpush.bf16.msra.mxu0 %v1685
  %2236 = vmatpush.bf16.msra.mxu0 %v1684
  %2237 = vmatpush.bf16.msra.mxu0 %v1683
  %2238 = vmatmul.bf16.gmra.mxu0 %v2112
  %v2239 = vpop.f32.mrf.mxu0
  %v2240 = vadd.f32 %v2227, %v2239
  %v2241 = vpop.f32.mrf.mxu0
  %2242 = vdwg.mxu0
  %2243 = vmatpush.bf16.msra.mxu0 %v1698
  %2244 = vmatpush.bf16.msra.mxu0 %v1697
  %2245 = vmatpush.bf16.msra.mxu0 %v1696
  %2246 = vmatpush.bf16.msra.mxu0 %v1695
  %2247 = vmatpush.bf16.msra.mxu0 %v1694
  %2248 = vmatpush.bf16.msra.mxu0 %v1693
  %2249 = vmatpush.bf16.msra.mxu0 %v1692
  %2250 = vmatpush.bf16.msra.mxu0 %v1691
  %2251 = vmatmul.bf16.gmra.mxu0 %v2113
  %v2252 = vpop.f32.mrf.mxu0
  %v2253 = vadd.f32 %v2240, %v2252
  %v2254 = vpop.f32.mrf.mxu0
  %2255 = vdwg.mxu0
  %2256 = vmatpush.bf16.msra.mxu0 %v1706
  %2257 = vmatpush.bf16.msra.mxu0 %v1705
  %2258 = vmatpush.bf16.msra.mxu0 %v1704
  %2259 = vmatpush.bf16.msra.mxu0 %v1703
  %2260 = vmatpush.bf16.msra.mxu0 %v1702
  %2261 = vmatpush.bf16.msra.mxu0 %v1701
  %2262 = vmatpush.bf16.msra.mxu0 %v1700
  %2263 = vmatpush.bf16.msra.mxu0 %v1699
  %2264 = vmatmul.bf16.gmra.mxu0 %v2114
  %v2265 = vpop.f32.mrf.mxu0
  %v2266 = vadd.f32 %v2253, %v2265
  %v2267 = vpop.f32.mrf.mxu0
  %2268 = vdwg.mxu0
  %vm2269 = vcmp.gt.f32.partialorder %v2266, 0.0
  %v2270 = vmin.f32 %v2266, 0.0
  %v2271 = vmul.f32 %v2270, %v345
  %v2272 = vmul.f32 %v2271, 1.442695
  %v2273 = vpow.pop %v2272
  %v2274 = vsub.f32 %v2273, 1.0
  %v2275 = vmul.f32 %v2274, 0.1
  %v2276 = vsel %vm2269, %v2266, %v2275
  %v2277 = vpack.c.bf16 %v2276, %v2276
  %v2279 = vsel %vm389, %v2277, 0
  %2281 = vmatpush.bf16.msra.mxu0 0
  %2282 = vmatpush.bf16.msra.mxu0 0
  %2283 = vmatpush.bf16.msra.mxu0 0
  %2284 = vmatpush.bf16.msra.mxu0 0
  %2285 = vmatpush.bf16.msra.mxu0 %v1978
  %2286 = vmatpush.bf16.msra.mxu0 %v1977
  %2287 = vmatpush.bf16.msra.mxu0 %v1976
  %2288 = vmatpush.bf16.msra.mxu0 %v1975
  %2289 = vmatmul.bf16.gmra.mxu0 %v2279
  %v2290 = vpop.f32.mrf.mxu0
  %v2291 = vadd.f32 %v1957, %v2290
  %v2292 = vpop.f32.mrf.mxu0
  %2293 = vdwg.mxu0
  %vm2294 = vcmp.gt.f32.partialorder %v2291, 0.0
  %v2295 = vmin.f32 %v2291, 0.0
  %v2296 = vmul.f32 %v2295, %v345
  %v2297 = vmul.f32 %v2296, 1.442695
  %v2298 = vpow.pop %v2297
  %v2299 = vsub.f32 %v2298, 1.0
  %v2300 = vmul.f32 %v2299, 0.1
  %v2301 = vsel %vm2294, %v2291, %v2300
  %v2302 = vpack.c.bf16 %v2301, %v2301
  %v2304 = vsel %vm435, %v2302, 0
  %2306 = vmatpush.bf16.msra.mxu0 0
  %2307 = vmatpush.bf16.msra.mxu0 0
  %2308 = vmatpush.bf16.msra.mxu0 0
  %2309 = vmatpush.bf16.msra.mxu0 0
  %2310 = vmatpush.bf16.msra.mxu0 0
  %2311 = vmatpush.bf16.msra.mxu0 0
  %2312 = vmatpush.bf16.msra.mxu0 %v2025
  %2313 = vmatpush.bf16.msra.mxu0 %v2024
  %2314 = vmatmul.bf16.gmra.mxu0 %v2304
  %v2315 = vpop.f32.mrf.mxu0
  %v2316 = vadd.f32 %v2014, %v2315
  %v2317 = vpop.f32.mrf.mxu0
  %2318 = vdwg.mxu0
  %vm2319 = vcmp.gt.f32.partialorder %v2316, 0.0
  %v2320 = vmin.f32 %v2316, 0.0
  %v2321 = vmul.f32 %v2320, %v345
  %v2322 = vmul.f32 %v2321, 1.442695
  %v2323 = vpow.pop %v2322
  %v2324 = vsub.f32 %v2323, 1.0
  %v2325 = vmul.f32 %v2324, 0.1
  %v2326 = vsel %vm2319, %v2316, %v2325
  %v2327 = vpack.c.bf16 %v2326, %v2326
  %v2329 = vsel %vm473, %v2327, 0
  %2331 = vmatpush.bf16.msra.mxu0 0
  %2332 = vmatpush.bf16.msra.mxu0 0
  %2333 = vmatpush.bf16.msra.mxu0 0
  %2334 = vmatpush.bf16.msra.mxu0 0
  %2335 = vmatpush.bf16.msra.mxu0 0
  %2336 = vmatpush.bf16.msra.mxu0 0
  %2337 = vmatpush.bf16.msra.mxu0 0
  %2338 = vmatpush.bf16.msra.mxu0 %v2063
  %2339 = vmatmul.bf16.gmra.mxu0 %v2329
  %v2340 = vpop.f32.mrf.mxu0
  %v2341 = vadd.f32 %v2057, %v2340
  %v2342 = vpop.f32.mrf.mxu0
  %2343 = vdwg.mxu0
  %v2344 = vadd.f32 %v2081, %v2341
  %v2345 = vld [vmem:[%s1] sm:$0x22]
  %v2346 = vld [vmem:[%s1 + $0x8] sm:$0x22]
  %v2347 = vld [vmem:[%s1 + $0x10] sm:$0x22]
  %v2348 = vld [vmem:[%s1 + $0x18] sm:$0x22]
  %v2349 = vld [vmem:[%s1 + $0x20] sm:$0x22]
  %v2350 = vld [vmem:[%s1 + $0x28] sm:$0x2]
  %v2351 = vld [vmem:[%s1 + $0x2c] sm:$0x22]
  %v2352 = vld [vmem:[%s1 + $0x34] sm:$0x22]
  %v2353 = vld [vmem:[%s1 + $0x3c] sm:$0x22]
  %v2354 = vld [vmem:[%s1 + $0x44] sm:$0x22]
  %v2355 = vld [vmem:[%s1 + $0x4c] sm:$0x22]
  %v2356 = vld [vmem:[%s1 + $0x54] sm:$0x2]
  %v2369 = vunpack.c.l.b16 %v2345
  %v2370 = vunpack.c.h.b16 %v2345
  %v2371 = vunpack.c.l.b16 %v2346
  %v2372 = vunpack.c.h.b16 %v2346
  %v2373 = vunpack.c.l.b16 %v2347
  %v2374 = vunpack.c.h.b16 %v2347
  %v2375 = vunpack.c.l.b16 %v2348
  %v2376 = vunpack.c.h.b16 %v2348
  %v2377 = vunpack.c.l.b16 %v2349
  %v2378 = vunpack.c.h.b16 %v2349
  %v2379 = vunpack.c.l.b16 %v2350
  %v2380 = vunpack.c.l.b16 %v2351
  %v2381 = vunpack.c.h.b16 %v2351
  %v2382 = vunpack.c.l.b16 %v2352
  %v2383 = vunpack.c.h.b16 %v2352
  %v2384 = vunpack.c.l.b16 %v2353
  %v2385 = vunpack.c.h.b16 %v2353
  %v2386 = vunpack.c.l.b16 %v2354
  %v2387 = vunpack.c.h.b16 %v2354
  %v2388 = vunpack.c.l.b16 %v2355
  %v2389 = vunpack.c.h.b16 %v2355
  %v2390 = vunpack.c.l.b16 %v2356
  %v2391 = vpack.c.b16 %v2369, %v2369
  %v2392 = vpack.c.b16 %v2370, %v2370
  %v2393 = vpack.c.b16 %v2371, %v2371
  %v2394 = vpack.c.b16 %v2372, %v2372
  %v2395 = vpack.c.b16 %v2373, %v2373
  %v2396 = vpack.c.b16 %v2374, %v2374
  %v2397 = vpack.c.b16 %v2375, %v2375
  %v2398 = vpack.c.b16 %v2376, %v2376
  %v2399 = vpack.c.b16 %v2377, %v2377
  %v2400 = vpack.c.b16 %v2378, %v2378
  %v2401 = vpack.c.b16 %v2379, %v2379
  %v2402 = vpack.c.b16 %v2380, %v2380
  %v2403 = vpack.c.b16 %v2381, %v2381
  %v2404 = vpack.c.b16 %v2382, %v2382
  %v2405 = vpack.c.b16 %v2383, %v2383
  %v2406 = vpack.c.b16 %v2384, %v2384
  %v2407 = vpack.c.b16 %v2385, %v2385
  %v2408 = vpack.c.b16 %v2386, %v2386
  %v2409 = vpack.c.b16 %v2387, %v2387
  %v2410 = vpack.c.b16 %v2388, %v2388
  %v2411 = vpack.c.b16 %v2389, %v2389
  %v2412 = vpack.c.b16 %v2390, %v2390
  %v2413 = vunpack.c.l.b16 %v2391
  %v2414 = vunpack.c.l.b16 %v2392
  %v2415 = vunpack.c.l.b16 %v2393
  %v2416 = vunpack.c.l.b16 %v2394
  %v2417 = vunpack.c.l.b16 %v2395
  %v2418 = vunpack.c.l.b16 %v2396
  %v2419 = vunpack.c.l.b16 %v2397
  %v2420 = vunpack.c.l.b16 %v2398
  %v2421 = vunpack.c.l.b16 %v2399
  %v2422 = vunpack.c.l.b16 %v2400
  %v2423 = vunpack.c.l.b16 %v2401
  %v2424 = vunpack.c.l.b16 %v2402
  %v2425 = vunpack.c.l.b16 %v2403
  %v2426 = vunpack.c.l.b16 %v2404
  %v2427 = vunpack.c.l.b16 %v2405
  %v2428 = vunpack.c.l.b16 %v2406
  %v2429 = vunpack.c.l.b16 %v2407
  %v2430 = vunpack.c.l.b16 %v2408
  %v2431 = vunpack.c.l.b16 %v2409
  %v2432 = vunpack.c.l.b16 %v2410
  %v2433 = vunpack.c.l.b16 %v2411
  %v2434 = vunpack.c.l.b16 %v2412
  %v2435 = vrot.slane %v2413, 2
  %v2436 = vrot.slane %v2424, 1
  %v2437 = vsel %vm142, %v2436, %v2435
  %v2438 = vrot.slane %v2414, 2
  %v2439 = vrot.slane %v2425, 1
  %v2440 = vsel %vm142, %v2439, %v2438
  %v2441 = vrot.slane %v2415, 2
  %v2442 = vrot.slane %v2426, 1
  %v2443 = vsel %vm142, %v2442, %v2441
  %v2444 = vrot.slane %v2416, 2
  %v2445 = vrot.slane %v2427, 1
  %v2446 = vsel %vm142, %v2445, %v2444
  %v2447 = vrot.slane %v2417, 2
  %v2448 = vrot.slane %v2428, 1
  %v2449 = vsel %vm142, %v2448, %v2447
  %v2450 = vrot.slane %v2418, 2
  %v2451 = vrot.slane %v2429, 1
  %v2452 = vsel %vm142, %v2451, %v2450
  %v2453 = vrot.slane %v2419, 2
  %v2454 = vrot.slane %v2430, 1
  %v2455 = vsel %vm142, %v2454, %v2453
  %v2456 = vrot.slane %v2420, 2
  %v2457 = vrot.slane %v2431, 1
  %v2458 = vsel %vm142, %v2457, %v2456
  %v2459 = vrot.slane %v2421, 2
  %v2460 = vrot.slane %v2432, 1
  %v2461 = vsel %vm142, %v2460, %v2459
  %v2462 = vrot.slane %v2422, 2
  %v2463 = vrot.slane %v2433, 1
  %v2464 = vsel %vm142, %v2463, %v2462
  %v2465 = vrot.slane %v2423, 2
  %v2466 = vrot.slane %v2434, 1
  %v2467 = vsel %vm142, %v2466, %v2465
  %v2468 = vpack.c.b16 %v2437, %v2437
  %v2469 = vpack.c.b16 %v2440, %v2440
  %v2470 = vpack.c.b16 %v2443, %v2443
  %v2471 = vpack.c.b16 %v2446, %v2446
  %v2472 = vpack.c.b16 %v2449, %v2449
  %v2473 = vpack.c.b16 %v2452, %v2452
  %v2474 = vpack.c.b16 %v2455, %v2455
  %v2475 = vpack.c.b16 %v2458, %v2458
  %v2476 = vpack.c.b16 %v2461, %v2461
  %v2477 = vpack.c.b16 %v2464, %v2464
  %v2478 = vpack.c.b16 %v2467, %v2467
  %2490 = vmatpush.bf16.msra.mxu0 %v1626
  %2491 = vmatpush.bf16.msra.mxu0 %v1625
  %2492 = vmatpush.bf16.msra.mxu0 %v1624
  %2493 = vmatpush.bf16.msra.mxu0 %v1623
  %2494 = vmatpush.bf16.msra.mxu0 %v1622
  %2495 = vmatpush.bf16.msra.mxu0 %v1621
  %2496 = vmatpush.bf16.msra.mxu0 %v1620
  %2497 = vmatpush.bf16.msra.mxu0 %v1619
  %2498 = vmatmul.bf16.gmra.mxu0 %v2468
  %v2499 = vpop.f32.mrf.mxu0
  %v2500 = vadd.f32 %v1143, %v2499
  %v2501 = vpop.f32.mrf.mxu0
  %2502 = vdwg.mxu0
  %2503 = vmatpush.bf16.msra.mxu0 %v1634
  %2504 = vmatpush.bf16.msra.mxu0 %v1633
  %2505 = vmatpush.bf16.msra.mxu0 %v1632
  %2506 = vmatpush.bf16.msra.mxu0 %v1631
  %2507 = vmatpush.bf16.msra.mxu0 %v1630
  %2508 = vmatpush.bf16.msra.mxu0 %v1629
  %2509 = vmatpush.bf16.msra.mxu0 %v1628
  %2510 = vmatpush.bf16.msra.mxu0 %v1627
  %2511 = vmatmul.bf16.gmra.mxu0 %v2469
  %v2512 = vpop.f32.mrf.mxu0
  %v2513 = vadd.f32 %v2500, %v2512
  %v2514 = vpop.f32.mrf.mxu0
  %2515 = vdwg.mxu0
  %2516 = vmatpush.bf16.msra.mxu0 %v1642
  %2517 = vmatpush.bf16.msra.mxu0 %v1641
  %2518 = vmatpush.bf16.msra.mxu0 %v1640
  %2519 = vmatpush.bf16.msra.mxu0 %v1639
  %2520 = vmatpush.bf16.msra.mxu0 %v1638
  %2521 = vmatpush.bf16.msra.mxu0 %v1637
  %2522 = vmatpush.bf16.msra.mxu0 %v1636
  %2523 = vmatpush.bf16.msra.mxu0 %v1635
  %2524 = vmatmul.bf16.gmra.mxu0 %v2470
  %v2525 = vpop.f32.mrf.mxu0
  %v2526 = vadd.f32 %v2513, %v2525
  %v2527 = vpop.f32.mrf.mxu0
  %2528 = vdwg.mxu0
  %2529 = vmatpush.bf16.msra.mxu0 %v1650
  %2530 = vmatpush.bf16.msra.mxu0 %v1649
  %2531 = vmatpush.bf16.msra.mxu0 %v1648
  %2532 = vmatpush.bf16.msra.mxu0 %v1647
  %2533 = vmatpush.bf16.msra.mxu0 %v1646
  %2534 = vmatpush.bf16.msra.mxu0 %v1645
  %2535 = vmatpush.bf16.msra.mxu0 %v1644
  %2536 = vmatpush.bf16.msra.mxu0 %v1643
  %2537 = vmatmul.bf16.gmra.mxu0 %v2471
  %v2538 = vpop.f32.mrf.mxu0
  %v2539 = vadd.f32 %v2526, %v2538
  %v2540 = vpop.f32.mrf.mxu0
  %2541 = vdwg.mxu0
  %2542 = vmatpush.bf16.msra.mxu0 %v1658
  %2543 = vmatpush.bf16.msra.mxu0 %v1657
  %2544 = vmatpush.bf16.msra.mxu0 %v1656
  %2545 = vmatpush.bf16.msra.mxu0 %v1655
  %2546 = vmatpush.bf16.msra.mxu0 %v1654
  %2547 = vmatpush.bf16.msra.mxu0 %v1653
  %2548 = vmatpush.bf16.msra.mxu0 %v1652
  %2549 = vmatpush.bf16.msra.mxu0 %v1651
  %2550 = vmatmul.bf16.gmra.mxu0 %v2472
  %v2551 = vpop.f32.mrf.mxu0
  %v2552 = vadd.f32 %v2539, %v2551
  %v2553 = vpop.f32.mrf.mxu0
  %2554 = vdwg.mxu0
  %2555 = vmatpush.bf16.msra.mxu0 %v1666
  %2556 = vmatpush.bf16.msra.mxu0 %v1665
  %2557 = vmatpush.bf16.msra.mxu0 %v1664
  %2558 = vmatpush.bf16.msra.mxu0 %v1663
  %2559 = vmatpush.bf16.msra.mxu0 %v1662
  %2560 = vmatpush.bf16.msra.mxu0 %v1661
  %2561 = vmatpush.bf16.msra.mxu0 %v1660
  %2562 = vmatpush.bf16.msra.mxu0 %v1659
  %2563 = vmatmul.bf16.gmra.mxu0 %v2473
  %v2564 = vpop.f32.mrf.mxu0
  %v2565 = vadd.f32 %v2552, %v2564
  %v2566 = vpop.f32.mrf.mxu0
  %2567 = vdwg.mxu0
  %2568 = vmatpush.bf16.msra.mxu0 %v1674
  %2569 = vmatpush.bf16.msra.mxu0 %v1673
  %2570 = vmatpush.bf16.msra.mxu0 %v1672
  %2571 = vmatpush.bf16.msra.mxu0 %v1671
  %2572 = vmatpush.bf16.msra.mxu0 %v1670
  %2573 = vmatpush.bf16.msra.mxu0 %v1669
  %2574 = vmatpush.bf16.msra.mxu0 %v1668
  %2575 = vmatpush.bf16.msra.mxu0 %v1667
  %2576 = vmatmul.bf16.gmra.mxu0 %v2474
  %v2577 = vpop.f32.mrf.mxu0
  %v2578 = vadd.f32 %v2565, %v2577
  %v2579 = vpop.f32.mrf.mxu0
  %2580 = vdwg.mxu0
  %2581 = vmatpush.bf16.msra.mxu0 %v1682
  %2582 = vmatpush.bf16.msra.mxu0 %v1681
  %2583 = vmatpush.bf16.msra.mxu0 %v1680
  %2584 = vmatpush.bf16.msra.mxu0 %v1679
  %2585 = vmatpush.bf16.msra.mxu0 %v1678
  %2586 = vmatpush.bf16.msra.mxu0 %v1677
  %2587 = vmatpush.bf16.msra.mxu0 %v1676
  %2588 = vmatpush.bf16.msra.mxu0 %v1675
  %2589 = vmatmul.bf16.gmra.mxu0 %v2475
  %v2590 = vpop.f32.mrf.mxu0
  %v2591 = vadd.f32 %v2578, %v2590
  %v2592 = vpop.f32.mrf.mxu0
  %2593 = vdwg.mxu0
  %2594 = vmatpush.bf16.msra.mxu0 %v1690
  %2595 = vmatpush.bf16.msra.mxu0 %v1689
  %2596 = vmatpush.bf16.msra.mxu0 %v1688
  %2597 = vmatpush.bf16.msra.mxu0 %v1687
  %2598 = vmatpush.bf16.msra.mxu0 %v1686
  %2599 = vmatpush.bf16.msra.mxu0 %v1685
  %2600 = vmatpush.bf16.msra.mxu0 %v1684
  %2601 = vmatpush.bf16.msra.mxu0 %v1683
  %2602 = vmatmul.bf16.gmra.mxu0 %v2476
  %v2603 = vpop.f32.mrf.mxu0
  %v2604 = vadd.f32 %v2591, %v2603
  %v2605 = vpop.f32.mrf.mxu0
  %2606 = vdwg.mxu0
  %2607 = vmatpush.bf16.msra.mxu0 %v1698
  %2608 = vmatpush.bf16.msra.mxu0 %v1697
  %2609 = vmatpush.bf16.msra.mxu0 %v1696
  %2610 = vmatpush.bf16.msra.mxu0 %v1695
  %2611 = vmatpush.bf16.msra.mxu0 %v1694
  %2612 = vmatpush.bf16.msra.mxu0 %v1693
  %2613 = vmatpush.bf16.msra.mxu0 %v1692
  %2614 = vmatpush.bf16.msra.mxu0 %v1691
  %2615 = vmatmul.bf16.gmra.mxu0 %v2477
  %v2616 = vpop.f32.mrf.mxu0
  %v2617 = vadd.f32 %v2604, %v2616
  %v2618 = vpop.f32.mrf.mxu0
  %2619 = vdwg.mxu0
  %2620 = vmatpush.bf16.msra.mxu0 %v1706
  %2621 = vmatpush.bf16.msra.mxu0 %v1705
  %2622 = vmatpush.bf16.msra.mxu0 %v1704
  %2623 = vmatpush.bf16.msra.mxu0 %v1703
  %2624 = vmatpush.bf16.msra.mxu0 %v1702
  %2625 = vmatpush.bf16.msra.mxu0 %v1701
  %2626 = vmatpush.bf16.msra.mxu0 %v1700
  %2627 = vmatpush.bf16.msra.mxu0 %v1699
  %2628 = vmatmul.bf16.gmra.mxu0 %v2478
  %v2629 = vpop.f32.mrf.mxu0
  %v2630 = vadd.f32 %v2617, %v2629
  %v2631 = vpop.f32.mrf.mxu0
  %2632 = vdwg.mxu0
  %vm2633 = vcmp.gt.f32.partialorder %v2630, 0.0
  %v2634 = vmin.f32 %v2630, 0.0
  %v2635 = vmul.f32 %v2634, %v345
  %v2636 = vmul.f32 %v2635, 1.442695
  %v2637 = vpow.pop %v2636
  %v2638 = vsub.f32 %v2637, 1.0
  %v2639 = vmul.f32 %v2638, 0.1
  %v2640 = vsel %vm2633, %v2630, %v2639
  %v2641 = vpack.c.bf16 %v2640, %v2640
  %v2643 = vsel %vm389, %v2641, 0
  %2645 = vmatpush.bf16.msra.mxu0 0
  %2646 = vmatpush.bf16.msra.mxu0 0
  %2647 = vmatpush.bf16.msra.mxu0 0
  %2648 = vmatpush.bf16.msra.mxu0 0
  %2649 = vmatpush.bf16.msra.mxu0 %v1978
  %2650 = vmatpush.bf16.msra.mxu0 %v1977
  %2651 = vmatpush.bf16.msra.mxu0 %v1976
  %2652 = vmatpush.bf16.msra.mxu0 %v1975
  %2653 = vmatmul.bf16.gmra.mxu0 %v2643
  %v2654 = vpop.f32.mrf.mxu0
  %v2655 = vadd.f32 %v1957, %v2654
  %v2656 = vpop.f32.mrf.mxu0
  %2657 = vdwg.mxu0
  %vm2658 = vcmp.gt.f32.partialorder %v2655, 0.0
  %v2659 = vmin.f32 %v2655, 0.0
  %v2660 = vmul.f32 %v2659, %v345
  %v2661 = vmul.f32 %v2660, 1.442695
  %v2662 = vpow.pop %v2661
  %v2663 = vsub.f32 %v2662, 1.0
  %v2664 = vmul.f32 %v2663, 0.1
  %v2665 = vsel %vm2658, %v2655, %v2664
  %v2666 = vpack.c.bf16 %v2665, %v2665
  %v2668 = vsel %vm435, %v2666, 0
  %2670 = vmatpush.bf16.msra.mxu0 0
  %2671 = vmatpush.bf16.msra.mxu0 0
  %2672 = vmatpush.bf16.msra.mxu0 0
  %2673 = vmatpush.bf16.msra.mxu0 0
  %2674 = vmatpush.bf16.msra.mxu0 0
  %2675 = vmatpush.bf16.msra.mxu0 0
  %2676 = vmatpush.bf16.msra.mxu0 %v2025
  %2677 = vmatpush.bf16.msra.mxu0 %v2024
  %2678 = vmatmul.bf16.gmra.mxu0 %v2668
  %v2679 = vpop.f32.mrf.mxu0
  %v2680 = vadd.f32 %v2014, %v2679
  %v2681 = vpop.f32.mrf.mxu0
  %2682 = vdwg.mxu0
  %vm2683 = vcmp.gt.f32.partialorder %v2680, 0.0
  %v2684 = vmin.f32 %v2680, 0.0
  %v2685 = vmul.f32 %v2684, %v345
  %v2686 = vmul.f32 %v2685, 1.442695
  %v2687 = vpow.pop %v2686
  %v2688 = vsub.f32 %v2687, 1.0
  %v2689 = vmul.f32 %v2688, 0.1
  %v2690 = vsel %vm2683, %v2680, %v2689
  %v2691 = vpack.c.bf16 %v2690, %v2690
  %v2693 = vsel %vm473, %v2691, 0
  %2695 = vmatpush.bf16.msra.mxu0 0
  %2696 = vmatpush.bf16.msra.mxu0 0
  %2697 = vmatpush.bf16.msra.mxu0 0
  %2698 = vmatpush.bf16.msra.mxu0 0
  %2699 = vmatpush.bf16.msra.mxu0 0
  %2700 = vmatpush.bf16.msra.mxu0 0
  %2701 = vmatpush.bf16.msra.mxu0 0
  %2702 = vmatpush.bf16.msra.mxu0 %v2063
  %2703 = vmatmul.bf16.gmra.mxu0 %v2693
  %v2704 = vpop.f32.mrf.mxu0
  %v2705 = vadd.f32 %v2057, %v2704
  %v2706 = vpop.f32.mrf.mxu0
  %2707 = vdwg.mxu0
  %v2708 = vadd.f32 %v2344, %v2705
  %v2709 = vrot.slane %v2413, 3
  %v2710 = vrot.slane %v2424, 2
  %v2711 = vsel %vm142, %v2710, %v2709
  %v2712 = vrot.slane %v2414, 3
  %v2713 = vrot.slane %v2425, 2
  %v2714 = vsel %vm142, %v2713, %v2712
  %v2715 = vrot.slane %v2415, 3
  %v2716 = vrot.slane %v2426, 2
  %v2717 = vsel %vm142, %v2716, %v2715
  %v2718 = vrot.slane %v2416, 3
  %v2719 = vrot.slane %v2427, 2
  %v2720 = vsel %vm142, %v2719, %v2718
  %v2721 = vrot.slane %v2417, 3
  %v2722 = vrot.slane %v2428, 2
  %v2723 = vsel %vm142, %v2722, %v2721
  %v2724 = vrot.slane %v2418, 3
  %v2725 = vrot.slane %v2429, 2
  %v2726 = vsel %vm142, %v2725, %v2724
  %v2727 = vrot.slane %v2419, 3
  %v2728 = vrot.slane %v2430, 2
  %v2729 = vsel %vm142, %v2728, %v2727
  %v2730 = vrot.slane %v2420, 3
  %v2731 = vrot.slane %v2431, 2
  %v2732 = vsel %vm142, %v2731, %v2730
  %v2733 = vrot.slane %v2421, 3
  %v2734 = vrot.slane %v2432, 2
  %v2735 = vsel %vm142, %v2734, %v2733
  %v2736 = vrot.slane %v2422, 3
  %v2737 = vrot.slane %v2433, 2
  %v2738 = vsel %vm142, %v2737, %v2736
  %v2739 = vrot.slane %v2423, 3
  %v2740 = vrot.slane %v2434, 2
  %v2741 = vsel %vm142, %v2740, %v2739
  %v2742 = vpack.c.b16 %v2711, %v2711
  %v2743 = vpack.c.b16 %v2714, %v2714
  %v2744 = vpack.c.b16 %v2717, %v2717
  %v2745 = vpack.c.b16 %v2720, %v2720
  %v2746 = vpack.c.b16 %v2723, %v2723
  %v2747 = vpack.c.b16 %v2726, %v2726
  %v2748 = vpack.c.b16 %v2729, %v2729
  %v2749 = vpack.c.b16 %v2732, %v2732
  %v2750 = vpack.c.b16 %v2735, %v2735
  %v2751 = vpack.c.b16 %v2738, %v2738
  %v2752 = vpack.c.b16 %v2741, %v2741
  %2764 = vmatpush.bf16.msra.mxu0 %v1626
  %2765 = vmatpush.bf16.msra.mxu0 %v1625
  %2766 = vmatpush.bf16.msra.mxu0 %v1624
  %2767 = vmatpush.bf16.msra.mxu0 %v1623
  %2768 = vmatpush.bf16.msra.mxu0 %v1622
  %2769 = vmatpush.bf16.msra.mxu0 %v1621
  %2770 = vmatpush.bf16.msra.mxu0 %v1620
  %2771 = vmatpush.bf16.msra.mxu0 %v1619
  %2772 = vmatmul.bf16.gmra.mxu0 %v2742
  %v2773 = vpop.f32.mrf.mxu0
  %v2774 = vadd.f32 %v1143, %v2773
  %v2775 = vpop.f32.mrf.mxu0
  %2776 = vdwg.mxu0
  %2777 = vmatpush.bf16.msra.mxu0 %v1634
  %2778 = vmatpush.bf16.msra.mxu0 %v1633
  %2779 = vmatpush.bf16.msra.mxu0 %v1632
  %2780 = vmatpush.bf16.msra.mxu0 %v1631
  %2781 = vmatpush.bf16.msra.mxu0 %v1630
  %2782 = vmatpush.bf16.msra.mxu0 %v1629
  %2783 = vmatpush.bf16.msra.mxu0 %v1628
  %2784 = vmatpush.bf16.msra.mxu0 %v1627
  %2785 = vmatmul.bf16.gmra.mxu0 %v2743
  %v2786 = vpop.f32.mrf.mxu0
  %v2787 = vadd.f32 %v2774, %v2786
  %v2788 = vpop.f32.mrf.mxu0
  %2789 = vdwg.mxu0
  %2790 = vmatpush.bf16.msra.mxu0 %v1642
  %2791 = vmatpush.bf16.msra.mxu0 %v1641
  %2792 = vmatpush.bf16.msra.mxu0 %v1640
  %2793 = vmatpush.bf16.msra.mxu0 %v1639
  %2794 = vmatpush.bf16.msra.mxu0 %v1638
  %2795 = vmatpush.bf16.msra.mxu0 %v1637
  %2796 = vmatpush.bf16.msra.mxu0 %v1636
  %2797 = vmatpush.bf16.msra.mxu0 %v1635
  %2798 = vmatmul.bf16.gmra.mxu0 %v2744
  %v2799 = vpop.f32.mrf.mxu0
  %v2800 = vadd.f32 %v2787, %v2799
  %v2801 = vpop.f32.mrf.mxu0
  %2802 = vdwg.mxu0
  %2803 = vmatpush.bf16.msra.mxu0 %v1650
  %2804 = vmatpush.bf16.msra.mxu0 %v1649
  %2805 = vmatpush.bf16.msra.mxu0 %v1648
  %2806 = vmatpush.bf16.msra.mxu0 %v1647
  %2807 = vmatpush.bf16.msra.mxu0 %v1646
  %2808 = vmatpush.bf16.msra.mxu0 %v1645
  %2809 = vmatpush.bf16.msra.mxu0 %v1644
  %2810 = vmatpush.bf16.msra.mxu0 %v1643
  %2811 = vmatmul.bf16.gmra.mxu0 %v2745
  %v2812 = vpop.f32.mrf.mxu0
  %v2813 = vadd.f32 %v2800, %v2812
  %v2814 = vpop.f32.mrf.mxu0
  %2815 = vdwg.mxu0
  %2816 = vmatpush.bf16.msra.mxu0 %v1658
  %2817 = vmatpush.bf16.msra.mxu0 %v1657
  %2818 = vmatpush.bf16.msra.mxu0 %v1656
  %2819 = vmatpush.bf16.msra.mxu0 %v1655
  %2820 = vmatpush.bf16.msra.mxu0 %v1654
  %2821 = vmatpush.bf16.msra.mxu0 %v1653
  %2822 = vmatpush.bf16.msra.mxu0 %v1652
  %2823 = vmatpush.bf16.msra.mxu0 %v1651
  %2824 = vmatmul.bf16.gmra.mxu0 %v2746
  %v2825 = vpop.f32.mrf.mxu0
  %v2826 = vadd.f32 %v2813, %v2825
  %v2827 = vpop.f32.mrf.mxu0
  %2828 = vdwg.mxu0
  %2829 = vmatpush.bf16.msra.mxu0 %v1666
  %2830 = vmatpush.bf16.msra.mxu0 %v1665
  %2831 = vmatpush.bf16.msra.mxu0 %v1664
  %2832 = vmatpush.bf16.msra.mxu0 %v1663
  %2833 = vmatpush.bf16.msra.mxu0 %v1662
  %2834 = vmatpush.bf16.msra.mxu0 %v1661
  %2835 = vmatpush.bf16.msra.mxu0 %v1660
  %2836 = vmatpush.bf16.msra.mxu0 %v1659
  %2837 = vmatmul.bf16.gmra.mxu0 %v2747
  %v2838 = vpop.f32.mrf.mxu0
  %v2839 = vadd.f32 %v2826, %v2838
  %v2840 = vpop.f32.mrf.mxu0
  %2841 = vdwg.mxu0
  %2842 = vmatpush.bf16.msra.mxu0 %v1674
  %2843 = vmatpush.bf16.msra.mxu0 %v1673
  %2844 = vmatpush.bf16.msra.mxu0 %v1672
  %2845 = vmatpush.bf16.msra.mxu0 %v1671
  %2846 = vmatpush.bf16.msra.mxu0 %v1670
  %2847 = vmatpush.bf16.msra.mxu0 %v1669
  %2848 = vmatpush.bf16.msra.mxu0 %v1668
  %2849 = vmatpush.bf16.msra.mxu0 %v1667
  %2850 = vmatmul.bf16.gmra.mxu0 %v2748
  %v2851 = vpop.f32.mrf.mxu0
  %v2852 = vadd.f32 %v2839, %v2851
  %v2853 = vpop.f32.mrf.mxu0
  %2854 = vdwg.mxu0
  %2855 = vmatpush.bf16.msra.mxu0 %v1682
  %2856 = vmatpush.bf16.msra.mxu0 %v1681
  %2857 = vmatpush.bf16.msra.mxu0 %v1680
  %2858 = vmatpush.bf16.msra.mxu0 %v1679
  %2859 = vmatpush.bf16.msra.mxu0 %v1678
  %2860 = vmatpush.bf16.msra.mxu0 %v1677
  %2861 = vmatpush.bf16.msra.mxu0 %v1676
  %2862 = vmatpush.bf16.msra.mxu0 %v1675
  %2863 = vmatmul.bf16.gmra.mxu0 %v2749
  %v2864 = vpop.f32.mrf.mxu0
  %v2865 = vadd.f32 %v2852, %v2864
  %v2866 = vpop.f32.mrf.mxu0
  %2867 = vdwg.mxu0
  %2868 = vmatpush.bf16.msra.mxu0 %v1690
  %2869 = vmatpush.bf16.msra.mxu0 %v1689
  %2870 = vmatpush.bf16.msra.mxu0 %v1688
  %2871 = vmatpush.bf16.msra.mxu0 %v1687
  %2872 = vmatpush.bf16.msra.mxu0 %v1686
  %2873 = vmatpush.bf16.msra.mxu0 %v1685
  %2874 = vmatpush.bf16.msra.mxu0 %v1684
  %2875 = vmatpush.bf16.msra.mxu0 %v1683
  %2876 = vmatmul.bf16.gmra.mxu0 %v2750
  %v2877 = vpop.f32.mrf.mxu0
  %v2878 = vadd.f32 %v2865, %v2877
  %v2879 = vpop.f32.mrf.mxu0
  %2880 = vdwg.mxu0
  %2881 = vmatpush.bf16.msra.mxu0 %v1698
  %2882 = vmatpush.bf16.msra.mxu0 %v1697
  %2883 = vmatpush.bf16.msra.mxu0 %v1696
  %2884 = vmatpush.bf16.msra.mxu0 %v1695
  %2885 = vmatpush.bf16.msra.mxu0 %v1694
  %2886 = vmatpush.bf16.msra.mxu0 %v1693
  %2887 = vmatpush.bf16.msra.mxu0 %v1692
  %2888 = vmatpush.bf16.msra.mxu0 %v1691
  %2889 = vmatmul.bf16.gmra.mxu0 %v2751
  %v2890 = vpop.f32.mrf.mxu0
  %v2891 = vadd.f32 %v2878, %v2890
  %v2892 = vpop.f32.mrf.mxu0
  %2893 = vdwg.mxu0
  %2894 = vmatpush.bf16.msra.mxu0 %v1706
  %2895 = vmatpush.bf16.msra.mxu0 %v1705
  %2896 = vmatpush.bf16.msra.mxu0 %v1704
  %2897 = vmatpush.bf16.msra.mxu0 %v1703
  %2898 = vmatpush.bf16.msra.mxu0 %v1702
  %2899 = vmatpush.bf16.msra.mxu0 %v1701
  %2900 = vmatpush.bf16.msra.mxu0 %v1700
  %2901 = vmatpush.bf16.msra.mxu0 %v1699
  %2902 = vmatmul.bf16.gmra.mxu0 %v2752
  %v2903 = vpop.f32.mrf.mxu0
  %v2904 = vadd.f32 %v2891, %v2903
  %v2905 = vpop.f32.mrf.mxu0
  %2906 = vdwg.mxu0
  %vm2907 = vcmp.gt.f32.partialorder %v2904, 0.0
  %v2908 = vmin.f32 %v2904, 0.0
  %v2909 = vmul.f32 %v2908, %v345
  %v2910 = vmul.f32 %v2909, 1.442695
  %v2911 = vpow.pop %v2910
  %v2912 = vsub.f32 %v2911, 1.0
  %v2913 = vmul.f32 %v2912, 0.1
  %v2914 = vsel %vm2907, %v2904, %v2913
  %v2915 = vpack.c.bf16 %v2914, %v2914
  %v2917 = vsel %vm389, %v2915, 0
  %2919 = vmatpush.bf16.msra.mxu0 0
  %2920 = vmatpush.bf16.msra.mxu0 0
  %2921 = vmatpush.bf16.msra.mxu0 0
  %2922 = vmatpush.bf16.msra.mxu0 0
  %2923 = vmatpush.bf16.msra.mxu0 %v1978
  %2924 = vmatpush.bf16.msra.mxu0 %v1977
  %2925 = vmatpush.bf16.msra.mxu0 %v1976
  %2926 = vmatpush.bf16.msra.mxu0 %v1975
  %2927 = vmatmul.bf16.gmra.mxu0 %v2917
  %v2928 = vpop.f32.mrf.mxu0
  %v2929 = vadd.f32 %v1957, %v2928
  %v2930 = vpop.f32.mrf.mxu0
  %2931 = vdwg.mxu0
  %vm2932 = vcmp.gt.f32.partialorder %v2929, 0.0
  %v2933 = vmin.f32 %v2929, 0.0
  %v2934 = vmul.f32 %v2933, %v345
  %v2935 = vmul.f32 %v2934, 1.442695
  %v2936 = vpow.pop %v2935
  %v2937 = vsub.f32 %v2936, 1.0
  %v2938 = vmul.f32 %v2937, 0.1
  %v2939 = vsel %vm2932, %v2929, %v2938
  %v2940 = vpack.c.bf16 %v2939, %v2939
  %v2942 = vsel %vm435, %v2940, 0
  %2944 = vmatpush.bf16.msra.mxu0 0
  %2945 = vmatpush.bf16.msra.mxu0 0
  %2946 = vmatpush.bf16.msra.mxu0 0
  %2947 = vmatpush.bf16.msra.mxu0 0
  %2948 = vmatpush.bf16.msra.mxu0 0
  %2949 = vmatpush.bf16.msra.mxu0 0
  %2950 = vmatpush.bf16.msra.mxu0 %v2025
  %2951 = vmatpush.bf16.msra.mxu0 %v2024
  %2952 = vmatmul.bf16.gmra.mxu0 %v2942
  %v2953 = vpop.f32.mrf.mxu0
  %v2954 = vadd.f32 %v2014, %v2953
  %v2955 = vpop.f32.mrf.mxu0
  %2956 = vdwg.mxu0
  %vm2957 = vcmp.gt.f32.partialorder %v2954, 0.0
  %v2958 = vmin.f32 %v2954, 0.0
  %v2959 = vmul.f32 %v2958, %v345
  %v2960 = vmul.f32 %v2959, 1.442695
  %v2961 = vpow.pop %v2960
  %v2962 = vsub.f32 %v2961, 1.0
  %v2963 = vmul.f32 %v2962, 0.1
  %v2964 = vsel %vm2957, %v2954, %v2963
  %v2965 = vpack.c.bf16 %v2964, %v2964
  %v2967 = vsel %vm473, %v2965, 0
  %2969 = vmatpush.bf16.msra.mxu0 0
  %2970 = vmatpush.bf16.msra.mxu0 0
  %2971 = vmatpush.bf16.msra.mxu0 0
  %2972 = vmatpush.bf16.msra.mxu0 0
  %2973 = vmatpush.bf16.msra.mxu0 0
  %2974 = vmatpush.bf16.msra.mxu0 0
  %2975 = vmatpush.bf16.msra.mxu0 0
  %2976 = vmatpush.bf16.msra.mxu0 %v2063
  %2977 = vmatmul.bf16.gmra.mxu0 %v2967
  %v2978 = vpop.f32.mrf.mxu0
  %v2979 = vadd.f32 %v2057, %v2978
  %v2980 = vpop.f32.mrf.mxu0
  %2981 = vdwg.mxu0
  %v2982 = vadd.f32 %v2708, %v2979
  %v2983 = vld [vmem:[%s1] sm:$0x44]
  %v2984 = vld [vmem:[%s1 + $0x8] sm:$0x44]
  %v2985 = vld [vmem:[%s1 + $0x10] sm:$0x44]
  %v2986 = vld [vmem:[%s1 + $0x18] sm:$0x44]
  %v2987 = vld [vmem:[%s1 + $0x20] sm:$0x44]
  %v2988 = vld [vmem:[%s1 + $0x28] sm:$0x4]
  %v2989 = vld [vmem:[%s1 + $0x2c] sm:$0x44]
  %v2990 = vld [vmem:[%s1 + $0x34] sm:$0x44]
  %v2991 = vld [vmem:[%s1 + $0x3c] sm:$0x44]
  %v2992 = vld [vmem:[%s1 + $0x44] sm:$0x44]
  %v2993 = vld [vmem:[%s1 + $0x4c] sm:$0x44]
  %v2994 = vld [vmem:[%s1 + $0x54] sm:$0x4]
  %v3007 = vunpack.c.l.b16 %v2983
  %v3008 = vunpack.c.h.b16 %v2983
  %v3009 = vunpack.c.l.b16 %v2984
  %v3010 = vunpack.c.h.b16 %v2984
  %v3011 = vunpack.c.l.b16 %v2985
  %v3012 = vunpack.c.h.b16 %v2985
  %v3013 = vunpack.c.l.b16 %v2986
  %v3014 = vunpack.c.h.b16 %v2986
  %v3015 = vunpack.c.l.b16 %v2987
  %v3016 = vunpack.c.h.b16 %v2987
  %v3017 = vunpack.c.l.b16 %v2988
  %v3018 = vunpack.c.l.b16 %v2989
  %v3019 = vunpack.c.h.b16 %v2989
  %v3020 = vunpack.c.l.b16 %v2990
  %v3021 = vunpack.c.h.b16 %v2990
  %v3022 = vunpack.c.l.b16 %v2991
  %v3023 = vunpack.c.h.b16 %v2991
  %v3024 = vunpack.c.l.b16 %v2992
  %v3025 = vunpack.c.h.b16 %v2992
  %v3026 = vunpack.c.l.b16 %v2993
  %v3027 = vunpack.c.h.b16 %v2993
  %v3028 = vunpack.c.l.b16 %v2994
  %v3029 = vpack.c.b16 %v3007, %v3007
  %v3030 = vpack.c.b16 %v3008, %v3008
  %v3031 = vpack.c.b16 %v3009, %v3009
  %v3032 = vpack.c.b16 %v3010, %v3010
  %v3033 = vpack.c.b16 %v3011, %v3011
  %v3034 = vpack.c.b16 %v3012, %v3012
  %v3035 = vpack.c.b16 %v3013, %v3013
  %v3036 = vpack.c.b16 %v3014, %v3014
  %v3037 = vpack.c.b16 %v3015, %v3015
  %v3038 = vpack.c.b16 %v3016, %v3016
  %v3039 = vpack.c.b16 %v3017, %v3017
  %v3040 = vpack.c.b16 %v3018, %v3018
  %v3041 = vpack.c.b16 %v3019, %v3019
  %v3042 = vpack.c.b16 %v3020, %v3020
  %v3043 = vpack.c.b16 %v3021, %v3021
  %v3044 = vpack.c.b16 %v3022, %v3022
  %v3045 = vpack.c.b16 %v3023, %v3023
  %v3046 = vpack.c.b16 %v3024, %v3024
  %v3047 = vpack.c.b16 %v3025, %v3025
  %v3048 = vpack.c.b16 %v3026, %v3026
  %v3049 = vpack.c.b16 %v3027, %v3027
  %v3050 = vpack.c.b16 %v3028, %v3028
  %v3051 = vunpack.c.l.b16 %v3029
  %v3052 = vunpack.c.l.b16 %v3030
  %v3053 = vunpack.c.l.b16 %v3031
  %v3054 = vunpack.c.l.b16 %v3032
  %v3055 = vunpack.c.l.b16 %v3033
  %v3056 = vunpack.c.l.b16 %v3034
  %v3057 = vunpack.c.l.b16 %v3035
  %v3058 = vunpack.c.l.b16 %v3036
  %v3059 = vunpack.c.l.b16 %v3037
  %v3060 = vunpack.c.l.b16 %v3038
  %v3061 = vunpack.c.l.b16 %v3039
  %v3062 = vunpack.c.l.b16 %v3040
  %v3063 = vunpack.c.l.b16 %v3041
  %v3064 = vunpack.c.l.b16 %v3042
  %v3065 = vunpack.c.l.b16 %v3043
  %v3066 = vunpack.c.l.b16 %v3044
  %v3067 = vunpack.c.l.b16 %v3045
  %v3068 = vunpack.c.l.b16 %v3046
  %v3069 = vunpack.c.l.b16 %v3047
  %v3070 = vunpack.c.l.b16 %v3048
  %v3071 = vunpack.c.l.b16 %v3049
  %v3072 = vunpack.c.l.b16 %v3050
  %v3073 = vrot.slane %v3051, 4
  %v3074 = vrot.slane %v3062, 3
  %v3075 = vsel %vm142, %v3074, %v3073
  %v3076 = vrot.slane %v3052, 4
  %v3077 = vrot.slane %v3063, 3
  %v3078 = vsel %vm142, %v3077, %v3076
  %v3079 = vrot.slane %v3053, 4
  %v3080 = vrot.slane %v3064, 3
  %v3081 = vsel %vm142, %v3080, %v3079
  %v3082 = vrot.slane %v3054, 4
  %v3083 = vrot.slane %v3065, 3
  %v3084 = vsel %vm142, %v3083, %v3082
  %v3085 = vrot.slane %v3055, 4
  %v3086 = vrot.slane %v3066, 3
  %v3087 = vsel %vm142, %v3086, %v3085
  %v3088 = vrot.slane %v3056, 4
  %v3089 = vrot.slane %v3067, 3
  %v3090 = vsel %vm142, %v3089, %v3088
  %v3091 = vrot.slane %v3057, 4
  %v3092 = vrot.slane %v3068, 3
  %v3093 = vsel %vm142, %v3092, %v3091
  %v3094 = vrot.slane %v3058, 4
  %v3095 = vrot.slane %v3069, 3
  %v3096 = vsel %vm142, %v3095, %v3094
  %v3097 = vrot.slane %v3059, 4
  %v3098 = vrot.slane %v3070, 3
  %v3099 = vsel %vm142, %v3098, %v3097
  %v3100 = vrot.slane %v3060, 4
  %v3101 = vrot.slane %v3071, 3
  %v3102 = vsel %vm142, %v3101, %v3100
  %v3103 = vrot.slane %v3061, 4
  %v3104 = vrot.slane %v3072, 3
  %v3105 = vsel %vm142, %v3104, %v3103
  %v3106 = vpack.c.b16 %v3075, %v3075
  %v3107 = vpack.c.b16 %v3078, %v3078
  %v3108 = vpack.c.b16 %v3081, %v3081
  %v3109 = vpack.c.b16 %v3084, %v3084
  %v3110 = vpack.c.b16 %v3087, %v3087
  %v3111 = vpack.c.b16 %v3090, %v3090
  %v3112 = vpack.c.b16 %v3093, %v3093
  %v3113 = vpack.c.b16 %v3096, %v3096
  %v3114 = vpack.c.b16 %v3099, %v3099
  %v3115 = vpack.c.b16 %v3102, %v3102
  %v3116 = vpack.c.b16 %v3105, %v3105
  %3128 = vmatpush.bf16.msra.mxu0 %v1626
  %3129 = vmatpush.bf16.msra.mxu0 %v1625
  %3130 = vmatpush.bf16.msra.mxu0 %v1624
  %3131 = vmatpush.bf16.msra.mxu0 %v1623
  %3132 = vmatpush.bf16.msra.mxu0 %v1622
  %3133 = vmatpush.bf16.msra.mxu0 %v1621
  %3134 = vmatpush.bf16.msra.mxu0 %v1620
  %3135 = vmatpush.bf16.msra.mxu0 %v1619
  %3136 = vmatmul.bf16.gmra.mxu0 %v3106
  %v3137 = vpop.f32.mrf.mxu0
  %v3138 = vadd.f32 %v1143, %v3137
  %v3139 = vpop.f32.mrf.mxu0
  %3140 = vdwg.mxu0
  %3141 = vmatpush.bf16.msra.mxu0 %v1634
  %3142 = vmatpush.bf16.msra.mxu0 %v1633
  %3143 = vmatpush.bf16.msra.mxu0 %v1632
  %3144 = vmatpush.bf16.msra.mxu0 %v1631
  %3145 = vmatpush.bf16.msra.mxu0 %v1630
  %3146 = vmatpush.bf16.msra.mxu0 %v1629
  %3147 = vmatpush.bf16.msra.mxu0 %v1628
  %3148 = vmatpush.bf16.msra.mxu0 %v1627
  %3149 = vmatmul.bf16.gmra.mxu0 %v3107
  %v3150 = vpop.f32.mrf.mxu0
  %v3151 = vadd.f32 %v3138, %v3150
  %v3152 = vpop.f32.mrf.mxu0
  %3153 = vdwg.mxu0
  %3154 = vmatpush.bf16.msra.mxu0 %v1642
  %3155 = vmatpush.bf16.msra.mxu0 %v1641
  %3156 = vmatpush.bf16.msra.mxu0 %v1640
  %3157 = vmatpush.bf16.msra.mxu0 %v1639
  %3158 = vmatpush.bf16.msra.mxu0 %v1638
  %3159 = vmatpush.bf16.msra.mxu0 %v1637
  %3160 = vmatpush.bf16.msra.mxu0 %v1636
  %3161 = vmatpush.bf16.msra.mxu0 %v1635
  %3162 = vmatmul.bf16.gmra.mxu0 %v3108
  %v3163 = vpop.f32.mrf.mxu0
  %v3164 = vadd.f32 %v3151, %v3163
  %v3165 = vpop.f32.mrf.mxu0
  %3166 = vdwg.mxu0
  %3167 = vmatpush.bf16.msra.mxu0 %v1650
  %3168 = vmatpush.bf16.msra.mxu0 %v1649
  %3169 = vmatpush.bf16.msra.mxu0 %v1648
  %3170 = vmatpush.bf16.msra.mxu0 %v1647
  %3171 = vmatpush.bf16.msra.mxu0 %v1646
  %3172 = vmatpush.bf16.msra.mxu0 %v1645
  %3173 = vmatpush.bf16.msra.mxu0 %v1644
  %3174 = vmatpush.bf16.msra.mxu0 %v1643
  %3175 = vmatmul.bf16.gmra.mxu0 %v3109
  %v3176 = vpop.f32.mrf.mxu0
  %v3177 = vadd.f32 %v3164, %v3176
  %v3178 = vpop.f32.mrf.mxu0
  %3179 = vdwg.mxu0
  %3180 = vmatpush.bf16.msra.mxu0 %v1658
  %3181 = vmatpush.bf16.msra.mxu0 %v1657
  %3182 = vmatpush.bf16.msra.mxu0 %v1656
  %3183 = vmatpush.bf16.msra.mxu0 %v1655
  %3184 = vmatpush.bf16.msra.mxu0 %v1654
  %3185 = vmatpush.bf16.msra.mxu0 %v1653
  %3186 = vmatpush.bf16.msra.mxu0 %v1652
  %3187 = vmatpush.bf16.msra.mxu0 %v1651
  %3188 = vmatmul.bf16.gmra.mxu0 %v3110
  %v3189 = vpop.f32.mrf.mxu0
  %v3190 = vadd.f32 %v3177, %v3189
  %v3191 = vpop.f32.mrf.mxu0
  %3192 = vdwg.mxu0
  %3193 = vmatpush.bf16.msra.mxu0 %v1666
  %3194 = vmatpush.bf16.msra.mxu0 %v1665
  %3195 = vmatpush.bf16.msra.mxu0 %v1664
  %3196 = vmatpush.bf16.msra.mxu0 %v1663
  %3197 = vmatpush.bf16.msra.mxu0 %v1662
  %3198 = vmatpush.bf16.msra.mxu0 %v1661
  %3199 = vmatpush.bf16.msra.mxu0 %v1660
  %3200 = vmatpush.bf16.msra.mxu0 %v1659
  %3201 = vmatmul.bf16.gmra.mxu0 %v3111
  %v3202 = vpop.f32.mrf.mxu0
  %v3203 = vadd.f32 %v3190, %v3202
  %v3204 = vpop.f32.mrf.mxu0
  %3205 = vdwg.mxu0
  %3206 = vmatpush.bf16.msra.mxu0 %v1674
  %3207 = vmatpush.bf16.msra.mxu0 %v1673
  %3208 = vmatpush.bf16.msra.mxu0 %v1672
  %3209 = vmatpush.bf16.msra.mxu0 %v1671
  %3210 = vmatpush.bf16.msra.mxu0 %v1670
  %3211 = vmatpush.bf16.msra.mxu0 %v1669
  %3212 = vmatpush.bf16.msra.mxu0 %v1668
  %3213 = vmatpush.bf16.msra.mxu0 %v1667
  %3214 = vmatmul.bf16.gmra.mxu0 %v3112
  %v3215 = vpop.f32.mrf.mxu0
  %v3216 = vadd.f32 %v3203, %v3215
  %v3217 = vpop.f32.mrf.mxu0
  %3218 = vdwg.mxu0
  %3219 = vmatpush.bf16.msra.mxu0 %v1682
  %3220 = vmatpush.bf16.msra.mxu0 %v1681
  %3221 = vmatpush.bf16.msra.mxu0 %v1680
  %3222 = vmatpush.bf16.msra.mxu0 %v1679
  %3223 = vmatpush.bf16.msra.mxu0 %v1678
  %3224 = vmatpush.bf16.msra.mxu0 %v1677
  %3225 = vmatpush.bf16.msra.mxu0 %v1676
  %3226 = vmatpush.bf16.msra.mxu0 %v1675
  %3227 = vmatmul.bf16.gmra.mxu0 %v3113
  %v3228 = vpop.f32.mrf.mxu0
  %v3229 = vadd.f32 %v3216, %v3228
  %v3230 = vpop.f32.mrf.mxu0
  %3231 = vdwg.mxu0
  %3232 = vmatpush.bf16.msra.mxu0 %v1690
  %3233 = vmatpush.bf16.msra.mxu0 %v1689
  %3234 = vmatpush.bf16.msra.mxu0 %v1688
  %3235 = vmatpush.bf16.msra.mxu0 %v1687
  %3236 = vmatpush.bf16.msra.mxu0 %v1686
  %3237 = vmatpush.bf16.msra.mxu0 %v1685
  %3238 = vmatpush.bf16.msra.mxu0 %v1684
  %3239 = vmatpush.bf16.msra.mxu0 %v1683
  %3240 = vmatmul.bf16.gmra.mxu0 %v3114
  %v3241 = vpop.f32.mrf.mxu0
  %v3242 = vadd.f32 %v3229, %v3241
  %v3243 = vpop.f32.mrf.mxu0
  %3244 = vdwg.mxu0
  %3245 = vmatpush.bf16.msra.mxu0 %v1698
  %3246 = vmatpush.bf16.msra.mxu0 %v1697
  %3247 = vmatpush.bf16.msra.mxu0 %v1696
  %3248 = vmatpush.bf16.msra.mxu0 %v1695
  %3249 = vmatpush.bf16.msra.mxu0 %v1694
  %3250 = vmatpush.bf16.msra.mxu0 %v1693
  %3251 = vmatpush.bf16.msra.mxu0 %v1692
  %3252 = vmatpush.bf16.msra.mxu0 %v1691
  %3253 = vmatmul.bf16.gmra.mxu0 %v3115
  %v3254 = vpop.f32.mrf.mxu0
  %v3255 = vadd.f32 %v3242, %v3254
  %v3256 = vpop.f32.mrf.mxu0
  %3257 = vdwg.mxu0
  %3258 = vmatpush.bf16.msra.mxu0 %v1706
  %3259 = vmatpush.bf16.msra.mxu0 %v1705
  %3260 = vmatpush.bf16.msra.mxu0 %v1704
  %3261 = vmatpush.bf16.msra.mxu0 %v1703
  %3262 = vmatpush.bf16.msra.mxu0 %v1702
  %3263 = vmatpush.bf16.msra.mxu0 %v1701
  %3264 = vmatpush.bf16.msra.mxu0 %v1700
  %3265 = vmatpush.bf16.msra.mxu0 %v1699
  %3266 = vmatmul.bf16.gmra.mxu0 %v3116
  %v3267 = vpop.f32.mrf.mxu0
  %v3268 = vadd.f32 %v3255, %v3267
  %v3269 = vpop.f32.mrf.mxu0
  %3270 = vdwg.mxu0
  %vm3271 = vcmp.gt.f32.partialorder %v3268, 0.0
  %v3272 = vmin.f32 %v3268, 0.0
  %v3273 = vmul.f32 %v3272, %v345
  %v3274 = vmul.f32 %v3273, 1.442695
  %v3275 = vpow.pop %v3274
  %v3276 = vsub.f32 %v3275, 1.0
  %v3277 = vmul.f32 %v3276, 0.1
  %v3278 = vsel %vm3271, %v3268, %v3277
  %v3279 = vpack.c.bf16 %v3278, %v3278
  %v3281 = vsel %vm389, %v3279, 0
  %3283 = vmatpush.bf16.msra.mxu0 0
  %3284 = vmatpush.bf16.msra.mxu0 0
  %3285 = vmatpush.bf16.msra.mxu0 0
  %3286 = vmatpush.bf16.msra.mxu0 0
  %3287 = vmatpush.bf16.msra.mxu0 %v1978
  %3288 = vmatpush.bf16.msra.mxu0 %v1977
  %3289 = vmatpush.bf16.msra.mxu0 %v1976
  %3290 = vmatpush.bf16.msra.mxu0 %v1975
  %3291 = vmatmul.bf16.gmra.mxu0 %v3281
  %v3292 = vpop.f32.mrf.mxu0
  %v3293 = vadd.f32 %v1957, %v3292
  %v3294 = vpop.f32.mrf.mxu0
  %3295 = vdwg.mxu0
  %vm3296 = vcmp.gt.f32.partialorder %v3293, 0.0
  %v3297 = vmin.f32 %v3293, 0.0
  %v3298 = vmul.f32 %v3297, %v345
  %v3299 = vmul.f32 %v3298, 1.442695
  %v3300 = vpow.pop %v3299
  %v3301 = vsub.f32 %v3300, 1.0
  %v3302 = vmul.f32 %v3301, 0.1
  %v3303 = vsel %vm3296, %v3293, %v3302
  %v3304 = vpack.c.bf16 %v3303, %v3303
  %v3306 = vsel %vm435, %v3304, 0
  %3308 = vmatpush.bf16.msra.mxu0 0
  %3309 = vmatpush.bf16.msra.mxu0 0
  %3310 = vmatpush.bf16.msra.mxu0 0
  %3311 = vmatpush.bf16.msra.mxu0 0
  %3312 = vmatpush.bf16.msra.mxu0 0
  %3313 = vmatpush.bf16.msra.mxu0 0
  %3314 = vmatpush.bf16.msra.mxu0 %v2025
  %3315 = vmatpush.bf16.msra.mxu0 %v2024
  %3316 = vmatmul.bf16.gmra.mxu0 %v3306
  %v3317 = vpop.f32.mrf.mxu0
  %v3318 = vadd.f32 %v2014, %v3317
  %v3319 = vpop.f32.mrf.mxu0
  %3320 = vdwg.mxu0
  %vm3321 = vcmp.gt.f32.partialorder %v3318, 0.0
  %v3322 = vmin.f32 %v3318, 0.0
  %v3323 = vmul.f32 %v3322, %v345
  %v3324 = vmul.f32 %v3323, 1.442695
  %v3325 = vpow.pop %v3324
  %v3326 = vsub.f32 %v3325, 1.0
  %v3327 = vmul.f32 %v3326, 0.1
  %v3328 = vsel %vm3321, %v3318, %v3327
  %v3329 = vpack.c.bf16 %v3328, %v3328
  %v3331 = vsel %vm473, %v3329, 0
  %3333 = vmatpush.bf16.msra.mxu0 0
  %3334 = vmatpush.bf16.msra.mxu0 0
  %3335 = vmatpush.bf16.msra.mxu0 0
  %3336 = vmatpush.bf16.msra.mxu0 0
  %3337 = vmatpush.bf16.msra.mxu0 0
  %3338 = vmatpush.bf16.msra.mxu0 0
  %3339 = vmatpush.bf16.msra.mxu0 0
  %3340 = vmatpush.bf16.msra.mxu0 %v2063
  %3341 = vmatmul.bf16.gmra.mxu0 %v3331
  %v3342 = vpop.f32.mrf.mxu0
  %v3343 = vadd.f32 %v2057, %v3342
  %v3344 = vpop.f32.mrf.mxu0
  %3345 = vdwg.mxu0
  %v3346 = vadd.f32 %v2982, %v3343
  %v3347 = vrot.slane %v3051, 5
  %v3348 = vrot.slane %v3062, 4
  %v3349 = vsel %vm142, %v3348, %v3347
  %v3350 = vrot.slane %v3052, 5
  %v3351 = vrot.slane %v3063, 4
  %v3352 = vsel %vm142, %v3351, %v3350
  %v3353 = vrot.slane %v3053, 5
  %v3354 = vrot.slane %v3064, 4
  %v3355 = vsel %vm142, %v3354, %v3353
  %v3356 = vrot.slane %v3054, 5
  %v3357 = vrot.slane %v3065, 4
  %v3358 = vsel %vm142, %v3357, %v3356
  %v3359 = vrot.slane %v3055, 5
  %v3360 = vrot.slane %v3066, 4
  %v3361 = vsel %vm142, %v3360, %v3359
  %v3362 = vrot.slane %v3056, 5
  %v3363 = vrot.slane %v3067, 4
  %v3364 = vsel %vm142, %v3363, %v3362
  %v3365 = vrot.slane %v3057, 5
  %v3366 = vrot.slane %v3068, 4
  %v3367 = vsel %vm142, %v3366, %v3365
  %v3368 = vrot.slane %v3058, 5
  %v3369 = vrot.slane %v3069, 4
  %v3370 = vsel %vm142, %v3369, %v3368
  %v3371 = vrot.slane %v3059, 5
  %v3372 = vrot.slane %v3070, 4
  %v3373 = vsel %vm142, %v3372, %v3371
  %v3374 = vrot.slane %v3060, 5
  %v3375 = vrot.slane %v3071, 4
  %v3376 = vsel %vm142, %v3375, %v3374
  %v3377 = vrot.slane %v3061, 5
  %v3378 = vrot.slane %v3072, 4
  %v3379 = vsel %vm142, %v3378, %v3377
  %v3380 = vpack.c.b16 %v3349, %v3349
  %v3381 = vpack.c.b16 %v3352, %v3352
  %v3382 = vpack.c.b16 %v3355, %v3355
  %v3383 = vpack.c.b16 %v3358, %v3358
  %v3384 = vpack.c.b16 %v3361, %v3361
  %v3385 = vpack.c.b16 %v3364, %v3364
  %v3386 = vpack.c.b16 %v3367, %v3367
  %v3387 = vpack.c.b16 %v3370, %v3370
  %v3388 = vpack.c.b16 %v3373, %v3373
  %v3389 = vpack.c.b16 %v3376, %v3376
  %v3390 = vpack.c.b16 %v3379, %v3379
  %3402 = vmatpush.bf16.msra.mxu0 %v1626
  %3403 = vmatpush.bf16.msra.mxu0 %v1625
  %3404 = vmatpush.bf16.msra.mxu0 %v1624
  %3405 = vmatpush.bf16.msra.mxu0 %v1623
  %3406 = vmatpush.bf16.msra.mxu0 %v1622
  %3407 = vmatpush.bf16.msra.mxu0 %v1621
  %3408 = vmatpush.bf16.msra.mxu0 %v1620
  %3409 = vmatpush.bf16.msra.mxu0 %v1619
  %3410 = vmatmul.bf16.gmra.mxu0 %v3380
  %v3411 = vpop.f32.mrf.mxu0
  %v3412 = vadd.f32 %v1143, %v3411
  %v3413 = vpop.f32.mrf.mxu0
  %3414 = vdwg.mxu0
  %3415 = vmatpush.bf16.msra.mxu0 %v1634
  %3416 = vmatpush.bf16.msra.mxu0 %v1633
  %3417 = vmatpush.bf16.msra.mxu0 %v1632
  %3418 = vmatpush.bf16.msra.mxu0 %v1631
  %3419 = vmatpush.bf16.msra.mxu0 %v1630
  %3420 = vmatpush.bf16.msra.mxu0 %v1629
  %3421 = vmatpush.bf16.msra.mxu0 %v1628
  %3422 = vmatpush.bf16.msra.mxu0 %v1627
  %3423 = vmatmul.bf16.gmra.mxu0 %v3381
  %v3424 = vpop.f32.mrf.mxu0
  %v3425 = vadd.f32 %v3412, %v3424
  %v3426 = vpop.f32.mrf.mxu0
  %3427 = vdwg.mxu0
  %3428 = vmatpush.bf16.msra.mxu0 %v1642
  %3429 = vmatpush.bf16.msra.mxu0 %v1641
  %3430 = vmatpush.bf16.msra.mxu0 %v1640
  %3431 = vmatpush.bf16.msra.mxu0 %v1639
  %3432 = vmatpush.bf16.msra.mxu0 %v1638
  %3433 = vmatpush.bf16.msra.mxu0 %v1637
  %3434 = vmatpush.bf16.msra.mxu0 %v1636
  %3435 = vmatpush.bf16.msra.mxu0 %v1635
  %3436 = vmatmul.bf16.gmra.mxu0 %v3382
  %v3437 = vpop.f32.mrf.mxu0
  %v3438 = vadd.f32 %v3425, %v3437
  %v3439 = vpop.f32.mrf.mxu0
  %3440 = vdwg.mxu0
  %3441 = vmatpush.bf16.msra.mxu0 %v1650
  %3442 = vmatpush.bf16.msra.mxu0 %v1649
  %3443 = vmatpush.bf16.msra.mxu0 %v1648
  %3444 = vmatpush.bf16.msra.mxu0 %v1647
  %3445 = vmatpush.bf16.msra.mxu0 %v1646
  %3446 = vmatpush.bf16.msra.mxu0 %v1645
  %3447 = vmatpush.bf16.msra.mxu0 %v1644
  %3448 = vmatpush.bf16.msra.mxu0 %v1643
  %3449 = vmatmul.bf16.gmra.mxu0 %v3383
  %v3450 = vpop.f32.mrf.mxu0
  %v3451 = vadd.f32 %v3438, %v3450
  %v3452 = vpop.f32.mrf.mxu0
  %3453 = vdwg.mxu0
  %3454 = vmatpush.bf16.msra.mxu0 %v1658
  %3455 = vmatpush.bf16.msra.mxu0 %v1657
  %3456 = vmatpush.bf16.msra.mxu0 %v1656
  %3457 = vmatpush.bf16.msra.mxu0 %v1655
  %3458 = vmatpush.bf16.msra.mxu0 %v1654
  %3459 = vmatpush.bf16.msra.mxu0 %v1653
  %3460 = vmatpush.bf16.msra.mxu0 %v1652
  %3461 = vmatpush.bf16.msra.mxu0 %v1651
  %3462 = vmatmul.bf16.gmra.mxu0 %v3384
  %v3463 = vpop.f32.mrf.mxu0
  %v3464 = vadd.f32 %v3451, %v3463
  %v3465 = vpop.f32.mrf.mxu0
  %3466 = vdwg.mxu0
  %3467 = vmatpush.bf16.msra.mxu0 %v1666
  %3468 = vmatpush.bf16.msra.mxu0 %v1665
  %3469 = vmatpush.bf16.msra.mxu0 %v1664
  %3470 = vmatpush.bf16.msra.mxu0 %v1663
  %3471 = vmatpush.bf16.msra.mxu0 %v1662
  %3472 = vmatpush.bf16.msra.mxu0 %v1661
  %3473 = vmatpush.bf16.msra.mxu0 %v1660
  %3474 = vmatpush.bf16.msra.mxu0 %v1659
  %3475 = vmatmul.bf16.gmra.mxu0 %v3385
  %v3476 = vpop.f32.mrf.mxu0
  %v3477 = vadd.f32 %v3464, %v3476
  %v3478 = vpop.f32.mrf.mxu0
  %3479 = vdwg.mxu0
  %3480 = vmatpush.bf16.msra.mxu0 %v1674
  %3481 = vmatpush.bf16.msra.mxu0 %v1673
  %3482 = vmatpush.bf16.msra.mxu0 %v1672
  %3483 = vmatpush.bf16.msra.mxu0 %v1671
  %3484 = vmatpush.bf16.msra.mxu0 %v1670
  %3485 = vmatpush.bf16.msra.mxu0 %v1669
  %3486 = vmatpush.bf16.msra.mxu0 %v1668
  %3487 = vmatpush.bf16.msra.mxu0 %v1667
  %3488 = vmatmul.bf16.gmra.mxu0 %v3386
  %v3489 = vpop.f32.mrf.mxu0
  %v3490 = vadd.f32 %v3477, %v3489
  %v3491 = vpop.f32.mrf.mxu0
  %3492 = vdwg.mxu0
  %3493 = vmatpush.bf16.msra.mxu0 %v1682
  %3494 = vmatpush.bf16.msra.mxu0 %v1681
  %3495 = vmatpush.bf16.msra.mxu0 %v1680
  %3496 = vmatpush.bf16.msra.mxu0 %v1679
  %3497 = vmatpush.bf16.msra.mxu0 %v1678
  %3498 = vmatpush.bf16.msra.mxu0 %v1677
  %3499 = vmatpush.bf16.msra.mxu0 %v1676
  %3500 = vmatpush.bf16.msra.mxu0 %v1675
  %3501 = vmatmul.bf16.gmra.mxu0 %v3387
  %v3502 = vpop.f32.mrf.mxu0
  %v3503 = vadd.f32 %v3490, %v3502
  %v3504 = vpop.f32.mrf.mxu0
  %3505 = vdwg.mxu0
  %3506 = vmatpush.bf16.msra.mxu0 %v1690
  %3507 = vmatpush.bf16.msra.mxu0 %v1689
  %3508 = vmatpush.bf16.msra.mxu0 %v1688
  %3509 = vmatpush.bf16.msra.mxu0 %v1687
  %3510 = vmatpush.bf16.msra.mxu0 %v1686
  %3511 = vmatpush.bf16.msra.mxu0 %v1685
  %3512 = vmatpush.bf16.msra.mxu0 %v1684
  %3513 = vmatpush.bf16.msra.mxu0 %v1683
  %3514 = vmatmul.bf16.gmra.mxu0 %v3388
  %v3515 = vpop.f32.mrf.mxu0
  %v3516 = vadd.f32 %v3503, %v3515
  %v3517 = vpop.f32.mrf.mxu0
  %3518 = vdwg.mxu0
  %3519 = vmatpush.bf16.msra.mxu0 %v1698
  %3520 = vmatpush.bf16.msra.mxu0 %v1697
  %3521 = vmatpush.bf16.msra.mxu0 %v1696
  %3522 = vmatpush.bf16.msra.mxu0 %v1695
  %3523 = vmatpush.bf16.msra.mxu0 %v1694
  %3524 = vmatpush.bf16.msra.mxu0 %v1693
  %3525 = vmatpush.bf16.msra.mxu0 %v1692
  %3526 = vmatpush.bf16.msra.mxu0 %v1691
  %3527 = vmatmul.bf16.gmra.mxu0 %v3389
  %v3528 = vpop.f32.mrf.mxu0
  %v3529 = vadd.f32 %v3516, %v3528
  %v3530 = vpop.f32.mrf.mxu0
  %3531 = vdwg.mxu0
  %3532 = vmatpush.bf16.msra.mxu0 %v1706
  %3533 = vmatpush.bf16.msra.mxu0 %v1705
  %3534 = vmatpush.bf16.msra.mxu0 %v1704
  %3535 = vmatpush.bf16.msra.mxu0 %v1703
  %3536 = vmatpush.bf16.msra.mxu0 %v1702
  %3537 = vmatpush.bf16.msra.mxu0 %v1701
  %3538 = vmatpush.bf16.msra.mxu0 %v1700
  %3539 = vmatpush.bf16.msra.mxu0 %v1699
  %3540 = vmatmul.bf16.gmra.mxu0 %v3390
  %v3541 = vpop.f32.mrf.mxu0
  %v3542 = vadd.f32 %v3529, %v3541
  %v3543 = vpop.f32.mrf.mxu0
  %3544 = vdwg.mxu0
  %vm3545 = vcmp.gt.f32.partialorder %v3542, 0.0
  %v3546 = vmin.f32 %v3542, 0.0
  %v3547 = vmul.f32 %v3546, %v345
  %v3548 = vmul.f32 %v3547, 1.442695
  %v3549 = vpow.pop %v3548
  %v3550 = vsub.f32 %v3549, 1.0
  %v3551 = vmul.f32 %v3550, 0.1
  %v3552 = vsel %vm3545, %v3542, %v3551
  %v3553 = vpack.c.bf16 %v3552, %v3552
  %v3555 = vsel %vm389, %v3553, 0
  %3557 = vmatpush.bf16.msra.mxu0 0
  %3558 = vmatpush.bf16.msra.mxu0 0
  %3559 = vmatpush.bf16.msra.mxu0 0
  %3560 = vmatpush.bf16.msra.mxu0 0
  %3561 = vmatpush.bf16.msra.mxu0 %v1978
  %3562 = vmatpush.bf16.msra.mxu0 %v1977
  %3563 = vmatpush.bf16.msra.mxu0 %v1976
  %3564 = vmatpush.bf16.msra.mxu0 %v1975
  %3565 = vmatmul.bf16.gmra.mxu0 %v3555
  %v3566 = vpop.f32.mrf.mxu0
  %v3567 = vadd.f32 %v1957, %v3566
  %v3568 = vpop.f32.mrf.mxu0
  %3569 = vdwg.mxu0
  %vm3570 = vcmp.gt.f32.partialorder %v3567, 0.0
  %v3571 = vmin.f32 %v3567, 0.0
  %v3572 = vmul.f32 %v3571, %v345
  %v3573 = vmul.f32 %v3572, 1.442695
  %v3574 = vpow.pop %v3573
  %v3575 = vsub.f32 %v3574, 1.0
  %v3576 = vmul.f32 %v3575, 0.1
  %v3577 = vsel %vm3570, %v3567, %v3576
  %v3578 = vpack.c.bf16 %v3577, %v3577
  %v3580 = vsel %vm435, %v3578, 0
  %3582 = vmatpush.bf16.msra.mxu0 0
  %3583 = vmatpush.bf16.msra.mxu0 0
  %3584 = vmatpush.bf16.msra.mxu0 0
  %3585 = vmatpush.bf16.msra.mxu0 0
  %3586 = vmatpush.bf16.msra.mxu0 0
  %3587 = vmatpush.bf16.msra.mxu0 0
  %3588 = vmatpush.bf16.msra.mxu0 %v2025
  %3589 = vmatpush.bf16.msra.mxu0 %v2024
  %3590 = vmatmul.bf16.gmra.mxu0 %v3580
  %v3591 = vpop.f32.mrf.mxu0
  %v3592 = vadd.f32 %v2014, %v3591
  %v3593 = vpop.f32.mrf.mxu0
  %3594 = vdwg.mxu0
  %vm3595 = vcmp.gt.f32.partialorder %v3592, 0.0
  %v3596 = vmin.f32 %v3592, 0.0
  %v3597 = vmul.f32 %v3596, %v345
  %v3598 = vmul.f32 %v3597, 1.442695
  %v3599 = vpow.pop %v3598
  %v3600 = vsub.f32 %v3599, 1.0
  %v3601 = vmul.f32 %v3600, 0.1
  %v3602 = vsel %vm3595, %v3592, %v3601
  %v3603 = vpack.c.bf16 %v3602, %v3602
  %v3605 = vsel %vm473, %v3603, 0
  %3607 = vmatpush.bf16.msra.mxu0 0
  %3608 = vmatpush.bf16.msra.mxu0 0
  %3609 = vmatpush.bf16.msra.mxu0 0
  %3610 = vmatpush.bf16.msra.mxu0 0
  %3611 = vmatpush.bf16.msra.mxu0 0
  %3612 = vmatpush.bf16.msra.mxu0 0
  %3613 = vmatpush.bf16.msra.mxu0 0
  %3614 = vmatpush.bf16.msra.mxu0 %v2063
  %3615 = vmatmul.bf16.gmra.mxu0 %v3605
  %v3616 = vpop.f32.mrf.mxu0
  %v3617 = vadd.f32 %v2057, %v3616
  %v3618 = vpop.f32.mrf.mxu0
  %3619 = vdwg.mxu0
  %v3620 = vadd.f32 %v3346, %v3617
  %v3621 = vld [vmem:[%s1] sm:$0x88]
  %v3622 = vld [vmem:[%s1 + $0x8] sm:$0x88]
  %v3623 = vld [vmem:[%s1 + $0x10] sm:$0x88]
  %v3624 = vld [vmem:[%s1 + $0x18] sm:$0x88]
  %v3625 = vld [vmem:[%s1 + $0x20] sm:$0x88]
  %v3626 = vld [vmem:[%s1 + $0x28] sm:$0x8]
  %v3627 = vld [vmem:[%s1 + $0x2c] sm:$0x88]
  %v3628 = vld [vmem:[%s1 + $0x34] sm:$0x88]
  %v3629 = vld [vmem:[%s1 + $0x3c] sm:$0x88]
  %v3630 = vld [vmem:[%s1 + $0x44] sm:$0x88]
  %v3631 = vld [vmem:[%s1 + $0x4c] sm:$0x88]
  %v3632 = vld [vmem:[%s1 + $0x54] sm:$0x8]
  %v3645 = vunpack.c.l.b16 %v3621
  %v3646 = vunpack.c.h.b16 %v3621
  %v3647 = vunpack.c.l.b16 %v3622
  %v3648 = vunpack.c.h.b16 %v3622
  %v3649 = vunpack.c.l.b16 %v3623
  %v3650 = vunpack.c.h.b16 %v3623
  %v3651 = vunpack.c.l.b16 %v3624
  %v3652 = vunpack.c.h.b16 %v3624
  %v3653 = vunpack.c.l.b16 %v3625
  %v3654 = vunpack.c.h.b16 %v3625
  %v3655 = vunpack.c.l.b16 %v3626
  %v3656 = vunpack.c.l.b16 %v3627
  %v3657 = vunpack.c.h.b16 %v3627
  %v3658 = vunpack.c.l.b16 %v3628
  %v3659 = vunpack.c.h.b16 %v3628
  %v3660 = vunpack.c.l.b16 %v3629
  %v3661 = vunpack.c.h.b16 %v3629
  %v3662 = vunpack.c.l.b16 %v3630
  %v3663 = vunpack.c.h.b16 %v3630
  %v3664 = vunpack.c.l.b16 %v3631
  %v3665 = vunpack.c.h.b16 %v3631
  %v3666 = vunpack.c.l.b16 %v3632
  %v3667 = vpack.c.b16 %v3645, %v3645
  %v3668 = vpack.c.b16 %v3646, %v3646
  %v3669 = vpack.c.b16 %v3647, %v3647
  %v3670 = vpack.c.b16 %v3648, %v3648
  %v3671 = vpack.c.b16 %v3649, %v3649
  %v3672 = vpack.c.b16 %v3650, %v3650
  %v3673 = vpack.c.b16 %v3651, %v3651
  %v3674 = vpack.c.b16 %v3652, %v3652
  %v3675 = vpack.c.b16 %v3653, %v3653
  %v3676 = vpack.c.b16 %v3654, %v3654
  %v3677 = vpack.c.b16 %v3655, %v3655
  %v3678 = vpack.c.b16 %v3656, %v3656
  %v3679 = vpack.c.b16 %v3657, %v3657
  %v3680 = vpack.c.b16 %v3658, %v3658
  %v3681 = vpack.c.b16 %v3659, %v3659
  %v3682 = vpack.c.b16 %v3660, %v3660
  %v3683 = vpack.c.b16 %v3661, %v3661
  %v3684 = vpack.c.b16 %v3662, %v3662
  %v3685 = vpack.c.b16 %v3663, %v3663
  %v3686 = vpack.c.b16 %v3664, %v3664
  %v3687 = vpack.c.b16 %v3665, %v3665
  %v3688 = vpack.c.b16 %v3666, %v3666
  %v3689 = vunpack.c.l.b16 %v3667
  %v3690 = vunpack.c.l.b16 %v3668
  %v3691 = vunpack.c.l.b16 %v3669
  %v3692 = vunpack.c.l.b16 %v3670
  %v3693 = vunpack.c.l.b16 %v3671
  %v3694 = vunpack.c.l.b16 %v3672
  %v3695 = vunpack.c.l.b16 %v3673
  %v3696 = vunpack.c.l.b16 %v3674
  %v3697 = vunpack.c.l.b16 %v3675
  %v3698 = vunpack.c.l.b16 %v3676
  %v3699 = vunpack.c.l.b16 %v3677
  %v3700 = vunpack.c.l.b16 %v3678
  %v3701 = vunpack.c.l.b16 %v3679
  %v3702 = vunpack.c.l.b16 %v3680
  %v3703 = vunpack.c.l.b16 %v3681
  %v3704 = vunpack.c.l.b16 %v3682
  %v3705 = vunpack.c.l.b16 %v3683
  %v3706 = vunpack.c.l.b16 %v3684
  %v3707 = vunpack.c.l.b16 %v3685
  %v3708 = vunpack.c.l.b16 %v3686
  %v3709 = vunpack.c.l.b16 %v3687
  %v3710 = vunpack.c.l.b16 %v3688
  %v3711 = vrot.slane %v3689, 6
  %v3712 = vrot.slane %v3700, 5
  %v3713 = vsel %vm142, %v3712, %v3711
  %v3714 = vrot.slane %v3690, 6
  %v3715 = vrot.slane %v3701, 5
  %v3716 = vsel %vm142, %v3715, %v3714
  %v3717 = vrot.slane %v3691, 6
  %v3718 = vrot.slane %v3702, 5
  %v3719 = vsel %vm142, %v3718, %v3717
  %v3720 = vrot.slane %v3692, 6
  %v3721 = vrot.slane %v3703, 5
  %v3722 = vsel %vm142, %v3721, %v3720
  %v3723 = vrot.slane %v3693, 6
  %v3724 = vrot.slane %v3704, 5
  %v3725 = vsel %vm142, %v3724, %v3723
  %v3726 = vrot.slane %v3694, 6
  %v3727 = vrot.slane %v3705, 5
  %v3728 = vsel %vm142, %v3727, %v3726
  %v3729 = vrot.slane %v3695, 6
  %v3730 = vrot.slane %v3706, 5
  %v3731 = vsel %vm142, %v3730, %v3729
  %v3732 = vrot.slane %v3696, 6
  %v3733 = vrot.slane %v3707, 5
  %v3734 = vsel %vm142, %v3733, %v3732
  %v3735 = vrot.slane %v3697, 6
  %v3736 = vrot.slane %v3708, 5
  %v3737 = vsel %vm142, %v3736, %v3735
  %v3738 = vrot.slane %v3698, 6
  %v3739 = vrot.slane %v3709, 5
  %v3740 = vsel %vm142, %v3739, %v3738
  %v3741 = vrot.slane %v3699, 6
  %v3742 = vrot.slane %v3710, 5
  %v3743 = vsel %vm142, %v3742, %v3741
  %v3744 = vpack.c.b16 %v3713, %v3713
  %v3745 = vpack.c.b16 %v3716, %v3716
  %v3746 = vpack.c.b16 %v3719, %v3719
  %v3747 = vpack.c.b16 %v3722, %v3722
  %v3748 = vpack.c.b16 %v3725, %v3725
  %v3749 = vpack.c.b16 %v3728, %v3728
  %v3750 = vpack.c.b16 %v3731, %v3731
  %v3751 = vpack.c.b16 %v3734, %v3734
  %v3752 = vpack.c.b16 %v3737, %v3737
  %v3753 = vpack.c.b16 %v3740, %v3740
  %v3754 = vpack.c.b16 %v3743, %v3743
  %3766 = vmatpush.bf16.msra.mxu0 %v1626
  %3767 = vmatpush.bf16.msra.mxu0 %v1625
  %3768 = vmatpush.bf16.msra.mxu0 %v1624
  %3769 = vmatpush.bf16.msra.mxu0 %v1623
  %3770 = vmatpush.bf16.msra.mxu0 %v1622
  %3771 = vmatpush.bf16.msra.mxu0 %v1621
  %3772 = vmatpush.bf16.msra.mxu0 %v1620
  %3773 = vmatpush.bf16.msra.mxu0 %v1619
  %3774 = vmatmul.bf16.gmra.mxu0 %v3744
  %v3775 = vpop.f32.mrf.mxu0
  %v3776 = vadd.f32 %v1143, %v3775
  %v3777 = vpop.f32.mrf.mxu0
  %3778 = vdwg.mxu0
  %3779 = vmatpush.bf16.msra.mxu0 %v1634
  %3780 = vmatpush.bf16.msra.mxu0 %v1633
  %3781 = vmatpush.bf16.msra.mxu0 %v1632
  %3782 = vmatpush.bf16.msra.mxu0 %v1631
  %3783 = vmatpush.bf16.msra.mxu0 %v1630
  %3784 = vmatpush.bf16.msra.mxu0 %v1629
  %3785 = vmatpush.bf16.msra.mxu0 %v1628
  %3786 = vmatpush.bf16.msra.mxu0 %v1627
  %3787 = vmatmul.bf16.gmra.mxu0 %v3745
  %v3788 = vpop.f32.mrf.mxu0
  %v3789 = vadd.f32 %v3776, %v3788
  %v3790 = vpop.f32.mrf.mxu0
  %3791 = vdwg.mxu0
  %3792 = vmatpush.bf16.msra.mxu0 %v1642
  %3793 = vmatpush.bf16.msra.mxu0 %v1641
  %3794 = vmatpush.bf16.msra.mxu0 %v1640
  %3795 = vmatpush.bf16.msra.mxu0 %v1639
  %3796 = vmatpush.bf16.msra.mxu0 %v1638
  %3797 = vmatpush.bf16.msra.mxu0 %v1637
  %3798 = vmatpush.bf16.msra.mxu0 %v1636
  %3799 = vmatpush.bf16.msra.mxu0 %v1635
  %3800 = vmatmul.bf16.gmra.mxu0 %v3746
  %v3801 = vpop.f32.mrf.mxu0
  %v3802 = vadd.f32 %v3789, %v3801
  %v3803 = vpop.f32.mrf.mxu0
  %3804 = vdwg.mxu0
  %3805 = vmatpush.bf16.msra.mxu0 %v1650
  %3806 = vmatpush.bf16.msra.mxu0 %v1649
  %3807 = vmatpush.bf16.msra.mxu0 %v1648
  %3808 = vmatpush.bf16.msra.mxu0 %v1647
  %3809 = vmatpush.bf16.msra.mxu0 %v1646
  %3810 = vmatpush.bf16.msra.mxu0 %v1645
  %3811 = vmatpush.bf16.msra.mxu0 %v1644
  %3812 = vmatpush.bf16.msra.mxu0 %v1643
  %3813 = vmatmul.bf16.gmra.mxu0 %v3747
  %v3814 = vpop.f32.mrf.mxu0
  %v3815 = vadd.f32 %v3802, %v3814
  %v3816 = vpop.f32.mrf.mxu0
  %3817 = vdwg.mxu0
  %3818 = vmatpush.bf16.msra.mxu0 %v1658
  %3819 = vmatpush.bf16.msra.mxu0 %v1657
  %3820 = vmatpush.bf16.msra.mxu0 %v1656
  %3821 = vmatpush.bf16.msra.mxu0 %v1655
  %3822 = vmatpush.bf16.msra.mxu0 %v1654
  %3823 = vmatpush.bf16.msra.mxu0 %v1653
  %3824 = vmatpush.bf16.msra.mxu0 %v1652
  %3825 = vmatpush.bf16.msra.mxu0 %v1651
  %3826 = vmatmul.bf16.gmra.mxu0 %v3748
  %v3827 = vpop.f32.mrf.mxu0
  %v3828 = vadd.f32 %v3815, %v3827
  %v3829 = vpop.f32.mrf.mxu0
  %3830 = vdwg.mxu0
  %3831 = vmatpush.bf16.msra.mxu0 %v1666
  %3832 = vmatpush.bf16.msra.mxu0 %v1665
  %3833 = vmatpush.bf16.msra.mxu0 %v1664
  %3834 = vmatpush.bf16.msra.mxu0 %v1663
  %3835 = vmatpush.bf16.msra.mxu0 %v1662
  %3836 = vmatpush.bf16.msra.mxu0 %v1661
  %3837 = vmatpush.bf16.msra.mxu0 %v1660
  %3838 = vmatpush.bf16.msra.mxu0 %v1659
  %3839 = vmatmul.bf16.gmra.mxu0 %v3749
  %v3840 = vpop.f32.mrf.mxu0
  %v3841 = vadd.f32 %v3828, %v3840
  %v3842 = vpop.f32.mrf.mxu0
  %3843 = vdwg.mxu0
  %3844 = vmatpush.bf16.msra.mxu0 %v1674
  %3845 = vmatpush.bf16.msra.mxu0 %v1673
  %3846 = vmatpush.bf16.msra.mxu0 %v1672
  %3847 = vmatpush.bf16.msra.mxu0 %v1671
  %3848 = vmatpush.bf16.msra.mxu0 %v1670
  %3849 = vmatpush.bf16.msra.mxu0 %v1669
  %3850 = vmatpush.bf16.msra.mxu0 %v1668
  %3851 = vmatpush.bf16.msra.mxu0 %v1667
  %3852 = vmatmul.bf16.gmra.mxu0 %v3750
  %v3853 = vpop.f32.mrf.mxu0
  %v3854 = vadd.f32 %v3841, %v3853
  %v3855 = vpop.f32.mrf.mxu0
  %3856 = vdwg.mxu0
  %3857 = vmatpush.bf16.msra.mxu0 %v1682
  %3858 = vmatpush.bf16.msra.mxu0 %v1681
  %3859 = vmatpush.bf16.msra.mxu0 %v1680
  %3860 = vmatpush.bf16.msra.mxu0 %v1679
  %3861 = vmatpush.bf16.msra.mxu0 %v1678
  %3862 = vmatpush.bf16.msra.mxu0 %v1677
  %3863 = vmatpush.bf16.msra.mxu0 %v1676
  %3864 = vmatpush.bf16.msra.mxu0 %v1675
  %3865 = vmatmul.bf16.gmra.mxu0 %v3751
  %v3866 = vpop.f32.mrf.mxu0
  %v3867 = vadd.f32 %v3854, %v3866
  %v3868 = vpop.f32.mrf.mxu0
  %3869 = vdwg.mxu0
  %3870 = vmatpush.bf16.msra.mxu0 %v1690
  %3871 = vmatpush.bf16.msra.mxu0 %v1689
  %3872 = vmatpush.bf16.msra.mxu0 %v1688
  %3873 = vmatpush.bf16.msra.mxu0 %v1687
  %3874 = vmatpush.bf16.msra.mxu0 %v1686
  %3875 = vmatpush.bf16.msra.mxu0 %v1685
  %3876 = vmatpush.bf16.msra.mxu0 %v1684
  %3877 = vmatpush.bf16.msra.mxu0 %v1683
  %3878 = vmatmul.bf16.gmra.mxu0 %v3752
  %v3879 = vpop.f32.mrf.mxu0
  %v3880 = vadd.f32 %v3867, %v3879
  %v3881 = vpop.f32.mrf.mxu0
  %3882 = vdwg.mxu0
  %3883 = vmatpush.bf16.msra.mxu0 %v1698
  %3884 = vmatpush.bf16.msra.mxu0 %v1697
  %3885 = vmatpush.bf16.msra.mxu0 %v1696
  %3886 = vmatpush.bf16.msra.mxu0 %v1695
  %3887 = vmatpush.bf16.msra.mxu0 %v1694
  %3888 = vmatpush.bf16.msra.mxu0 %v1693
  %3889 = vmatpush.bf16.msra.mxu0 %v1692
  %3890 = vmatpush.bf16.msra.mxu0 %v1691
  %3891 = vmatmul.bf16.gmra.mxu0 %v3753
  %v3892 = vpop.f32.mrf.mxu0
  %v3893 = vadd.f32 %v3880, %v3892
  %v3894 = vpop.f32.mrf.mxu0
  %3895 = vdwg.mxu0
  %3896 = vmatpush.bf16.msra.mxu0 %v1706
  %3897 = vmatpush.bf16.msra.mxu0 %v1705
  %3898 = vmatpush.bf16.msra.mxu0 %v1704
  %3899 = vmatpush.bf16.msra.mxu0 %v1703
  %3900 = vmatpush.bf16.msra.mxu0 %v1702
  %3901 = vmatpush.bf16.msra.mxu0 %v1701
  %3902 = vmatpush.bf16.msra.mxu0 %v1700
  %3903 = vmatpush.bf16.msra.mxu0 %v1699
  %3904 = vmatmul.bf16.gmra.mxu0 %v3754
  %v3905 = vpop.f32.mrf.mxu0
  %v3906 = vadd.f32 %v3893, %v3905
  %v3907 = vpop.f32.mrf.mxu0
  %3908 = vdwg.mxu0
  %vm3909 = vcmp.gt.f32.partialorder %v3906, 0.0
  %v3910 = vmin.f32 %v3906, 0.0
  %v3911 = vmul.f32 %v3910, %v345
  %v3912 = vmul.f32 %v3911, 1.442695
  %v3913 = vpow.pop %v3912
  %v3914 = vsub.f32 %v3913, 1.0
  %v3915 = vmul.f32 %v3914, 0.1
  %v3916 = vsel %vm3909, %v3906, %v3915
  %v3917 = vpack.c.bf16 %v3916, %v3916
  %v3919 = vsel %vm389, %v3917, 0
  %3921 = vmatpush.bf16.msra.mxu0 0
  %3922 = vmatpush.bf16.msra.mxu0 0
  %3923 = vmatpush.bf16.msra.mxu0 0
  %3924 = vmatpush.bf16.msra.mxu0 0
  %3925 = vmatpush.bf16.msra.mxu0 %v1978
  %3926 = vmatpush.bf16.msra.mxu0 %v1977
  %3927 = vmatpush.bf16.msra.mxu0 %v1976
  %3928 = vmatpush.bf16.msra.mxu0 %v1975
  %3929 = vmatmul.bf16.gmra.mxu0 %v3919
  %v3930 = vpop.f32.mrf.mxu0
  %v3931 = vadd.f32 %v1957, %v3930
  %v3932 = vpop.f32.mrf.mxu0
  %3933 = vdwg.mxu0
  %vm3934 = vcmp.gt.f32.partialorder %v3931, 0.0
  %v3935 = vmin.f32 %v3931, 0.0
  %v3936 = vmul.f32 %v3935, %v345
  %v3937 = vmul.f32 %v3936, 1.442695
  %v3938 = vpow.pop %v3937
  %v3939 = vsub.f32 %v3938, 1.0
  %v3940 = vmul.f32 %v3939, 0.1
  %v3941 = vsel %vm3934, %v3931, %v3940
  %v3942 = vpack.c.bf16 %v3941, %v3941
  %v3944 = vsel %vm435, %v3942, 0
  %3946 = vmatpush.bf16.msra.mxu0 0
  %3947 = vmatpush.bf16.msra.mxu0 0
  %3948 = vmatpush.bf16.msra.mxu0 0
  %3949 = vmatpush.bf16.msra.mxu0 0
  %3950 = vmatpush.bf16.msra.mxu0 0
  %3951 = vmatpush.bf16.msra.mxu0 0
  %3952 = vmatpush.bf16.msra.mxu0 %v2025
  %3953 = vmatpush.bf16.msra.mxu0 %v2024
  %3954 = vmatmul.bf16.gmra.mxu0 %v3944
  %v3955 = vpop.f32.mrf.mxu0
  %v3956 = vadd.f32 %v2014, %v3955
  %v3957 = vpop.f32.mrf.mxu0
  %3958 = vdwg.mxu0
  %vm3959 = vcmp.gt.f32.partialorder %v3956, 0.0
  %v3960 = vmin.f32 %v3956, 0.0
  %v3961 = vmul.f32 %v3960, %v345
  %v3962 = vmul.f32 %v3961, 1.442695
  %v3963 = vpow.pop %v3962
  %v3964 = vsub.f32 %v3963, 1.0
  %v3965 = vmul.f32 %v3964, 0.1
  %v3966 = vsel %vm3959, %v3956, %v3965
  %v3967 = vpack.c.bf16 %v3966, %v3966
  %v3969 = vsel %vm473, %v3967, 0
  %3971 = vmatpush.bf16.msra.mxu0 0
  %3972 = vmatpush.bf16.msra.mxu0 0
  %3973 = vmatpush.bf16.msra.mxu0 0
  %3974 = vmatpush.bf16.msra.mxu0 0
  %3975 = vmatpush.bf16.msra.mxu0 0
  %3976 = vmatpush.bf16.msra.mxu0 0
  %3977 = vmatpush.bf16.msra.mxu0 0
  %3978 = vmatpush.bf16.msra.mxu0 %v2063
  %3979 = vmatmul.bf16.gmra.mxu0 %v3969
  %v3980 = vpop.f32.mrf.mxu0
  %v3981 = vadd.f32 %v2057, %v3980
  %v3982 = vpop.f32.mrf.mxu0
  %3983 = vdwg.mxu0
  %v3984 = vadd.f32 %v3620, %v3981
  %v3985 = vrot.slane %v3689, 7
  %v3986 = vrot.slane %v3700, 6
  %v3987 = vsel %vm142, %v3986, %v3985
  %v3988 = vrot.slane %v3690, 7
  %v3989 = vrot.slane %v3701, 6
  %v3990 = vsel %vm142, %v3989, %v3988
  %v3991 = vrot.slane %v3691, 7
  %v3992 = vrot.slane %v3702, 6
  %v3993 = vsel %vm142, %v3992, %v3991
  %v3994 = vrot.slane %v3692, 7
  %v3995 = vrot.slane %v3703, 6
  %v3996 = vsel %vm142, %v3995, %v3994
  %v3997 = vrot.slane %v3693, 7
  %v3998 = vrot.slane %v3704, 6
  %v3999 = vsel %vm142, %v3998, %v3997
  %v4000 = vrot.slane %v3694, 7
  %v4001 = vrot.slane %v3705, 6
  %v4002 = vsel %vm142, %v4001, %v4000
  %v4003 = vrot.slane %v3695, 7
  %v4004 = vrot.slane %v3706, 6
  %v4005 = vsel %vm142, %v4004, %v4003
  %v4006 = vrot.slane %v3696, 7
  %v4007 = vrot.slane %v3707, 6
  %v4008 = vsel %vm142, %v4007, %v4006
  %v4009 = vrot.slane %v3697, 7
  %v4010 = vrot.slane %v3708, 6
  %v4011 = vsel %vm142, %v4010, %v4009
  %v4012 = vrot.slane %v3698, 7
  %v4013 = vrot.slane %v3709, 6
  %v4014 = vsel %vm142, %v4013, %v4012
  %v4015 = vrot.slane %v3699, 7
  %v4016 = vrot.slane %v3710, 6
  %v4017 = vsel %vm142, %v4016, %v4015
  %v4018 = vpack.c.b16 %v3987, %v3987
  %v4019 = vpack.c.b16 %v3990, %v3990
  %v4020 = vpack.c.b16 %v3993, %v3993
  %v4021 = vpack.c.b16 %v3996, %v3996
  %v4022 = vpack.c.b16 %v3999, %v3999
  %v4023 = vpack.c.b16 %v4002, %v4002
  %v4024 = vpack.c.b16 %v4005, %v4005
  %v4025 = vpack.c.b16 %v4008, %v4008
  %v4026 = vpack.c.b16 %v4011, %v4011
  %v4027 = vpack.c.b16 %v4014, %v4014
  %v4028 = vpack.c.b16 %v4017, %v4017
  %4040 = vmatpush.bf16.msra.mxu0 %v1626
  %4041 = vmatpush.bf16.msra.mxu0 %v1625
  %4042 = vmatpush.bf16.msra.mxu0 %v1624
  %4043 = vmatpush.bf16.msra.mxu0 %v1623
  %4044 = vmatpush.bf16.msra.mxu0 %v1622
  %4045 = vmatpush.bf16.msra.mxu0 %v1621
  %4046 = vmatpush.bf16.msra.mxu0 %v1620
  %4047 = vmatpush.bf16.msra.mxu0 %v1619
  %4048 = vmatmul.bf16.gmra.mxu0 %v4018
  %v4049 = vpop.f32.mrf.mxu0
  %v4050 = vadd.f32 %v1143, %v4049
  %v4051 = vpop.f32.mrf.mxu0
  %4052 = vdwg.mxu0
  %4053 = vmatpush.bf16.msra.mxu0 %v1634
  %4054 = vmatpush.bf16.msra.mxu0 %v1633
  %4055 = vmatpush.bf16.msra.mxu0 %v1632
  %4056 = vmatpush.bf16.msra.mxu0 %v1631
  %4057 = vmatpush.bf16.msra.mxu0 %v1630
  %4058 = vmatpush.bf16.msra.mxu0 %v1629
  %4059 = vmatpush.bf16.msra.mxu0 %v1628
  %4060 = vmatpush.bf16.msra.mxu0 %v1627
  %4061 = vmatmul.bf16.gmra.mxu0 %v4019
  %v4062 = vpop.f32.mrf.mxu0
  %v4063 = vadd.f32 %v4050, %v4062
  %v4064 = vpop.f32.mrf.mxu0
  %4065 = vdwg.mxu0
  %4066 = vmatpush.bf16.msra.mxu0 %v1642
  %4067 = vmatpush.bf16.msra.mxu0 %v1641
  %4068 = vmatpush.bf16.msra.mxu0 %v1640
  %4069 = vmatpush.bf16.msra.mxu0 %v1639
  %4070 = vmatpush.bf16.msra.mxu0 %v1638
  %4071 = vmatpush.bf16.msra.mxu0 %v1637
  %4072 = vmatpush.bf16.msra.mxu0 %v1636
  %4073 = vmatpush.bf16.msra.mxu0 %v1635
  %4074 = vmatmul.bf16.gmra.mxu0 %v4020
  %v4075 = vpop.f32.mrf.mxu0
  %v4076 = vadd.f32 %v4063, %v4075
  %v4077 = vpop.f32.mrf.mxu0
  %4078 = vdwg.mxu0
  %4079 = vmatpush.bf16.msra.mxu0 %v1650
  %4080 = vmatpush.bf16.msra.mxu0 %v1649
  %4081 = vmatpush.bf16.msra.mxu0 %v1648
  %4082 = vmatpush.bf16.msra.mxu0 %v1647
  %4083 = vmatpush.bf16.msra.mxu0 %v1646
  %4084 = vmatpush.bf16.msra.mxu0 %v1645
  %4085 = vmatpush.bf16.msra.mxu0 %v1644
  %4086 = vmatpush.bf16.msra.mxu0 %v1643
  %4087 = vmatmul.bf16.gmra.mxu0 %v4021
  %v4088 = vpop.f32.mrf.mxu0
  %v4089 = vadd.f32 %v4076, %v4088
  %v4090 = vpop.f32.mrf.mxu0
  %4091 = vdwg.mxu0
  %4092 = vmatpush.bf16.msra.mxu0 %v1658
  %4093 = vmatpush.bf16.msra.mxu0 %v1657
  %4094 = vmatpush.bf16.msra.mxu0 %v1656
  %4095 = vmatpush.bf16.msra.mxu0 %v1655
  %4096 = vmatpush.bf16.msra.mxu0 %v1654
  %4097 = vmatpush.bf16.msra.mxu0 %v1653
  %4098 = vmatpush.bf16.msra.mxu0 %v1652
  %4099 = vmatpush.bf16.msra.mxu0 %v1651
  %4100 = vmatmul.bf16.gmra.mxu0 %v4022
  %v4101 = vpop.f32.mrf.mxu0
  %v4102 = vadd.f32 %v4089, %v4101
  %v4103 = vpop.f32.mrf.mxu0
  %4104 = vdwg.mxu0
  %4105 = vmatpush.bf16.msra.mxu0 %v1666
  %4106 = vmatpush.bf16.msra.mxu0 %v1665
  %4107 = vmatpush.bf16.msra.mxu0 %v1664
  %4108 = vmatpush.bf16.msra.mxu0 %v1663
  %4109 = vmatpush.bf16.msra.mxu0 %v1662
  %4110 = vmatpush.bf16.msra.mxu0 %v1661
  %4111 = vmatpush.bf16.msra.mxu0 %v1660
  %4112 = vmatpush.bf16.msra.mxu0 %v1659
  %4113 = vmatmul.bf16.gmra.mxu0 %v4023
  %v4114 = vpop.f32.mrf.mxu0
  %v4115 = vadd.f32 %v4102, %v4114
  %v4116 = vpop.f32.mrf.mxu0
  %4117 = vdwg.mxu0
  %4118 = vmatpush.bf16.msra.mxu0 %v1674
  %4119 = vmatpush.bf16.msra.mxu0 %v1673
  %4120 = vmatpush.bf16.msra.mxu0 %v1672
  %4121 = vmatpush.bf16.msra.mxu0 %v1671
  %4122 = vmatpush.bf16.msra.mxu0 %v1670
  %4123 = vmatpush.bf16.msra.mxu0 %v1669
  %4124 = vmatpush.bf16.msra.mxu0 %v1668
  %4125 = vmatpush.bf16.msra.mxu0 %v1667
  %4126 = vmatmul.bf16.gmra.mxu0 %v4024
  %v4127 = vpop.f32.mrf.mxu0
  %v4128 = vadd.f32 %v4115, %v4127
  %v4129 = vpop.f32.mrf.mxu0
  %4130 = vdwg.mxu0
  %4131 = vmatpush.bf16.msra.mxu0 %v1682
  %4132 = vmatpush.bf16.msra.mxu0 %v1681
  %4133 = vmatpush.bf16.msra.mxu0 %v1680
  %4134 = vmatpush.bf16.msra.mxu0 %v1679
  %4135 = vmatpush.bf16.msra.mxu0 %v1678
  %4136 = vmatpush.bf16.msra.mxu0 %v1677
  %4137 = vmatpush.bf16.msra.mxu0 %v1676
  %4138 = vmatpush.bf16.msra.mxu0 %v1675
  %4139 = vmatmul.bf16.gmra.mxu0 %v4025
  %v4140 = vpop.f32.mrf.mxu0
  %v4141 = vadd.f32 %v4128, %v4140
  %v4142 = vpop.f32.mrf.mxu0
  %4143 = vdwg.mxu0
  %4144 = vmatpush.bf16.msra.mxu0 %v1690
  %4145 = vmatpush.bf16.msra.mxu0 %v1689
  %4146 = vmatpush.bf16.msra.mxu0 %v1688
  %4147 = vmatpush.bf16.msra.mxu0 %v1687
  %4148 = vmatpush.bf16.msra.mxu0 %v1686
  %4149 = vmatpush.bf16.msra.mxu0 %v1685
  %4150 = vmatpush.bf16.msra.mxu0 %v1684
  %4151 = vmatpush.bf16.msra.mxu0 %v1683
  %4152 = vmatmul.bf16.gmra.mxu0 %v4026
  %v4153 = vpop.f32.mrf.mxu0
  %v4154 = vadd.f32 %v4141, %v4153
  %v4155 = vpop.f32.mrf.mxu0
  %4156 = vdwg.mxu0
  %4157 = vmatpush.bf16.msra.mxu0 %v1698
  %4158 = vmatpush.bf16.msra.mxu0 %v1697
  %4159 = vmatpush.bf16.msra.mxu0 %v1696
  %4160 = vmatpush.bf16.msra.mxu0 %v1695
  %4161 = vmatpush.bf16.msra.mxu0 %v1694
  %4162 = vmatpush.bf16.msra.mxu0 %v1693
  %4163 = vmatpush.bf16.msra.mxu0 %v1692
  %4164 = vmatpush.bf16.msra.mxu0 %v1691
  %4165 = vmatmul.bf16.gmra.mxu0 %v4027
  %v4166 = vpop.f32.mrf.mxu0
  %v4167 = vadd.f32 %v4154, %v4166
  %v4168 = vpop.f32.mrf.mxu0
  %4169 = vdwg.mxu0
  %4170 = vmatpush.bf16.msra.mxu0 %v1706
  %4171 = vmatpush.bf16.msra.mxu0 %v1705
  %4172 = vmatpush.bf16.msra.mxu0 %v1704
  %4173 = vmatpush.bf16.msra.mxu0 %v1703
  %4174 = vmatpush.bf16.msra.mxu0 %v1702
  %4175 = vmatpush.bf16.msra.mxu0 %v1701
  %4176 = vmatpush.bf16.msra.mxu0 %v1700
  %4177 = vmatpush.bf16.msra.mxu0 %v1699
  %4178 = vmatmul.bf16.gmra.mxu0 %v4028
  %v4179 = vpop.f32.mrf.mxu0
  %v4180 = vadd.f32 %v4167, %v4179
  %v4181 = vpop.f32.mrf.mxu0
  %4182 = vdwg.mxu0
  %vm4183 = vcmp.gt.f32.partialorder %v4180, 0.0
  %v4184 = vmin.f32 %v4180, 0.0
  %v4185 = vmul.f32 %v4184, %v345
  %v4186 = vmul.f32 %v4185, 1.442695
  %v4187 = vpow.pop %v4186
  %v4188 = vsub.f32 %v4187, 1.0
  %v4189 = vmul.f32 %v4188, 0.1
  %v4190 = vsel %vm4183, %v4180, %v4189
  %v4191 = vpack.c.bf16 %v4190, %v4190
  %v4193 = vsel %vm389, %v4191, 0
  %4195 = vmatpush.bf16.msra.mxu0 0
  %4196 = vmatpush.bf16.msra.mxu0 0
  %4197 = vmatpush.bf16.msra.mxu0 0
  %4198 = vmatpush.bf16.msra.mxu0 0
  %4199 = vmatpush.bf16.msra.mxu0 %v1978
  %4200 = vmatpush.bf16.msra.mxu0 %v1977
  %4201 = vmatpush.bf16.msra.mxu0 %v1976
  %4202 = vmatpush.bf16.msra.mxu0 %v1975
  %4203 = vmatmul.bf16.gmra.mxu0 %v4193
  %v4204 = vpop.f32.mrf.mxu0
  %v4205 = vadd.f32 %v1957, %v4204
  %v4206 = vpop.f32.mrf.mxu0
  %4207 = vdwg.mxu0
  %vm4208 = vcmp.gt.f32.partialorder %v4205, 0.0
  %v4209 = vmin.f32 %v4205, 0.0
  %v4210 = vmul.f32 %v4209, %v345
  %v4211 = vmul.f32 %v4210, 1.442695
  %v4212 = vpow.pop %v4211
  %v4213 = vsub.f32 %v4212, 1.0
  %v4214 = vmul.f32 %v4213, 0.1
  %v4215 = vsel %vm4208, %v4205, %v4214
  %v4216 = vpack.c.bf16 %v4215, %v4215
  %v4218 = vsel %vm435, %v4216, 0
  %4220 = vmatpush.bf16.msra.mxu0 0
  %4221 = vmatpush.bf16.msra.mxu0 0
  %4222 = vmatpush.bf16.msra.mxu0 0
  %4223 = vmatpush.bf16.msra.mxu0 0
  %4224 = vmatpush.bf16.msra.mxu0 0
  %4225 = vmatpush.bf16.msra.mxu0 0
  %4226 = vmatpush.bf16.msra.mxu0 %v2025
  %4227 = vmatpush.bf16.msra.mxu0 %v2024
  %4228 = vmatmul.bf16.gmra.mxu0 %v4218
  %v4229 = vpop.f32.mrf.mxu0
  %v4230 = vadd.f32 %v2014, %v4229
  %v4231 = vpop.f32.mrf.mxu0
  %4232 = vdwg.mxu0
  %vm4233 = vcmp.gt.f32.partialorder %v4230, 0.0
  %v4234 = vmin.f32 %v4230, 0.0
  %v4235 = vmul.f32 %v4234, %v345
  %v4236 = vmul.f32 %v4235, 1.442695
  %v4237 = vpow.pop %v4236
  %v4238 = vsub.f32 %v4237, 1.0
  %v4239 = vmul.f32 %v4238, 0.1
  %v4240 = vsel %vm4233, %v4230, %v4239
  %v4241 = vpack.c.bf16 %v4240, %v4240
  %v4243 = vsel %vm473, %v4241, 0
  %4245 = vmatpush.bf16.msra.mxu0 0
  %4246 = vmatpush.bf16.msra.mxu0 0
  %4247 = vmatpush.bf16.msra.mxu0 0
  %4248 = vmatpush.bf16.msra.mxu0 0
  %4249 = vmatpush.bf16.msra.mxu0 0
  %4250 = vmatpush.bf16.msra.mxu0 0
  %4251 = vmatpush.bf16.msra.mxu0 0
  %4252 = vmatpush.bf16.msra.mxu0 %v2063
  %4253 = vmatmul.bf16.gmra.mxu0 %v4243
  %v4254 = vpop.f32.mrf.mxu0
  %v4255 = vadd.f32 %v2057, %v4254
  %v4256 = vpop.f32.mrf.mxu0
  %4257 = vdwg.mxu0
  %v4258 = vadd.f32 %v3984, %v4255
  %vm4259 = vcmask 1024
  %4260 = vst.msk [vmem:[%s18] sm:$0x3] %vm4259, %v4258
  // Predicated region
  $region74: #{tpu_custom_call.1} parent=0 // pred_check
    _
  $region75: #{tpu_custom_call.1} parent=0 // pred_check_branch
    %4262 = sbr.rel (0) target = $region77
  $region76: #{tpu_custom_call.1} parent=0 // pred_region
    _
  $region77: #{tpu_custom_call.1} parent=0 // pred_fallthru
    _
  // Predicated region
  $region78: #{tpu_custom_call.1} parent=0 // pred_check
    _
  $region79: #{tpu_custom_call.1} parent=0 // pred_check_branch
    %4264 = sbr.rel (0) target = $region81
  $region80: #{tpu_custom_call.1} parent=0 // pred_region
    _
  $region81: #{tpu_custom_call.1} parent=0 // pred_fallthru
    _

</llo_original>
